<compile_context>
chip_gen: v7x
topology: tpu7x:2x2x1
jax: 0.10.0
libtpu: 0.0.40
codegen_flags: <defaults>
</compile_context>

<pallas_src>
import functools

import jax
import jax.numpy as jnp
from jax import lax
from jax.experimental import pallas as pl
from jax.experimental.pallas import tpu as pltpu

LN_EPS = 1e-5  # nn.LayerNorm default eps


def _layernorm(x, g, b):
    mean = jnp.mean(x, axis=-1, keepdims=True)
    var = jnp.mean(jnp.square(x - mean), axis=-1, keepdims=True)
    return (x - mean) * lax.rsqrt(var + LN_EPS) * g + b


def slot_attention_kernel(
        x_ref, slots0_ref,
        ln_in_ref, wkv_ref, wq_ref, lnm_ref,
        wi3_ref, wh3_ref, bgru_ref, w1_ref, b1_ref, w2_ref,
        out_ref,
        *, iters, eps):
    Bt, N, Din = x_ref.shape
    _, S, D = slots0_ref.shape
    BS = Bt * S
    H = w1_ref.shape[1]

    # ---- fold batch into the sublane dimension -------------------------
    x = jnp.concatenate([x_ref[b] for b in range(Bt)], axis=0)           # (Bt*N, Din)
    slots = jnp.concatenate([slots0_ref[b] for b in range(Bt)], axis=0)  # (BS, D)

    ln_in = ln_in_ref[...]
    xn = _layernorm(x, ln_in[0:1, :], ln_in[1:2, :])                     # norm_input

    # one matmul produces both k and v (Wk|Wv concatenated in the wrapper)
    kv = jnp.dot(xn, wkv_ref[...], preferred_element_type=jnp.float32)   # (Bt*N, 2D)
    k = kv[:, :D]
    v = kv[:, D:2 * D]

    # hoist loop-invariant per-batch operands; k is transposed ONCE
    kT = [k[b * N:(b + 1) * N, :].T for b in range(Bt)]                  # (D, N) each
    vb = [v[b * N:(b + 1) * N, :] for b in range(Bt)]                    # (N, D) each

    # hoist (1, dim) parameter broadcasts out of the unrolled iteration loop
    lnm = lnm_ref[...]
    ln_s_g = jnp.broadcast_to(lnm[0:1, :], (BS, D))
    ln_s_b = jnp.broadcast_to(lnm[1:2, :], (BS, D))
    ln_f_g = jnp.broadcast_to(lnm[2:3, :], (BS, D))
    ln_f_b = jnp.broadcast_to(lnm[3:4, :], (BS, D))
    b2 = jnp.broadcast_to(lnm[4:5, :], (BS, D))
    bgru = bgru_ref[...]
    b_i3 = jnp.broadcast_to(bgru[0:1, :], (BS, 3 * D))
    b_h3 = jnp.broadcast_to(bgru[1:2, :], (BS, 3 * D))
    b1 = jnp.broadcast_to(b1_ref[...], (BS, H))

    wq = wq_ref[...]        # attention scale already folded in
    wi3 = wi3_ref[...]
    wh3 = wh3_ref[...]
    w1 = w1_ref[...]
    w2 = w2_ref[...]

    for _ in range(iters):  # static, unrolled (iters == 3)
        slots_prev = slots
        sn = _layernorm(slots, ln_s_g, ln_s_b)                           # norm_slots
        q = jnp.dot(sn, wq, preferred_element_type=jnp.float32)          # (BS, D)

        upd = []
        for b in range(Bt):
            q_b = q[b * S:(b + 1) * S, :]                                # (S, D)
            dots = jnp.dot(q_b, kT[b], preferred_element_type=jnp.float32)  # (S, N)
            # torch softmax(dim=1) is over the SLOT axis (axis 0 per batch)
            m = jnp.max(dots, axis=0, keepdims=True)
            e = jnp.exp(dots - m)
            attn = e * pl.reciprocal(jnp.sum(e, axis=0, keepdims=True),
                                     approx=True) + eps
            attn_n = attn * pl.reciprocal(jnp.sum(attn, axis=-1, keepdims=True),
                                          approx=True)
            upd.append(jnp.dot(attn_n, vb[b],
                               preferred_element_type=jnp.float32))      # (S, D)
        updates = jnp.concatenate(upd, axis=0)                           # (BS, D)

        # GRU cell (seq_len == 1): input = updates, hidden = slots_prev.
        # Gates computed with concatenated [r|z|n] weights, sliced statically.
        gi = jnp.dot(updates, wi3, preferred_element_type=jnp.float32) + b_i3
        gh = jnp.dot(slots_prev, wh3, preferred_element_type=jnp.float32) + b_h3
        r = jax.nn.sigmoid(gi[:, :D] + gh[:, :D])
        z = jax.nn.sigmoid(gi[:, D:2 * D] + gh[:, D:2 * D])
        n_gate = jnp.tanh(gi[:, 2 * D:] + r * gh[:, 2 * D:])
        slots = (1.0 - z) * n_gate + z * slots_prev

        # norm_pre_ff then residual MLP (residual is off the NORMALIZED slots,
        # exactly as in the PyTorch forward)
        slots = _layernorm(slots, ln_f_g, ln_f_b)
        h = jnp.maximum(
            jnp.dot(slots, w1, preferred_element_type=jnp.float32) + b1, 0.0)
        slots = slots + jnp.dot(h, w2, preferred_element_type=jnp.float32) + b2

    out_ref[...] = slots


def run_slot_attention(inputs, slots_init, params, *, iters=3, eps=1e-8,
                       batch_block=None):
    B, N, Din = inputs.shape
    _, S, D = slots_init.shape
    scale = float(D) ** -0.5

    # batch_block=B -> single grid step (best on v5e/v6e, everything fits VMEM).
    # On v7x one may pass batch_block=B//2 to use both TensorCores.
    if batch_block is None:
        batch_block = B
    assert B % batch_block == 0
    n_blocks = B // batch_block

    # ---- pack / concatenate parameters (plain JAX, outside the kernel) ----
    ln_in = jnp.concatenate([params["ln_in_g"], params["ln_in_b"]], axis=0)   # (2, Din)
    wkv = jnp.concatenate([params["wk_t"], params["wv_t"]], axis=1)           # (Din, 2D)
    wq = params["wq_t"] * scale                                               # fold scale
    lnm = jnp.concatenate([params["ln_s_g"], params["ln_s_b"],
                           params["ln_ff_g"], params["ln_ff_b"],
                           params["b2"]], axis=0)                             # (5, D)
    wi3 = jnp.concatenate([params["w_ir"], params["w_iz"], params["w_in"]],
                          axis=1)                                             # (D, 3D)
    wh3 = jnp.concatenate([params["w_hr"], params["w_hz"], params["w_hn"]],
                          axis=1)                                             # (D, 3D)
    bgru = jnp.concatenate(
        [jnp.concatenate([params["b_ir"], params["b_iz"], params["b_in"]], axis=1),
         jnp.concatenate([params["b_hr"], params["b_hz"], params["b_hn"]], axis=1)],
        axis=0)                                                               # (2, 3D)
    w1, b1, w2 = params["w1_t"], params["b1"], params["w2_t"]

    param_arrays = [ln_in, wkv, wq, lnm, wi3, wh3, bgru, w1, b1, w2]
    param_specs = [pl.BlockSpec(p.shape, lambda i, nd=p.ndim: (0,) * nd)
                   for p in param_arrays]

    kernel = functools.partial(slot_attention_kernel, iters=iters, eps=eps)

    out = pl.pallas_call(
        kernel,
        out_shape=jax.ShapeDtypeStruct((B * S, D), jnp.float32),
        grid_spec=pltpu.PrefetchScalarGridSpec(
            num_scalar_prefetch=0,
            grid=(n_blocks,),
            in_specs=[
                pl.BlockSpec((batch_block, N, Din), lambda i: (i, 0, 0)),  # inputs
                pl.BlockSpec((batch_block, S, D), lambda i: (i, 0, 0)),    # slots_init
            ] + param_specs,
            out_specs=pl.BlockSpec((batch_block * S, D), lambda i: (i, 0)),
        ),
        compiler_params=pltpu.CompilerParams(
            dimension_semantics=("parallel",)),
    )(inputs, slots_init, *param_arrays)
    return out.reshape(B, S, D)


def slot_attention_ref(inputs, slots_init, p, *, iters=3, eps=1e-8):
    """Pure-JAX reference (same math as the PyTorch forward)."""
    D = slots_init.shape[-1]
    scale = float(D) ** -0.5

    def ln(x, g, b):
        m = x.mean(-1, keepdims=True)
        v = ((x - m) ** 2).mean(-1, keepdims=True)
        return (x - m) / jnp.sqrt(v + LN_EPS) * g + b

    x = ln(inputs, p["ln_in_g"][0], p["ln_in_b"][0])
    k = x @ p["wk_t"]
    v = x @ p["wv_t"]
    slots = slots_init
    for _ in range(iters):
        prev = slots
        sn = ln(slots, p["ln_s_g"][0], p["ln_s_b"][0])
        q = sn @ p["wq_t"]
        dots = jnp.einsum("bid,bjd->bij", q, k) * scale
        attn = jax.nn.softmax(dots, axis=1) + eps
        attn_n = attn / attn.sum(-1, keepdims=True)
        updates = jnp.einsum("bjd,bij->bid", v, attn_n)
        r = jax.nn.sigmoid(updates @ p["w_ir"] + p["b_ir"] + prev @ p["w_hr"] + p["b_hr"])
        z = jax.nn.sigmoid(updates @ p["w_iz"] + p["b_iz"] + prev @ p["w_hz"] + p["b_hz"])
        n_gate = jnp.tanh(updates @ p["w_in"] + p["b_in"]
                          + r * (prev @ p["w_hn"] + p["b_hn"]))
        slots = (1.0 - z) * n_gate + z * prev
        slots = ln(slots, p["ln_ff_g"][0], p["ln_ff_b"][0])
        h = jax.nn.relu(slots @ p["w1_t"] + p["b1"])
        slots = slots + h @ p["w2_t"] + p["b2"]
    return slots


def init_params(key, input_dim, slot_dim, hidden_dim):
    ks = jax.random.split(key, 20)
    f32 = jnp.float32

    def w(k, fan_in, shape):
        return jax.random.normal(k, shape, f32) / jnp.sqrt(float(fan_in))

    D, Din, H = slot_dim, input_dim, max(slot_dim, hidden_dim)
    p = {
        "ln_in_g": jnp.ones((1, Din), f32),
        "ln_in_b": jnp.zeros((1, Din), f32),
        "wk_t": w(ks[0], Din, (Din, D)),
        "wv_t": w(ks[1], Din, (Din, D)),
        "wq_t": w(ks[2], D, (D, D)),
        "ln_s_g": jnp.ones((1, D), f32),
        "ln_s_b": jnp.zeros((1, D), f32),
        # GRU gate weights (already transposed for x @ W)
        "w_ir": w(ks[3], D, (D, D)), "w_iz": w(ks[4], D, (D, D)), "w_in": w(ks[5], D, (D, D)),
        "w_hr": w(ks[6], D, (D, D)), "w_hz": w(ks[7], D, (D, D)), "w_hn": w(ks[8], D, (D, D)),
        "b_ir": 0.01 * jax.random.normal(ks[9], (1, D), f32),
        "b_iz": 0.01 * jax.random.normal(ks[10], (1, D), f32),
        "b_in": 0.01 * jax.random.normal(ks[11], (1, D), f32),
        "b_hr": 0.01 * jax.random.normal(ks[12], (1, D), f32),
        "b_hz": 0.01 * jax.random.normal(ks[13], (1, D), f32),
        "b_hn": 0.01 * jax.random.normal(ks[14], (1, D), f32),
        "ln_ff_g": jnp.ones((1, D), f32),
        "ln_ff_b": jnp.zeros((1, D), f32),
        "w1_t": w(ks[15], D, (D, H)),
        "b1": jnp.zeros((1, H), f32),
        "w2_t": w(ks[16], H, (H, D)),
        "b2": jnp.zeros((1, D), f32),
    }
    # slots_mu / slots_sigma parameters (1, 1, D) as in __init__
    mu = jax.random.normal(ks[17], (1, 1, D), f32)
    sigma = jnp.abs(jax.random.normal(ks[18], (1, 1, D), f32))
    return p, mu, sigma, ks[19]


if __name__ == "__main__":
    B, N = 2, 16
    num_slots, slot_dim, input_dim, hidden_dim = 4, 64, 64, 128
    iters, eps = 3, 1e-8

    key = jax.random.PRNGKey(0)
    k_param, k_in, k_noise = jax.random.split(key, 3)

    params, mu, sigma, _ = init_params(k_param, input_dim, slot_dim, hidden_dim)
    inputs = jax.random.normal(k_in, (B, N, input_dim), jnp.float32)

    # slots = torch.normal(mu.expand(B,S,-1), sigma.expand(B,S,-1))  (glue, random)
    # TODO(synk): random slot init stays in plain JAX (no in-kernel PRNG needed).
    noise = jax.random.normal(k_noise, (B, num_slots, slot_dim), jnp.float32)
    slots_init = mu + sigma * noise

    out = run_slot_attention(inputs, slots_init, params, iters=iters, eps=eps)
    out = jax.block_until_ready(out)

    ref = slot_attention_ref(inputs, slots_init, params, iters=iters, eps=eps)
    ref = jax.block_until_ready(ref)

    assert out.shape == (B, num_slots, slot_dim)
    assert bool(jnp.all(jnp.isfinite(out)))
    assert bool(jnp.allclose(out, ref, atol=5e-2, rtol=5e-2))
    print("KERNEL_OK")
</pallas_src>

<mosaic_0001>
module attributes {stable_mosaic.version = 11 : i64} {
  func.func @slot_attention_kernel(%arg0: i32, %arg1: memref<2x16x64xf32, #tpu.memory_space<vmem>>, %arg2: memref<2x4x64xf32, #tpu.memory_space<vmem>>, %arg3: memref<2x64xf32, #tpu.memory_space<vmem>>, %arg4: memref<64x128xf32, #tpu.memory_space<vmem>>, %arg5: memref<64x64xf32, #tpu.memory_space<vmem>>, %arg6: memref<5x64xf32, #tpu.memory_space<vmem>>, %arg7: memref<64x192xf32, #tpu.memory_space<vmem>>, %arg8: memref<64x192xf32, #tpu.memory_space<vmem>>, %arg9: memref<2x192xf32, #tpu.memory_space<vmem>>, %arg10: memref<64x128xf32, #tpu.memory_space<vmem>>, %arg11: memref<1x128xf32, #tpu.memory_space<vmem>>, %arg12: memref<128x64xf32, #tpu.memory_space<vmem>>, %arg13: memref<8x64xf32, #tpu.memory_space<vmem>>) attributes {dimension_semantics = [#tpu.dimension_semantics<parallel>], iteration_bounds = array<i64: 1>, scalar_prefetch = 0 : i64, scratch_operands = 0 : i64, tpu.core_type = #tpu.core_type<tc>, window_params = [{transform_indices = @transform_0, window_bounds = array<i64: 2, 16, 64>}, {transform_indices = @transform_1, window_bounds = array<i64: 2, 4, 64>}, {pipeline_mode = #tpu.pipeline_mode<synchronous>, transform_indices = @transform_2, window_bounds = array<i64: 2, 64>}, {pipeline_mode = #tpu.pipeline_mode<synchronous>, transform_indices = @transform_3, window_bounds = array<i64: 64, 128>}, {pipeline_mode = #tpu.pipeline_mode<synchronous>, transform_indices = @transform_4, window_bounds = array<i64: 64, 64>}, {pipeline_mode = #tpu.pipeline_mode<synchronous>, transform_indices = @transform_5, window_bounds = array<i64: 5, 64>}, {pipeline_mode = #tpu.pipeline_mode<synchronous>, transform_indices = @transform_6, window_bounds = array<i64: 64, 192>}, {pipeline_mode = #tpu.pipeline_mode<synchronous>, transform_indices = @transform_7, window_bounds = array<i64: 64, 192>}, {pipeline_mode = #tpu.pipeline_mode<synchronous>, transform_indices = @transform_8, window_bounds = array<i64: 2, 192>}, {pipeline_mode = #tpu.pipeline_mode<synchronous>, transform_indices = @transform_9, window_bounds = array<i64: 64, 128>}, {pipeline_mode = #tpu.pipeline_mode<synchronous>, transform_indices = @transform_10, window_bounds = array<i64: 1, 128>}, {pipeline_mode = #tpu.pipeline_mode<synchronous>, transform_indices = @transform_11, window_bounds = array<i64: 128, 64>}, {transform_indices = @transform_12, window_bounds = array<i64: 8, 64>}]} {
    %c0 = arith.constant 0 : index
    %c0_0 = arith.constant 0 : index
    %c0_1 = arith.constant 0 : index
    %0 = vector.load %arg1[%c0, %c0_0, %c0_1] : memref<2x16x64xf32, #tpu.memory_space<vmem>>, vector<1x16x64xf32>
    %1 = vector.shape_cast %0 : vector<1x16x64xf32> to vector<16x64xf32>
    %c1 = arith.constant 1 : index
    %c0_2 = arith.constant 0 : index
    %c0_3 = arith.constant 0 : index
    %2 = vector.load %arg1[%c1, %c0_2, %c0_3] : memref<2x16x64xf32, #tpu.memory_space<vmem>>, vector<1x16x64xf32>
    %3 = vector.shape_cast %2 : vector<1x16x64xf32> to vector<16x64xf32>
    %4 = tpu.concatenate %1, %3 in 0 : vector<16x64xf32>, vector<16x64xf32> -> vector<32x64xf32>
    %c0_4 = arith.constant 0 : index
    %c0_5 = arith.constant 0 : index
    %c0_6 = arith.constant 0 : index
    %5 = vector.load %arg2[%c0_4, %c0_5, %c0_6] : memref<2x4x64xf32, #tpu.memory_space<vmem>>, vector<1x4x64xf32>
    %6 = vector.shape_cast %5 : vector<1x4x64xf32> to vector<4x64xf32>
    %c1_7 = arith.constant 1 : index
    %c0_8 = arith.constant 0 : index
    %c0_9 = arith.constant 0 : index
    %7 = vector.load %arg2[%c1_7, %c0_8, %c0_9] : memref<2x4x64xf32, #tpu.memory_space<vmem>>, vector<1x4x64xf32>
    %8 = vector.shape_cast %7 : vector<1x4x64xf32> to vector<4x64xf32>
    %9 = tpu.concatenate %6, %8 in 0 : vector<4x64xf32>, vector<4x64xf32> -> vector<8x64xf32>
    %c0_10 = arith.constant 0 : index
    %c0_11 = arith.constant 0 : index
    %10 = vector.load %arg3[%c0_10, %c0_11] : memref<2x64xf32, #tpu.memory_space<vmem>>, vector<2x64xf32>
    %11 = vector.extract_strided_slice %10 {offsets = [0, 0], sizes = [1, 64], strides = [1, 1]} : vector<2x64xf32> to vector<1x64xf32>
    %12 = vector.extract_strided_slice %10 {offsets = [1, 0], sizes = [1, 64], strides = [1, 1]} : vector<2x64xf32> to vector<1x64xf32>
    %cst = arith.constant dense<0.000000e+00> : vector<32xf32>
    %13 = vector.multi_reduction <add>, %4, %cst [1] : vector<32x64xf32> to vector<32xf32>
    %14 = vector.shape_cast %13 : vector<32xf32> to vector<32x1xf32>
    %cst_12 = arith.constant 6.400000e+01 : f32
    %15 = vector.broadcast %cst_12 : f32 to vector<32x1xf32>
    %16 = arith.divf %14, %15 : vector<32x1xf32>
    %17 = vector.broadcast %16 : vector<32x1xf32> to vector<32x64xf32>
    %18 = arith.subf %4, %17 : vector<32x64xf32>
    %19 = arith.mulf %18, %18 : vector<32x64xf32>
    %cst_13 = arith.constant dense<0.000000e+00> : vector<32xf32>
    %20 = vector.multi_reduction <add>, %19, %cst_13 [1] : vector<32x64xf32> to vector<32xf32>
    %21 = vector.shape_cast %20 : vector<32xf32> to vector<32x1xf32>
    %cst_14 = arith.constant 6.400000e+01 : f32
    %22 = vector.broadcast %cst_14 : f32 to vector<32x1xf32>
    %23 = arith.divf %21, %22 : vector<32x1xf32>
    %24 = vector.broadcast %16 : vector<32x1xf32> to vector<32x64xf32>
    %25 = arith.subf %4, %24 : vector<32x64xf32>
    %cst_15 = arith.constant 9.99999974E-6 : f32
    %26 = vector.broadcast %cst_15 : f32 to vector<32x1xf32>
    %27 = arith.addf %23, %26 : vector<32x1xf32>
    %28 = math.rsqrt %27 : vector<32x1xf32>
    %29 = vector.broadcast %28 : vector<32x1xf32> to vector<32x64xf32>
    %30 = arith.mulf %25, %29 : vector<32x64xf32>
    %31 = vector.broadcast %11 : vector<1x64xf32> to vector<32x64xf32>
    %32 = arith.mulf %30, %31 : vector<32x64xf32>
    %33 = vector.broadcast %12 : vector<1x64xf32> to vector<32x64xf32>
    %34 = arith.addf %32, %33 : vector<32x64xf32>
    %c0_16 = arith.constant 0 : index
    %c0_17 = arith.constant 0 : index
    %35 = vector.load %arg4[%c0_16, %c0_17] : memref<64x128xf32, #tpu.memory_space<vmem>>, vector<64x128xf32>
    %cst_18 = arith.constant dense<0.000000e+00> : vector<32x128xf32>
    %36 = tpu.matmul %34, %35, %cst_18 {dimension_numbers = #tpu.dot_dimension_numbers<[1], [0], [0], [1], [0, 0, 1, 1], [], []>} : vector<32x64xf32>, vector<64x128xf32>, vector<32x128xf32> -> vector<32x128xf32>
    %37 = vector.extract_strided_slice %36 {offsets = [0, 0], sizes = [32, 64], strides = [1, 1]} : vector<32x128xf32> to vector<32x64xf32>
    %38 = vector.extract_strided_slice %36 {offsets = [0, 64], sizes = [32, 64], strides = [1, 1]} : vector<32x128xf32> to vector<32x64xf32>
    %39 = vector.extract_strided_slice %37 {offsets = [0, 0], sizes = [16, 64], strides = [1, 1]} : vector<32x64xf32> to vector<16x64xf32>
    %40 = tpu.transpose %39, [1, 0] : vector<16x64xf32> -> vector<64x16xf32>
    %41 = vector.extract_strided_slice %37 {offsets = [16, 0], sizes = [16, 64], strides = [1, 1]} : vector<32x64xf32> to vector<16x64xf32>
    %42 = tpu.transpose %41, [1, 0] : vector<16x64xf32> -> vector<64x16xf32>
    %43 = vector.extract_strided_slice %38 {offsets = [0, 0], sizes = [16, 64], strides = [1, 1]} : vector<32x64xf32> to vector<16x64xf32>
    %44 = vector.extract_strided_slice %38 {offsets = [16, 0], sizes = [16, 64], strides = [1, 1]} : vector<32x64xf32> to vector<16x64xf32>
    %c0_19 = arith.constant 0 : index
    %c0_20 = arith.constant 0 : index
    %45 = vector.load %arg6[%c0_19, %c0_20] : memref<5x64xf32, #tpu.memory_space<vmem>>, vector<5x64xf32>
    %46 = vector.extract_strided_slice %45 {offsets = [0, 0], sizes = [1, 64], strides = [1, 1]} : vector<5x64xf32> to vector<1x64xf32>
    %47 = vector.shape_cast %46 : vector<1x64xf32> to vector<1x64xf32>
    %48 = vector.broadcast %47 : vector<1x64xf32> to vector<8x64xf32>
    %49 = vector.extract_strided_slice %45 {offsets = [1, 0], sizes = [1, 64], strides = [1, 1]} : vector<5x64xf32> to vector<1x64xf32>
    %50 = vector.shape_cast %49 : vector<1x64xf32> to vector<1x64xf32>
    %51 = vector.broadcast %50 : vector<1x64xf32> to vector<8x64xf32>
    %52 = vector.extract_strided_slice %45 {offsets = [2, 0], sizes = [1, 64], strides = [1, 1]} : vector<5x64xf32> to vector<1x64xf32>
    %53 = vector.shape_cast %52 : vector<1x64xf32> to vector<1x64xf32>
    %54 = vector.broadcast %53 : vector<1x64xf32> to vector<8x64xf32>
    %55 = vector.extract_strided_slice %45 {offsets = [3, 0], sizes = [1, 64], strides = [1, 1]} : vector<5x64xf32> to vector<1x64xf32>
    %56 = vector.shape_cast %55 : vector<1x64xf32> to vector<1x64xf32>
    %57 = vector.broadcast %56 : vector<1x64xf32> to vector<8x64xf32>
    %58 = vector.extract_strided_slice %45 {offsets = [4, 0], sizes = [1, 64], strides = [1, 1]} : vector<5x64xf32> to vector<1x64xf32>
    %59 = vector.shape_cast %58 : vector<1x64xf32> to vector<1x64xf32>
    %60 = vector.broadcast %59 : vector<1x64xf32> to vector<8x64xf32>
    %c0_21 = arith.constant 0 : index
    %c0_22 = arith.constant 0 : index
    %61 = vector.load %arg9[%c0_21, %c0_22] : memref<2x192xf32, #tpu.memory_space<vmem>>, vector<2x192xf32>
    %62 = vector.extract_strided_slice %61 {offsets = [0, 0], sizes = [1, 192], strides = [1, 1]} : vector<2x192xf32> to vector<1x192xf32>
    %63 = vector.shape_cast %62 : vector<1x192xf32> to vector<1x192xf32>
    %64 = vector.broadcast %63 : vector<1x192xf32> to vector<8x192xf32>
    %65 = vector.extract_strided_slice %61 {offsets = [1, 0], sizes = [1, 192], strides = [1, 1]} : vector<2x192xf32> to vector<1x192xf32>
    %66 = vector.shape_cast %65 : vector<1x192xf32> to vector<1x192xf32>
    %67 = vector.broadcast %66 : vector<1x192xf32> to vector<8x192xf32>
    %c0_23 = arith.constant 0 : index
    %c0_24 = arith.constant 0 : index
    %68 = vector.load %arg11[%c0_23, %c0_24] : memref<1x128xf32, #tpu.memory_space<vmem>>, vector<1x128xf32>
    %69 = vector.shape_cast %68 : vector<1x128xf32> to vector<1x128xf32>
    %70 = vector.broadcast %69 : vector<1x128xf32> to vector<8x128xf32>
    %c0_25 = arith.constant 0 : index
    %c0_26 = arith.constant 0 : index
    %71 = vector.load %arg5[%c0_25, %c0_26] : memref<64x64xf32, #tpu.memory_space<vmem>>, vector<64x64xf32>
    %c0_27 = arith.constant 0 : index
    %c0_28 = arith.constant 0 : index
    %72 = vector.load %arg7[%c0_27, %c0_28] : memref<64x192xf32, #tpu.memory_space<vmem>>, vector<64x192xf32>
    %c0_29 = arith.constant 0 : index
    %c0_30 = arith.constant 0 : index
    %73 = vector.load %arg8[%c0_29, %c0_30] : memref<64x192xf32, #tpu.memory_space<vmem>>, vector<64x192xf32>
    %c0_31 = arith.constant 0 : index
    %c0_32 = arith.constant 0 : index
    %74 = vector.load %arg10[%c0_31, %c0_32] : memref<64x128xf32, #tpu.memory_space<vmem>>, vector<64x128xf32>
    %c0_33 = arith.constant 0 : index
    %c0_34 = arith.constant 0 : index
    %75 = vector.load %arg12[%c0_33, %c0_34] : memref<128x64xf32, #tpu.memory_space<vmem>>, vector<128x64xf32>
    %cst_35 = arith.constant dense<0.000000e+00> : vector<8xf32>
    %76 = vector.multi_reduction <add>, %9, %cst_35 [1] : vector<8x64xf32> to vector<8xf32>
    %77 = vector.shape_cast %76 : vector<8xf32> to vector<8x1xf32>
    %cst_36 = arith.constant 6.400000e+01 : f32
    %78 = vector.broadcast %cst_36 : f32 to vector<8x1xf32>
    %79 = arith.divf %77, %78 : vector<8x1xf32>
    %80 = vector.broadcast %79 : vector<8x1xf32> to vector<8x64xf32>
    %81 = arith.subf %9, %80 : vector<8x64xf32>
    %82 = arith.mulf %81, %81 : vector<8x64xf32>
    %cst_37 = arith.constant dense<0.000000e+00> : vector<8xf32>
    %83 = vector.multi_reduction <add>, %82, %cst_37 [1] : vector<8x64xf32> to vector<8xf32>
    %84 = vector.shape_cast %83 : vector<8xf32> to vector<8x1xf32>
    %cst_38 = arith.constant 6.400000e+01 : f32
    %85 = vector.broadcast %cst_38 : f32 to vector<8x1xf32>
    %86 = arith.divf %84, %85 : vector<8x1xf32>
    %87 = vector.broadcast %79 : vector<8x1xf32> to vector<8x64xf32>
    %88 = arith.subf %9, %87 : vector<8x64xf32>
    %cst_39 = arith.constant 9.99999974E-6 : f32
    %89 = vector.broadcast %cst_39 : f32 to vector<8x1xf32>
    %90 = arith.addf %86, %89 : vector<8x1xf32>
    %91 = math.rsqrt %90 : vector<8x1xf32>
    %92 = vector.broadcast %91 : vector<8x1xf32> to vector<8x64xf32>
    %93 = arith.mulf %88, %92 : vector<8x64xf32>
    %94 = arith.mulf %93, %48 : vector<8x64xf32>
    %95 = arith.addf %94, %51 : vector<8x64xf32>
    %cst_40 = arith.constant dense<0.000000e+00> : vector<8x64xf32>
    %96 = tpu.matmul %95, %71, %cst_40 {dimension_numbers = #tpu.dot_dimension_numbers<[1], [0], [0], [1], [0, 0, 1, 1], [], []>} : vector<8x64xf32>, vector<64x64xf32>, vector<8x64xf32> -> vector<8x64xf32>
    %97 = vector.extract_strided_slice %96 {offsets = [0, 0], sizes = [4, 64], strides = [1, 1]} : vector<8x64xf32> to vector<4x64xf32>
    %cst_41 = arith.constant dense<0.000000e+00> : vector<4x16xf32>
    %98 = tpu.matmul %97, %40, %cst_41 {dimension_numbers = #tpu.dot_dimension_numbers<[1], [0], [0], [1], [0, 0, 1, 1], [], []>} : vector<4x64xf32>, vector<64x16xf32>, vector<4x16xf32> -> vector<4x16xf32>
    %cst_42 = arith.constant dense<0xFF800000> : vector<16xf32>
    %99 = vector.multi_reduction <maximumf>, %98, %cst_42 [0] : vector<4x16xf32> to vector<16xf32>
    %100 = vector.shape_cast %99 : vector<16xf32> to vector<1x16xf32>
    %101 = vector.broadcast %100 : vector<1x16xf32> to vector<4x16xf32>
    %102 = arith.subf %98, %101 : vector<4x16xf32>
    %103 = math.exp %102 : vector<4x16xf32>
    %cst_43 = arith.constant dense<0.000000e+00> : vector<16xf32>
    %104 = vector.multi_reduction <add>, %103, %cst_43 [0] : vector<4x16xf32> to vector<16xf32>
    %105 = vector.shape_cast %104 : vector<16xf32> to vector<1x16xf32>
    %106 = tpu.reciprocal %105 {approx = true} : vector<1x16xf32> -> vector<1x16xf32>
    %107 = vector.broadcast %106 : vector<1x16xf32> to vector<4x16xf32>
    %108 = arith.mulf %103, %107 : vector<4x16xf32>
    %cst_44 = arith.constant 9.99999993E-9 : f32
    %109 = vector.broadcast %cst_44 : f32 to vector<4x16xf32>
    %110 = arith.addf %108, %109 : vector<4x16xf32>
    %cst_45 = arith.constant dense<0.000000e+00> : vector<4xf32>
    %111 = vector.multi_reduction <add>, %110, %cst_45 [1] : vector<4x16xf32> to vector<4xf32>
    %112 = vector.shape_cast %111 : vector<4xf32> to vector<4x1xf32>
    %113 = tpu.reciprocal %112 {approx = true} : vector<4x1xf32> -> vector<4x1xf32>
    %114 = vector.broadcast %113 : vector<4x1xf32> to vector<4x16xf32>
    %115 = arith.mulf %110, %114 : vector<4x16xf32>
    %cst_46 = arith.constant dense<0.000000e+00> : vector<4x64xf32>
    %116 = tpu.matmul %115, %43, %cst_46 {dimension_numbers = #tpu.dot_dimension_numbers<[1], [0], [0], [1], [0, 0, 1, 1], [], []>} : vector<4x16xf32>, vector<16x64xf32>, vector<4x64xf32> -> vector<4x64xf32>
    %117 = vector.extract_strided_slice %96 {offsets = [4, 0], sizes = [4, 64], strides = [1, 1]} : vector<8x64xf32> to vector<4x64xf32>
    %cst_47 = arith.constant dense<0.000000e+00> : vector<4x16xf32>
    %118 = tpu.matmul %117, %42, %cst_47 {dimension_numbers = #tpu.dot_dimension_numbers<[1], [0], [0], [1], [0, 0, 1, 1], [], []>} : vector<4x64xf32>, vector<64x16xf32>, vector<4x16xf32> -> vector<4x16xf32>
    %cst_48 = arith.constant dense<0xFF800000> : vector<16xf32>
    %119 = vector.multi_reduction <maximumf>, %118, %cst_48 [0] : vector<4x16xf32> to vector<16xf32>
    %120 = vector.shape_cast %119 : vector<16xf32> to vector<1x16xf32>
    %121 = vector.broadcast %120 : vector<1x16xf32> to vector<4x16xf32>
    %122 = arith.subf %118, %121 : vector<4x16xf32>
    %123 = math.exp %122 : vector<4x16xf32>
    %cst_49 = arith.constant dense<0.000000e+00> : vector<16xf32>
    %124 = vector.multi_reduction <add>, %123, %cst_49 [0] : vector<4x16xf32> to vector<16xf32>
    %125 = vector.shape_cast %124 : vector<16xf32> to vector<1x16xf32>
    %126 = tpu.reciprocal %125 {approx = true} : vector<1x16xf32> -> vector<1x16xf32>
    %127 = vector.broadcast %126 : vector<1x16xf32> to vector<4x16xf32>
    %128 = arith.mulf %123, %127 : vector<4x16xf32>
    %cst_50 = arith.constant 9.99999993E-9 : f32
    %129 = vector.broadcast %cst_50 : f32 to vector<4x16xf32>
    %130 = arith.addf %128, %129 : vector<4x16xf32>
    %cst_51 = arith.constant dense<0.000000e+00> : vector<4xf32>
    %131 = vector.multi_reduction <add>, %130, %cst_51 [1] : vector<4x16xf32> to vector<4xf32>
    %132 = vector.shape_cast %131 : vector<4xf32> to vector<4x1xf32>
    %133 = tpu.reciprocal %132 {approx = true} : vector<4x1xf32> -> vector<4x1xf32>
    %134 = vector.broadcast %133 : vector<4x1xf32> to vector<4x16xf32>
    %135 = arith.mulf %130, %134 : vector<4x16xf32>
    %cst_52 = arith.constant dense<0.000000e+00> : vector<4x64xf32>
    %136 = tpu.matmul %135, %44, %cst_52 {dimension_numbers = #tpu.dot_dimension_numbers<[1], [0], [0], [1], [0, 0, 1, 1], [], []>} : vector<4x16xf32>, vector<16x64xf32>, vector<4x64xf32> -> vector<4x64xf32>
    %137 = tpu.concatenate %116, %136 in 0 : vector<4x64xf32>, vector<4x64xf32> -> vector<8x64xf32>
    %cst_53 = arith.constant dense<0.000000e+00> : vector<8x192xf32>
    %138 = tpu.matmul %137, %72, %cst_53 {dimension_numbers = #tpu.dot_dimension_numbers<[1], [0], [0], [1], [0, 0, 1, 1], [], []>} : vector<8x64xf32>, vector<64x192xf32>, vector<8x192xf32> -> vector<8x192xf32>
    %139 = arith.addf %138, %64 : vector<8x192xf32>
    %cst_54 = arith.constant dense<0.000000e+00> : vector<8x192xf32>
    %140 = tpu.matmul %9, %73, %cst_54 {dimension_numbers = #tpu.dot_dimension_numbers<[1], [0], [0], [1], [0, 0, 1, 1], [], []>} : vector<8x64xf32>, vector<64x192xf32>, vector<8x192xf32> -> vector<8x192xf32>
    %141 = arith.addf %140, %67 : vector<8x192xf32>
    %142 = vector.extract_strided_slice %139 {offsets = [0, 0], sizes = [8, 64], strides = [1, 1]} : vector<8x192xf32> to vector<8x64xf32>
    %143 = vector.extract_strided_slice %141 {offsets = [0, 0], sizes = [8, 64], strides = [1, 1]} : vector<8x192xf32> to vector<8x64xf32>
    %144 = arith.addf %142, %143 : vector<8x64xf32>
    %145 = arith.negf %144 : vector<8x64xf32>
    %146 = math.exp %145 : vector<8x64xf32>
    %cst_55 = arith.constant 1.000000e+00 : f32
    %147 = vector.broadcast %cst_55 : f32 to vector<8x64xf32>
    %148 = arith.addf %147, %146 : vector<8x64xf32>
    %149 = arith.divf %147, %148 : vector<8x64xf32>
    %150 = vector.extract_strided_slice %139 {offsets = [0, 64], sizes = [8, 64], strides = [1, 1]} : vector<8x192xf32> to vector<8x64xf32>
    %151 = vector.extract_strided_slice %141 {offsets = [0, 64], sizes = [8, 64], strides = [1, 1]} : vector<8x192xf32> to vector<8x64xf32>
    %152 = arith.addf %150, %151 : vector<8x64xf32>
    %153 = arith.negf %152 : vector<8x64xf32>
    %154 = math.exp %153 : vector<8x64xf32>
    %cst_56 = arith.constant 1.000000e+00 : f32
    %155 = vector.broadcast %cst_56 : f32 to vector<8x64xf32>
    %156 = arith.addf %155, %154 : vector<8x64xf32>
    %157 = arith.divf %155, %156 : vector<8x64xf32>
    %158 = vector.extract_strided_slice %139 {offsets = [0, 128], sizes = [8, 64], strides = [1, 1]} : vector<8x192xf32> to vector<8x64xf32>
    %159 = vector.extract_strided_slice %141 {offsets = [0, 128], sizes = [8, 64], strides = [1, 1]} : vector<8x192xf32> to vector<8x64xf32>
    %160 = arith.mulf %149, %159 : vector<8x64xf32>
    %161 = arith.addf %158, %160 : vector<8x64xf32>
    %162 = math.tanh %161 : vector<8x64xf32>
    %cst_57 = arith.constant 1.000000e+00 : f32
    %163 = vector.broadcast %cst_57 : f32 to vector<8x64xf32>
    %164 = arith.subf %163, %157 : vector<8x64xf32>
    %165 = arith.mulf %164, %162 : vector<8x64xf32>
    %166 = arith.mulf %157, %9 : vector<8x64xf32>
    %167 = arith.addf %165, %166 : vector<8x64xf32>
    %cst_58 = arith.constant dense<0.000000e+00> : vector<8xf32>
    %168 = vector.multi_reduction <add>, %167, %cst_58 [1] : vector<8x64xf32> to vector<8xf32>
    %169 = vector.shape_cast %168 : vector<8xf32> to vector<8x1xf32>
    %cst_59 = arith.constant 6.400000e+01 : f32
    %170 = vector.broadcast %cst_59 : f32 to vector<8x1xf32>
    %171 = arith.divf %169, %170 : vector<8x1xf32>
    %172 = vector.broadcast %171 : vector<8x1xf32> to vector<8x64xf32>
    %173 = arith.subf %167, %172 : vector<8x64xf32>
    %174 = arith.mulf %173, %173 : vector<8x64xf32>
    %cst_60 = arith.constant dense<0.000000e+00> : vector<8xf32>
    %175 = vector.multi_reduction <add>, %174, %cst_60 [1] : vector<8x64xf32> to vector<8xf32>
    %176 = vector.shape_cast %175 : vector<8xf32> to vector<8x1xf32>
    %cst_61 = arith.constant 6.400000e+01 : f32
    %177 = vector.broadcast %cst_61 : f32 to vector<8x1xf32>
    %178 = arith.divf %176, %177 : vector<8x1xf32>
    %179 = vector.broadcast %171 : vector<8x1xf32> to vector<8x64xf32>
    %180 = arith.subf %167, %179 : vector<8x64xf32>
    %cst_62 = arith.constant 9.99999974E-6 : f32
    %181 = vector.broadcast %cst_62 : f32 to vector<8x1xf32>
    %182 = arith.addf %178, %181 : vector<8x1xf32>
    %183 = math.rsqrt %182 : vector<8x1xf32>
    %184 = vector.broadcast %183 : vector<8x1xf32> to vector<8x64xf32>
    %185 = arith.mulf %180, %184 : vector<8x64xf32>
    %186 = arith.mulf %185, %54 : vector<8x64xf32>
    %187 = arith.addf %186, %57 : vector<8x64xf32>
    %cst_63 = arith.constant dense<0.000000e+00> : vector<8x128xf32>
    %188 = tpu.matmul %187, %74, %cst_63 {dimension_numbers = #tpu.dot_dimension_numbers<[1], [0], [0], [1], [0, 0, 1, 1], [], []>} : vector<8x64xf32>, vector<64x128xf32>, vector<8x128xf32> -> vector<8x128xf32>
    %189 = arith.addf %188, %70 : vector<8x128xf32>
    %cst_64 = arith.constant 0.000000e+00 : f32
    %190 = vector.broadcast %cst_64 : f32 to vector<8x128xf32>
    %191 = arith.maximumf %189, %190 : vector<8x128xf32>
    %cst_65 = arith.constant dense<0.000000e+00> : vector<8x64xf32>
    %192 = tpu.matmul %191, %75, %cst_65 {dimension_numbers = #tpu.dot_dimension_numbers<[1], [0], [0], [1], [0, 0, 1, 1], [], []>} : vector<8x128xf32>, vector<128x64xf32>, vector<8x64xf32> -> vector<8x64xf32>
    %193 = arith.addf %187, %192 : vector<8x64xf32>
    %194 = arith.addf %193, %60 : vector<8x64xf32>
    %cst_66 = arith.constant dense<0.000000e+00> : vector<8xf32>
    %195 = vector.multi_reduction <add>, %194, %cst_66 [1] : vector<8x64xf32> to vector<8xf32>
    %196 = vector.shape_cast %195 : vector<8xf32> to vector<8x1xf32>
    %cst_67 = arith.constant 6.400000e+01 : f32
    %197 = vector.broadcast %cst_67 : f32 to vector<8x1xf32>
    %198 = arith.divf %196, %197 : vector<8x1xf32>
    %199 = vector.broadcast %198 : vector<8x1xf32> to vector<8x64xf32>
    %200 = arith.subf %194, %199 : vector<8x64xf32>
    %201 = arith.mulf %200, %200 : vector<8x64xf32>
    %cst_68 = arith.constant dense<0.000000e+00> : vector<8xf32>
    %202 = vector.multi_reduction <add>, %201, %cst_68 [1] : vector<8x64xf32> to vector<8xf32>
    %203 = vector.shape_cast %202 : vector<8xf32> to vector<8x1xf32>
    %cst_69 = arith.constant 6.400000e+01 : f32
    %204 = vector.broadcast %cst_69 : f32 to vector<8x1xf32>
    %205 = arith.divf %203, %204 : vector<8x1xf32>
    %206 = vector.broadcast %198 : vector<8x1xf32> to vector<8x64xf32>
    %207 = arith.subf %194, %206 : vector<8x64xf32>
    %cst_70 = arith.constant 9.99999974E-6 : f32
    %208 = vector.broadcast %cst_70 : f32 to vector<8x1xf32>
    %209 = arith.addf %205, %208 : vector<8x1xf32>
    %210 = math.rsqrt %209 : vector<8x1xf32>
    %211 = vector.broadcast %210 : vector<8x1xf32> to vector<8x64xf32>
    %212 = arith.mulf %207, %211 : vector<8x64xf32>
    %213 = arith.mulf %212, %48 : vector<8x64xf32>
    %214 = arith.addf %213, %51 : vector<8x64xf32>
    %cst_71 = arith.constant dense<0.000000e+00> : vector<8x64xf32>
    %215 = tpu.matmul %214, %71, %cst_71 {dimension_numbers = #tpu.dot_dimension_numbers<[1], [0], [0], [1], [0, 0, 1, 1], [], []>} : vector<8x64xf32>, vector<64x64xf32>, vector<8x64xf32> -> vector<8x64xf32>
    %216 = vector.extract_strided_slice %215 {offsets = [0, 0], sizes = [4, 64], strides = [1, 1]} : vector<8x64xf32> to vector<4x64xf32>
    %cst_72 = arith.constant dense<0.000000e+00> : vector<4x16xf32>
    %217 = tpu.matmul %216, %40, %cst_72 {dimension_numbers = #tpu.dot_dimension_numbers<[1], [0], [0], [1], [0, 0, 1, 1], [], []>} : vector<4x64xf32>, vector<64x16xf32>, vector<4x16xf32> -> vector<4x16xf32>
    %cst_73 = arith.constant dense<0xFF800000> : vector<16xf32>
    %218 = vector.multi_reduction <maximumf>, %217, %cst_73 [0] : vector<4x16xf32> to vector<16xf32>
    %219 = vector.shape_cast %218 : vector<16xf32> to vector<1x16xf32>
    %220 = vector.broadcast %219 : vector<1x16xf32> to vector<4x16xf32>
    %221 = arith.subf %217, %220 : vector<4x16xf32>
    %222 = math.exp %221 : vector<4x16xf32>
    %cst_74 = arith.constant dense<0.000000e+00> : vector<16xf32>
    %223 = vector.multi_reduction <add>, %222, %cst_74 [0] : vector<4x16xf32> to vector<16xf32>
    %224 = vector.shape_cast %223 : vector<16xf32> to vector<1x16xf32>
    %225 = tpu.reciprocal %224 {approx = true} : vector<1x16xf32> -> vector<1x16xf32>
    %226 = vector.broadcast %225 : vector<1x16xf32> to vector<4x16xf32>
    %227 = arith.mulf %222, %226 : vector<4x16xf32>
    %cst_75 = arith.constant 9.99999993E-9 : f32
    %228 = vector.broadcast %cst_75 : f32 to vector<4x16xf32>
    %229 = arith.addf %227, %228 : vector<4x16xf32>
    %cst_76 = arith.constant dense<0.000000e+00> : vector<4xf32>
    %230 = vector.multi_reduction <add>, %229, %cst_76 [1] : vector<4x16xf32> to vector<4xf32>
    %231 = vector.shape_cast %230 : vector<4xf32> to vector<4x1xf32>
    %232 = tpu.reciprocal %231 {approx = true} : vector<4x1xf32> -> vector<4x1xf32>
    %233 = vector.broadcast %232 : vector<4x1xf32> to vector<4x16xf32>
    %234 = arith.mulf %229, %233 : vector<4x16xf32>
    %cst_77 = arith.constant dense<0.000000e+00> : vector<4x64xf32>
    %235 = tpu.matmul %234, %43, %cst_77 {dimension_numbers = #tpu.dot_dimension_numbers<[1], [0], [0], [1], [0, 0, 1, 1], [], []>} : vector<4x16xf32>, vector<16x64xf32>, vector<4x64xf32> -> vector<4x64xf32>
    %236 = vector.extract_strided_slice %215 {offsets = [4, 0], sizes = [4, 64], strides = [1, 1]} : vector<8x64xf32> to vector<4x64xf32>
    %cst_78 = arith.constant dense<0.000000e+00> : vector<4x16xf32>
    %237 = tpu.matmul %236, %42, %cst_78 {dimension_numbers = #tpu.dot_dimension_numbers<[1], [0], [0], [1], [0, 0, 1, 1], [], []>} : vector<4x64xf32>, vector<64x16xf32>, vector<4x16xf32> -> vector<4x16xf32>
    %cst_79 = arith.constant dense<0xFF800000> : vector<16xf32>
    %238 = vector.multi_reduction <maximumf>, %237, %cst_79 [0] : vector<4x16xf32> to vector<16xf32>
    %239 = vector.shape_cast %238 : vector<16xf32> to vector<1x16xf32>
    %240 = vector.broadcast %239 : vector<1x16xf32> to vector<4x16xf32>
    %241 = arith.subf %237, %240 : vector<4x16xf32>
    %242 = math.exp %241 : vector<4x16xf32>
    %cst_80 = arith.constant dense<0.000000e+00> : vector<16xf32>
    %243 = vector.multi_reduction <add>, %242, %cst_80 [0] : vector<4x16xf32> to vector<16xf32>
    %244 = vector.shape_cast %243 : vector<16xf32> to vector<1x16xf32>
    %245 = tpu.reciprocal %244 {approx = true} : vector<1x16xf32> -> vector<1x16xf32>
    %246 = vector.broadcast %245 : vector<1x16xf32> to vector<4x16xf32>
    %247 = arith.mulf %242, %246 : vector<4x16xf32>
    %cst_81 = arith.constant 9.99999993E-9 : f32
    %248 = vector.broadcast %cst_81 : f32 to vector<4x16xf32>
    %249 = arith.addf %247, %248 : vector<4x16xf32>
    %cst_82 = arith.constant dense<0.000000e+00> : vector<4xf32>
    %250 = vector.multi_reduction <add>, %249, %cst_82 [1] : vector<4x16xf32> to vector<4xf32>
    %251 = vector.shape_cast %250 : vector<4xf32> to vector<4x1xf32>
    %252 = tpu.reciprocal %251 {approx = true} : vector<4x1xf32> -> vector<4x1xf32>
    %253 = vector.broadcast %252 : vector<4x1xf32> to vector<4x16xf32>
    %254 = arith.mulf %249, %253 : vector<4x16xf32>
    %cst_83 = arith.constant dense<0.000000e+00> : vector<4x64xf32>
    %255 = tpu.matmul %254, %44, %cst_83 {dimension_numbers = #tpu.dot_dimension_numbers<[1], [0], [0], [1], [0, 0, 1, 1], [], []>} : vector<4x16xf32>, vector<16x64xf32>, vector<4x64xf32> -> vector<4x64xf32>
    %256 = tpu.concatenate %235, %255 in 0 : vector<4x64xf32>, vector<4x64xf32> -> vector<8x64xf32>
    %cst_84 = arith.constant dense<0.000000e+00> : vector<8x192xf32>
    %257 = tpu.matmul %256, %72, %cst_84 {dimension_numbers = #tpu.dot_dimension_numbers<[1], [0], [0], [1], [0, 0, 1, 1], [], []>} : vector<8x64xf32>, vector<64x192xf32>, vector<8x192xf32> -> vector<8x192xf32>
    %258 = arith.addf %257, %64 : vector<8x192xf32>
    %cst_85 = arith.constant dense<0.000000e+00> : vector<8x192xf32>
    %259 = tpu.matmul %194, %73, %cst_85 {dimension_numbers = #tpu.dot_dimension_numbers<[1], [0], [0], [1], [0, 0, 1, 1], [], []>} : vector<8x64xf32>, vector<64x192xf32>, vector<8x192xf32> -> vector<8x192xf32>
    %260 = arith.addf %259, %67 : vector<8x192xf32>
    %261 = vector.extract_strided_slice %258 {offsets = [0, 0], sizes = [8, 64], strides = [1, 1]} : vector<8x192xf32> to vector<8x64xf32>
    %262 = vector.extract_strided_slice %260 {offsets = [0, 0], sizes = [8, 64], strides = [1, 1]} : vector<8x192xf32> to vector<8x64xf32>
    %263 = arith.addf %261, %262 : vector<8x64xf32>
    %264 = arith.negf %263 : vector<8x64xf32>
    %265 = math.exp %264 : vector<8x64xf32>
    %cst_86 = arith.constant 1.000000e+00 : f32
    %266 = vector.broadcast %cst_86 : f32 to vector<8x64xf32>
    %267 = arith.addf %266, %265 : vector<8x64xf32>
    %268 = arith.divf %266, %267 : vector<8x64xf32>
    %269 = vector.extract_strided_slice %258 {offsets = [0, 64], sizes = [8, 64], strides = [1, 1]} : vector<8x192xf32> to vector<8x64xf32>
    %270 = vector.extract_strided_slice %260 {offsets = [0, 64], sizes = [8, 64], strides = [1, 1]} : vector<8x192xf32> to vector<8x64xf32>
    %271 = arith.addf %269, %270 : vector<8x64xf32>
    %272 = arith.negf %271 : vector<8x64xf32>
    %273 = math.exp %272 : vector<8x64xf32>
    %cst_87 = arith.constant 1.000000e+00 : f32
    %274 = vector.broadcast %cst_87 : f32 to vector<8x64xf32>
    %275 = arith.addf %274, %273 : vector<8x64xf32>
    %276 = arith.divf %274, %275 : vector<8x64xf32>
    %277 = vector.extract_strided_slice %258 {offsets = [0, 128], sizes = [8, 64], strides = [1, 1]} : vector<8x192xf32> to vector<8x64xf32>
    %278 = vector.extract_strided_slice %260 {offsets = [0, 128], sizes = [8, 64], strides = [1, 1]} : vector<8x192xf32> to vector<8x64xf32>
    %279 = arith.mulf %268, %278 : vector<8x64xf32>
    %280 = arith.addf %277, %279 : vector<8x64xf32>
    %281 = math.tanh %280 : vector<8x64xf32>
    %cst_88 = arith.constant 1.000000e+00 : f32
    %282 = vector.broadcast %cst_88 : f32 to vector<8x64xf32>
    %283 = arith.subf %282, %276 : vector<8x64xf32>
    %284 = arith.mulf %283, %281 : vector<8x64xf32>
    %285 = arith.mulf %276, %194 : vector<8x64xf32>
    %286 = arith.addf %284, %285 : vector<8x64xf32>
    %cst_89 = arith.constant dense<0.000000e+00> : vector<8xf32>
    %287 = vector.multi_reduction <add>, %286, %cst_89 [1] : vector<8x64xf32> to vector<8xf32>
    %288 = vector.shape_cast %287 : vector<8xf32> to vector<8x1xf32>
    %cst_90 = arith.constant 6.400000e+01 : f32
    %289 = vector.broadcast %cst_90 : f32 to vector<8x1xf32>
    %290 = arith.divf %288, %289 : vector<8x1xf32>
    %291 = vector.broadcast %290 : vector<8x1xf32> to vector<8x64xf32>
    %292 = arith.subf %286, %291 : vector<8x64xf32>
    %293 = arith.mulf %292, %292 : vector<8x64xf32>
    %cst_91 = arith.constant dense<0.000000e+00> : vector<8xf32>
    %294 = vector.multi_reduction <add>, %293, %cst_91 [1] : vector<8x64xf32> to vector<8xf32>
    %295 = vector.shape_cast %294 : vector<8xf32> to vector<8x1xf32>
    %cst_92 = arith.constant 6.400000e+01 : f32
    %296 = vector.broadcast %cst_92 : f32 to vector<8x1xf32>
    %297 = arith.divf %295, %296 : vector<8x1xf32>
    %298 = vector.broadcast %290 : vector<8x1xf32> to vector<8x64xf32>
    %299 = arith.subf %286, %298 : vector<8x64xf32>
    %cst_93 = arith.constant 9.99999974E-6 : f32
    %300 = vector.broadcast %cst_93 : f32 to vector<8x1xf32>
    %301 = arith.addf %297, %300 : vector<8x1xf32>
    %302 = math.rsqrt %301 : vector<8x1xf32>
    %303 = vector.broadcast %302 : vector<8x1xf32> to vector<8x64xf32>
    %304 = arith.mulf %299, %303 : vector<8x64xf32>
    %305 = arith.mulf %304, %54 : vector<8x64xf32>
    %306 = arith.addf %305, %57 : vector<8x64xf32>
    %cst_94 = arith.constant dense<0.000000e+00> : vector<8x128xf32>
    %307 = tpu.matmul %306, %74, %cst_94 {dimension_numbers = #tpu.dot_dimension_numbers<[1], [0], [0], [1], [0, 0, 1, 1], [], []>} : vector<8x64xf32>, vector<64x128xf32>, vector<8x128xf32> -> vector<8x128xf32>
    %308 = arith.addf %307, %70 : vector<8x128xf32>
    %cst_95 = arith.constant 0.000000e+00 : f32
    %309 = vector.broadcast %cst_95 : f32 to vector<8x128xf32>
    %310 = arith.maximumf %308, %309 : vector<8x128xf32>
    %cst_96 = arith.constant dense<0.000000e+00> : vector<8x64xf32>
    %311 = tpu.matmul %310, %75, %cst_96 {dimension_numbers = #tpu.dot_dimension_numbers<[1], [0], [0], [1], [0, 0, 1, 1], [], []>} : vector<8x128xf32>, vector<128x64xf32>, vector<8x64xf32> -> vector<8x64xf32>
    %312 = arith.addf %306, %311 : vector<8x64xf32>
    %313 = arith.addf %312, %60 : vector<8x64xf32>
    %cst_97 = arith.constant dense<0.000000e+00> : vector<8xf32>
    %314 = vector.multi_reduction <add>, %313, %cst_97 [1] : vector<8x64xf32> to vector<8xf32>
    %315 = vector.shape_cast %314 : vector<8xf32> to vector<8x1xf32>
    %cst_98 = arith.constant 6.400000e+01 : f32
    %316 = vector.broadcast %cst_98 : f32 to vector<8x1xf32>
    %317 = arith.divf %315, %316 : vector<8x1xf32>
    %318 = vector.broadcast %317 : vector<8x1xf32> to vector<8x64xf32>
    %319 = arith.subf %313, %318 : vector<8x64xf32>
    %320 = arith.mulf %319, %319 : vector<8x64xf32>
    %cst_99 = arith.constant dense<0.000000e+00> : vector<8xf32>
    %321 = vector.multi_reduction <add>, %320, %cst_99 [1] : vector<8x64xf32> to vector<8xf32>
    %322 = vector.shape_cast %321 : vector<8xf32> to vector<8x1xf32>
    %cst_100 = arith.constant 6.400000e+01 : f32
    %323 = vector.broadcast %cst_100 : f32 to vector<8x1xf32>
    %324 = arith.divf %322, %323 : vector<8x1xf32>
    %325 = vector.broadcast %317 : vector<8x1xf32> to vector<8x64xf32>
    %326 = arith.subf %313, %325 : vector<8x64xf32>
    %cst_101 = arith.constant 9.99999974E-6 : f32
    %327 = vector.broadcast %cst_101 : f32 to vector<8x1xf32>
    %328 = arith.addf %324, %327 : vector<8x1xf32>
    %329 = math.rsqrt %328 : vector<8x1xf32>
    %330 = vector.broadcast %329 : vector<8x1xf32> to vector<8x64xf32>
    %331 = arith.mulf %326, %330 : vector<8x64xf32>
    %332 = arith.mulf %331, %48 : vector<8x64xf32>
    %333 = arith.addf %332, %51 : vector<8x64xf32>
    %cst_102 = arith.constant dense<0.000000e+00> : vector<8x64xf32>
    %334 = tpu.matmul %333, %71, %cst_102 {dimension_numbers = #tpu.dot_dimension_numbers<[1], [0], [0], [1], [0, 0, 1, 1], [], []>} : vector<8x64xf32>, vector<64x64xf32>, vector<8x64xf32> -> vector<8x64xf32>
    %335 = vector.extract_strided_slice %334 {offsets = [0, 0], sizes = [4, 64], strides = [1, 1]} : vector<8x64xf32> to vector<4x64xf32>
    %cst_103 = arith.constant dense<0.000000e+00> : vector<4x16xf32>
    %336 = tpu.matmul %335, %40, %cst_103 {dimension_numbers = #tpu.dot_dimension_numbers<[1], [0], [0], [1], [0, 0, 1, 1], [], []>} : vector<4x64xf32>, vector<64x16xf32>, vector<4x16xf32> -> vector<4x16xf32>
    %cst_104 = arith.constant dense<0xFF800000> : vector<16xf32>
    %337 = vector.multi_reduction <maximumf>, %336, %cst_104 [0] : vector<4x16xf32> to vector<16xf32>
    %338 = vector.shape_cast %337 : vector<16xf32> to vector<1x16xf32>
    %339 = vector.broadcast %338 : vector<1x16xf32> to vector<4x16xf32>
    %340 = arith.subf %336, %339 : vector<4x16xf32>
    %341 = math.exp %340 : vector<4x16xf32>
    %cst_105 = arith.constant dense<0.000000e+00> : vector<16xf32>
    %342 = vector.multi_reduction <add>, %341, %cst_105 [0] : vector<4x16xf32> to vector<16xf32>
    %343 = vector.shape_cast %342 : vector<16xf32> to vector<1x16xf32>
    %344 = tpu.reciprocal %343 {approx = true} : vector<1x16xf32> -> vector<1x16xf32>
    %345 = vector.broadcast %344 : vector<1x16xf32> to vector<4x16xf32>
    %346 = arith.mulf %341, %345 : vector<4x16xf32>
    %cst_106 = arith.constant 9.99999993E-9 : f32
    %347 = vector.broadcast %cst_106 : f32 to vector<4x16xf32>
    %348 = arith.addf %346, %347 : vector<4x16xf32>
    %cst_107 = arith.constant dense<0.000000e+00> : vector<4xf32>
    %349 = vector.multi_reduction <add>, %348, %cst_107 [1] : vector<4x16xf32> to vector<4xf32>
    %350 = vector.shape_cast %349 : vector<4xf32> to vector<4x1xf32>
    %351 = tpu.reciprocal %350 {approx = true} : vector<4x1xf32> -> vector<4x1xf32>
    %352 = vector.broadcast %351 : vector<4x1xf32> to vector<4x16xf32>
    %353 = arith.mulf %348, %352 : vector<4x16xf32>
    %cst_108 = arith.constant dense<0.000000e+00> : vector<4x64xf32>
    %354 = tpu.matmul %353, %43, %cst_108 {dimension_numbers = #tpu.dot_dimension_numbers<[1], [0], [0], [1], [0, 0, 1, 1], [], []>} : vector<4x16xf32>, vector<16x64xf32>, vector<4x64xf32> -> vector<4x64xf32>
    %355 = vector.extract_strided_slice %334 {offsets = [4, 0], sizes = [4, 64], strides = [1, 1]} : vector<8x64xf32> to vector<4x64xf32>
    %cst_109 = arith.constant dense<0.000000e+00> : vector<4x16xf32>
    %356 = tpu.matmul %355, %42, %cst_109 {dimension_numbers = #tpu.dot_dimension_numbers<[1], [0], [0], [1], [0, 0, 1, 1], [], []>} : vector<4x64xf32>, vector<64x16xf32>, vector<4x16xf32> -> vector<4x16xf32>
    %cst_110 = arith.constant dense<0xFF800000> : vector<16xf32>
    %357 = vector.multi_reduction <maximumf>, %356, %cst_110 [0] : vector<4x16xf32> to vector<16xf32>
    %358 = vector.shape_cast %357 : vector<16xf32> to vector<1x16xf32>
    %359 = vector.broadcast %358 : vector<1x16xf32> to vector<4x16xf32>
    %360 = arith.subf %356, %359 : vector<4x16xf32>
    %361 = math.exp %360 : vector<4x16xf32>
    %cst_111 = arith.constant dense<0.000000e+00> : vector<16xf32>
    %362 = vector.multi_reduction <add>, %361, %cst_111 [0] : vector<4x16xf32> to vector<16xf32>
    %363 = vector.shape_cast %362 : vector<16xf32> to vector<1x16xf32>
    %364 = tpu.reciprocal %363 {approx = true} : vector<1x16xf32> -> vector<1x16xf32>
    %365 = vector.broadcast %364 : vector<1x16xf32> to vector<4x16xf32>
    %366 = arith.mulf %361, %365 : vector<4x16xf32>
    %cst_112 = arith.constant 9.99999993E-9 : f32
    %367 = vector.broadcast %cst_112 : f32 to vector<4x16xf32>
    %368 = arith.addf %366, %367 : vector<4x16xf32>
    %cst_113 = arith.constant dense<0.000000e+00> : vector<4xf32>
    %369 = vector.multi_reduction <add>, %368, %cst_113 [1] : vector<4x16xf32> to vector<4xf32>
    %370 = vector.shape_cast %369 : vector<4xf32> to vector<4x1xf32>
    %371 = tpu.reciprocal %370 {approx = true} : vector<4x1xf32> -> vector<4x1xf32>
    %372 = vector.broadcast %371 : vector<4x1xf32> to vector<4x16xf32>
    %373 = arith.mulf %368, %372 : vector<4x16xf32>
    %cst_114 = arith.constant dense<0.000000e+00> : vector<4x64xf32>
    %374 = tpu.matmul %373, %44, %cst_114 {dimension_numbers = #tpu.dot_dimension_numbers<[1], [0], [0], [1], [0, 0, 1, 1], [], []>} : vector<4x16xf32>, vector<16x64xf32>, vector<4x64xf32> -> vector<4x64xf32>
    %375 = tpu.concatenate %354, %374 in 0 : vector<4x64xf32>, vector<4x64xf32> -> vector<8x64xf32>
    %cst_115 = arith.constant dense<0.000000e+00> : vector<8x192xf32>
    %376 = tpu.matmul %375, %72, %cst_115 {dimension_numbers = #tpu.dot_dimension_numbers<[1], [0], [0], [1], [0, 0, 1, 1], [], []>} : vector<8x64xf32>, vector<64x192xf32>, vector<8x192xf32> -> vector<8x192xf32>
    %377 = arith.addf %376, %64 : vector<8x192xf32>
    %cst_116 = arith.constant dense<0.000000e+00> : vector<8x192xf32>
    %378 = tpu.matmul %313, %73, %cst_116 {dimension_numbers = #tpu.dot_dimension_numbers<[1], [0], [0], [1], [0, 0, 1, 1], [], []>} : vector<8x64xf32>, vector<64x192xf32>, vector<8x192xf32> -> vector<8x192xf32>
    %379 = arith.addf %378, %67 : vector<8x192xf32>
    %380 = vector.extract_strided_slice %377 {offsets = [0, 0], sizes = [8, 64], strides = [1, 1]} : vector<8x192xf32> to vector<8x64xf32>
    %381 = vector.extract_strided_slice %379 {offsets = [0, 0], sizes = [8, 64], strides = [1, 1]} : vector<8x192xf32> to vector<8x64xf32>
    %382 = arith.addf %380, %381 : vector<8x64xf32>
    %383 = arith.negf %382 : vector<8x64xf32>
    %384 = math.exp %383 : vector<8x64xf32>
    %cst_117 = arith.constant 1.000000e+00 : f32
    %385 = vector.broadcast %cst_117 : f32 to vector<8x64xf32>
    %386 = arith.addf %385, %384 : vector<8x64xf32>
    %387 = arith.divf %385, %386 : vector<8x64xf32>
    %388 = vector.extract_strided_slice %377 {offsets = [0, 64], sizes = [8, 64], strides = [1, 1]} : vector<8x192xf32> to vector<8x64xf32>
    %389 = vector.extract_strided_slice %379 {offsets = [0, 64], sizes = [8, 64], strides = [1, 1]} : vector<8x192xf32> to vector<8x64xf32>
    %390 = arith.addf %388, %389 : vector<8x64xf32>
    %391 = arith.negf %390 : vector<8x64xf32>
    %392 = math.exp %391 : vector<8x64xf32>
    %cst_118 = arith.constant 1.000000e+00 : f32
    %393 = vector.broadcast %cst_118 : f32 to vector<8x64xf32>
    %394 = arith.addf %393, %392 : vector<8x64xf32>
    %395 = arith.divf %393, %394 : vector<8x64xf32>
    %396 = vector.extract_strided_slice %377 {offsets = [0, 128], sizes = [8, 64], strides = [1, 1]} : vector<8x192xf32> to vector<8x64xf32>
    %397 = vector.extract_strided_slice %379 {offsets = [0, 128], sizes = [8, 64], strides = [1, 1]} : vector<8x192xf32> to vector<8x64xf32>
    %398 = arith.mulf %387, %397 : vector<8x64xf32>
    %399 = arith.addf %396, %398 : vector<8x64xf32>
    %400 = math.tanh %399 : vector<8x64xf32>
    %cst_119 = arith.constant 1.000000e+00 : f32
    %401 = vector.broadcast %cst_119 : f32 to vector<8x64xf32>
    %402 = arith.subf %401, %395 : vector<8x64xf32>
    %403 = arith.mulf %402, %400 : vector<8x64xf32>
    %404 = arith.mulf %395, %313 : vector<8x64xf32>
    %405 = arith.addf %403, %404 : vector<8x64xf32>
    %cst_120 = arith.constant dense<0.000000e+00> : vector<8xf32>
    %406 = vector.multi_reduction <add>, %405, %cst_120 [1] : vector<8x64xf32> to vector<8xf32>
    %407 = vector.shape_cast %406 : vector<8xf32> to vector<8x1xf32>
    %cst_121 = arith.constant 6.400000e+01 : f32
    %408 = vector.broadcast %cst_121 : f32 to vector<8x1xf32>
    %409 = arith.divf %407, %408 : vector<8x1xf32>
    %410 = vector.broadcast %409 : vector<8x1xf32> to vector<8x64xf32>
    %411 = arith.subf %405, %410 : vector<8x64xf32>
    %412 = arith.mulf %411, %411 : vector<8x64xf32>
    %cst_122 = arith.constant dense<0.000000e+00> : vector<8xf32>
    %413 = vector.multi_reduction <add>, %412, %cst_122 [1] : vector<8x64xf32> to vector<8xf32>
    %414 = vector.shape_cast %413 : vector<8xf32> to vector<8x1xf32>
    %cst_123 = arith.constant 6.400000e+01 : f32
    %415 = vector.broadcast %cst_123 : f32 to vector<8x1xf32>
    %416 = arith.divf %414, %415 : vector<8x1xf32>
    %417 = vector.broadcast %409 : vector<8x1xf32> to vector<8x64xf32>
    %418 = arith.subf %405, %417 : vector<8x64xf32>
    %cst_124 = arith.constant 9.99999974E-6 : f32
    %419 = vector.broadcast %cst_124 : f32 to vector<8x1xf32>
    %420 = arith.addf %416, %419 : vector<8x1xf32>
    %421 = math.rsqrt %420 : vector<8x1xf32>
    %422 = vector.broadcast %421 : vector<8x1xf32> to vector<8x64xf32>
    %423 = arith.mulf %418, %422 : vector<8x64xf32>
    %424 = arith.mulf %423, %54 : vector<8x64xf32>
    %425 = arith.addf %424, %57 : vector<8x64xf32>
    %cst_125 = arith.constant dense<0.000000e+00> : vector<8x128xf32>
    %426 = tpu.matmul %425, %74, %cst_125 {dimension_numbers = #tpu.dot_dimension_numbers<[1], [0], [0], [1], [0, 0, 1, 1], [], []>} : vector<8x64xf32>, vector<64x128xf32>, vector<8x128xf32> -> vector<8x128xf32>
    %427 = arith.addf %426, %70 : vector<8x128xf32>
    %cst_126 = arith.constant 0.000000e+00 : f32
    %428 = vector.broadcast %cst_126 : f32 to vector<8x128xf32>
    %429 = arith.maximumf %427, %428 : vector<8x128xf32>
    %cst_127 = arith.constant dense<0.000000e+00> : vector<8x64xf32>
    %430 = tpu.matmul %429, %75, %cst_127 {dimension_numbers = #tpu.dot_dimension_numbers<[1], [0], [0], [1], [0, 0, 1, 1], [], []>} : vector<8x128xf32>, vector<128x64xf32>, vector<8x64xf32> -> vector<8x64xf32>
    %431 = arith.addf %425, %430 : vector<8x64xf32>
    %432 = arith.addf %431, %60 : vector<8x64xf32>
    %c0_128 = arith.constant 0 : index
    %c0_129 = arith.constant 0 : index
    %433 = vector.load %arg13[%c0_128, %c0_129] : memref<8x64xf32, #tpu.memory_space<vmem>>, vector<8x64xf32>
    tpu.vector_store %arg13[%c0_128, %c0_129], %432 {strides = array<i32>} : memref<8x64xf32, #tpu.memory_space<vmem>>, vector<8x64xf32>,
    return
  }
  func.func @transform_0(%arg0: i32) -> (i32, i32, i32) {
    %c0_i32 = arith.constant 0 : i32
    %c0_i32_0 = arith.constant 0 : i32
    %c0_i32_1 = arith.constant 0 : i32
    return %arg0, %c0_i32, %c0_i32_0 : i32, i32, i32
  }
  func.func @transform_1(%arg0: i32) -> (i32, i32, i32) {
    %c0_i32 = arith.constant 0 : i32
    %c0_i32_0 = arith.constant 0 : i32
    %c0_i32_1 = arith.constant 0 : i32
    return %arg0, %c0_i32, %c0_i32_0 : i32, i32, i32
  }
  func.func @transform_2(%arg0: i32) -> (i32, i32) {
    %c0_i32 = arith.constant 0 : i32
    %c0_i32_0 = arith.constant 0 : i32
    %c0_i32_1 = arith.constant 0 : i32
    return %c0_i32, %c0_i32_0 : i32, i32
  }
  func.func @transform_3(%arg0: i32) -> (i32, i32) {
    %c0_i32 = arith.constant 0 : i32
    %c0_i32_0 = arith.constant 0 : i32
    %c0_i32_1 = arith.constant 0 : i32
    return %c0_i32, %c0_i32_0 : i32, i32
  }
  func.func @transform_4(%arg0: i32) -> (i32, i32) {
    %c0_i32 = arith.constant 0 : i32
    %c0_i32_0 = arith.constant 0 : i32
    %c0_i32_1 = arith.constant 0 : i32
    return %c0_i32, %c0_i32_0 : i32, i32
  }
  func.func @transform_5(%arg0: i32) -> (i32, i32) {
    %c0_i32 = arith.constant 0 : i32
    %c0_i32_0 = arith.constant 0 : i32
    %c0_i32_1 = arith.constant 0 : i32
    return %c0_i32, %c0_i32_0 : i32, i32
  }
  func.func @transform_6(%arg0: i32) -> (i32, i32) {
    %c0_i32 = arith.constant 0 : i32
    %c0_i32_0 = arith.constant 0 : i32
    %c0_i32_1 = arith.constant 0 : i32
    return %c0_i32, %c0_i32_0 : i32, i32
  }
  func.func @transform_7(%arg0: i32) -> (i32, i32) {
    %c0_i32 = arith.constant 0 : i32
    %c0_i32_0 = arith.constant 0 : i32
    %c0_i32_1 = arith.constant 0 : i32
    return %c0_i32, %c0_i32_0 : i32, i32
  }
  func.func @transform_8(%arg0: i32) -> (i32, i32) {
    %c0_i32 = arith.constant 0 : i32
    %c0_i32_0 = arith.constant 0 : i32
    %c0_i32_1 = arith.constant 0 : i32
    return %c0_i32, %c0_i32_0 : i32, i32
  }
  func.func @transform_9(%arg0: i32) -> (i32, i32) {
    %c0_i32 = arith.constant 0 : i32
    %c0_i32_0 = arith.constant 0 : i32
    %c0_i32_1 = arith.constant 0 : i32
    return %c0_i32, %c0_i32_0 : i32, i32
  }
  func.func @transform_10(%arg0: i32) -> (i32, i32) {
    %c0_i32 = arith.constant 0 : i32
    %c0_i32_0 = arith.constant 0 : i32
    %c0_i32_1 = arith.constant 0 : i32
    return %c0_i32, %c0_i32_0 : i32, i32
  }
  func.func @transform_11(%arg0: i32) -> (i32, i32) {
    %c0_i32 = arith.constant 0 : i32
    %c0_i32_0 = arith.constant 0 : i32
    %c0_i32_1 = arith.constant 0 : i32
    return %c0_i32, %c0_i32_0 : i32, i32
  }
  func.func @transform_12(%arg0: i32) -> (i32, i32) {
    %c0_i32 = arith.constant 0 : i32
    %c0_i32_0 = arith.constant 0 : i32
    return %arg0, %c0_i32 : i32, i32
  }
}

</mosaic_0001>

<llo_original>
// kernel: tpu_custom_call.1
$region0: #{tpu_custom_call.1}
  #allocation0 [shape = 'u32[]', space=smem, size = 0x4, offset = 0x4, fixed_abs, tag = 'smem constant byte address 0x4 - core index']
  #allocation1 [shape = 'u32[144,128]{1,0:T(1,128)}', space=vmem, size = 0x12000, scoped, tag = 'internal scratch']
  %s0 = inlined_call_operand.hbm [shape: f32[2,16,64], index: 0, kind: input, shape index: {}]
  %s1 = inlined_call_operand.vmem [shape: f32[2,4,64], index: 1, kind: input, shape index: {}]
  %s2 = inlined_call_operand.vmem [shape: f32[2,64], index: 2, kind: input, shape index: {}]
  %s3 = inlined_call_operand.vmem [shape: f32[64,128], index: 3, kind: input, shape index: {}]
  %s4 = inlined_call_operand.hbm [shape: f32[64,64], index: 4, kind: input, shape index: {}]
  %s5 = inlined_call_operand.vmem [shape: f32[5,64], index: 5, kind: input, shape index: {}]
  %s6 = inlined_call_operand.vmem [shape: f32[64,192], index: 6, kind: input, shape index: {}]
  %s7 = inlined_call_operand.hbm [shape: f32[64,192], index: 7, kind: input, shape index: {}]
  %s8 = inlined_call_operand.vmem [shape: f32[2,192], index: 8, kind: input, shape index: {}]
  %s9 = inlined_call_operand.hbm [shape: f32[64,128], index: 9, kind: input, shape index: {}]
  %s10 = inlined_call_operand.vmem [shape: f32[1,128], index: 10, kind: input, shape index: {}]
  %s11 = inlined_call_operand.vmem [shape: f32[128,64], index: 11, kind: input, shape index: {}]
  %s12 = inlined_call_operand.hbm [shape: f32[8,64], index: 12, kind: output, shape index: {}]
  %s13 = sld [smem:[#allocation0]]
  $region74: #{tpu_custom_call.1} parent=0
    _
  %s15 = ssub.s32 1, %s13
  %s16 = scalar_select 0, %s15, %s13
  $region1: #{tpu_custom_call.1} parent=0
    #allocation2 [shape = 'u8[16384]{0}', space=vmem, size = 0x4000, scoped, tag = 'input window, operand 0, single buffered']
    #allocation3 [shape = 's32[1]{0}', space=sflag, size = 0x4, scoped, tag = 'scoped memory for tpu_custom_call.1']
    #allocation4 [shape = 's32[1]{0}', space=sflag, size = 0x4, scoped, tag = 'scoped memory for tpu_custom_call.1']
    #allocation5 [shape = 'u8[32768]{0}', space=vmem, size = 0x8000, scoped, tag = 'input window, operand 4, single buffered']
    #allocation6 [shape = 's32[1]{0}', space=sflag, size = 0x4, scoped, tag = 'scoped memory for tpu_custom_call.1']
    #allocation7 [shape = 'u8[65536]{0}', space=vmem, size = 0x10000, scoped, tag = 'input window, operand 7, single buffered']
    #allocation8 [shape = 'u8[32768]{0}', space=vmem, size = 0x8000, scoped, tag = 'input window, operand 9, single buffered']
    #allocation9 [shape = 's32[1]{0}', space=sflag, size = 0x4, scoped, tag = 'scoped memory for tpu_custom_call.1']
    #allocation10 [shape = 'u8[4096]{0}', space=vmem, size = 0x1000, scoped, tag = 'output window, operand 0, single buffered']
    %17 = vsyncpa [#allocation3], 0
    %18 = vsyncpa [#allocation6], 0
    %19 = vsyncpa [#allocation9], 0
    %20 = vsyncpa [#allocation4], 0
    // Predicated region
    $region2: #{tpu_custom_call.1} parent=1 // pred_check
      _
    $region3: #{tpu_custom_call.1} parent=1 // pred_check_branch
      %22 = sbr.rel (0) target = $region5
    $region4: #{tpu_custom_call.1} parent=1 // pred_region
      %s24 = ssub.s32 512, 512
      %25 = vsyncadd [#allocation3], %s24
      %s26 = sshll.u32 [#allocation2], 4
      %s27 = int_to_ptr.vmem [resolvable:$true] %s26
      %32 = dma.hbm_to_vmem [thread:$0]  %s0, 512, %s27, [#allocation3], 128, 128, 8
    $region5: #{tpu_custom_call.1} parent=1 // pred_fallthru
      _
    // Predicated region
    $region6: #{tpu_custom_call.1} parent=1 // pred_check
      _
    $region7: #{tpu_custom_call.1} parent=1 // pred_check_branch
      %34 = sbr.rel (0) target = $region9
    $region8: #{tpu_custom_call.1} parent=1 // pred_region
      _
    $region9: #{tpu_custom_call.1} parent=1 // pred_fallthru
      _
    // Predicated region
    $region10: #{tpu_custom_call.1} parent=1 // pred_check
      _
    $region11: #{tpu_custom_call.1} parent=1 // pred_check_branch
      %36 = sbr.rel (0) target = $region13
    $region12: #{tpu_custom_call.1} parent=1 // pred_region
      _
    $region13: #{tpu_custom_call.1} parent=1 // pred_fallthru
      _
    // Predicated region
    $region14: #{tpu_custom_call.1} parent=1 // pred_check
      _
    $region15: #{tpu_custom_call.1} parent=1 // pred_check_branch
      %38 = sbr.rel (0) target = $region17
    $region16: #{tpu_custom_call.1} parent=1 // pred_region
      _
    $region17: #{tpu_custom_call.1} parent=1 // pred_fallthru
      _
    // Predicated region
    $region18: #{tpu_custom_call.1} parent=1 // pred_check
      _
    $region19: #{tpu_custom_call.1} parent=1 // pred_check_branch
      %40 = sbr.rel (0) target = $region21
    $region20: #{tpu_custom_call.1} parent=1 // pred_region
      %s42 = ssub.s32 1024, 1024
      %43 = vsyncadd [#allocation6], %s42
      %s44 = sshll.u32 [#allocation5], 4
      %s45 = int_to_ptr.vmem [resolvable:$true] %s44
      %50 = dma.hbm_to_vmem [thread:$0]  %s4, 1024, %s45, [#allocation6], 128, 128, 8
    $region21: #{tpu_custom_call.1} parent=1 // pred_fallthru
      _
    // Predicated region
    $region22: #{tpu_custom_call.1} parent=1 // pred_check
      _
    $region23: #{tpu_custom_call.1} parent=1 // pred_check_branch
      %52 = sbr.rel (0) target = $region25
    $region24: #{tpu_custom_call.1} parent=1 // pred_region
      _
    $region25: #{tpu_custom_call.1} parent=1 // pred_fallthru
      _
    // Predicated region
    $region26: #{tpu_custom_call.1} parent=1 // pred_check
      _
    $region27: #{tpu_custom_call.1} parent=1 // pred_check_branch
      %54 = sbr.rel (0) target = $region29
    $region28: #{tpu_custom_call.1} parent=1 // pred_region
      _
    $region29: #{tpu_custom_call.1} parent=1 // pred_fallthru
      _
    // Predicated region
    $region30: #{tpu_custom_call.1} parent=1 // pred_check
      _
    $region31: #{tpu_custom_call.1} parent=1 // pred_check_branch
      %56 = sbr.rel (0) target = $region33
    $region32: #{tpu_custom_call.1} parent=1 // pred_region
      %s58 = ssub.s32 2048, 2048
      %59 = vsyncadd [#allocation6], %s58
      %s60 = sshll.u32 [#allocation7], 4
      %s61 = int_to_ptr.vmem [resolvable:$true] %s60
      %66 = dma.hbm_to_vmem [thread:$0]  %s7, 2048, %s61, [#allocation6], 256, 256, 16
    $region33: #{tpu_custom_call.1} parent=1 // pred_fallthru
      _
    // Predicated region
    $region34: #{tpu_custom_call.1} parent=1 // pred_check
      _
    $region35: #{tpu_custom_call.1} parent=1 // pred_check_branch
      %68 = sbr.rel (0) target = $region37
    $region36: #{tpu_custom_call.1} parent=1 // pred_region
      _
    $region37: #{tpu_custom_call.1} parent=1 // pred_fallthru
      _
    // Predicated region
    $region38: #{tpu_custom_call.1} parent=1 // pred_check
      _
    $region39: #{tpu_custom_call.1} parent=1 // pred_check_branch
      %70 = sbr.rel (0) target = $region41
    $region40: #{tpu_custom_call.1} parent=1 // pred_region
      %s72 = ssub.s32 1024, 1024
      %73 = vsyncadd [#allocation9], %s72
      %s74 = sshll.u32 [#allocation8], 4
      %s75 = int_to_ptr.vmem [resolvable:$true] %s74
      %80 = dma.hbm_to_vmem [thread:$0]  %s9, 1024, %s75, [#allocation9], 128, 128, 8
    $region41: #{tpu_custom_call.1} parent=1 // pred_fallthru
      _
    // Predicated region
    $region42: #{tpu_custom_call.1} parent=1 // pred_check
      _
    $region43: #{tpu_custom_call.1} parent=1 // pred_check_branch
      %82 = sbr.rel (0) target = $region45
    $region44: #{tpu_custom_call.1} parent=1 // pred_region
      _
    $region45: #{tpu_custom_call.1} parent=1 // pred_fallthru
      _
    // Predicated region
    $region46: #{tpu_custom_call.1} parent=1 // pred_check
      _
    $region47: #{tpu_custom_call.1} parent=1 // pred_check_branch
      %84 = sbr.rel (0) target = $region49
    $region48: #{tpu_custom_call.1} parent=1 // pred_region
      _
    $region49: #{tpu_custom_call.1} parent=1 // pred_fallthru
      _
    // Predicated region
    $region50: #{tpu_custom_call.1} parent=1 // pred_check
      _
    $region51: #{tpu_custom_call.1} parent=1 // pred_check_branch
      %86 = sbr.rel (0) target = $region53
    $region52: #{tpu_custom_call.1} parent=1 // pred_region
      %87 = dma.done [#allocation3], 512
    $region53: #{tpu_custom_call.1} parent=1 // pred_fallthru
      _
    // Predicated region
    $region54: #{tpu_custom_call.1} parent=1 // pred_check
      _
    $region55: #{tpu_custom_call.1} parent=1 // pred_check_branch
      %89 = sbr.rel (0) target = $region57
    $region56: #{tpu_custom_call.1} parent=1 // pred_region
      %90 = dma.done [#allocation6], 1024
    $region57: #{tpu_custom_call.1} parent=1 // pred_fallthru
      _
    // Predicated region
    $region58: #{tpu_custom_call.1} parent=1 // pred_check
      _
    $region59: #{tpu_custom_call.1} parent=1 // pred_check_branch
      %92 = sbr.rel (0) target = $region61
    $region60: #{tpu_custom_call.1} parent=1 // pred_region
      %93 = dma.done [#allocation6], 2048
    $region61: #{tpu_custom_call.1} parent=1 // pred_fallthru
      _
    // Predicated region
    $region62: #{tpu_custom_call.1} parent=1 // pred_check
      _
    $region63: #{tpu_custom_call.1} parent=1 // pred_check_branch
      %95 = sbr.rel (0) target = $region65
    $region64: #{tpu_custom_call.1} parent=1 // pred_region
      %96 = dma.done [#allocation9], 1024
    $region65: #{tpu_custom_call.1} parent=1 // pred_fallthru
      _
    %v97 = vld [vmem:[#allocation2] sm:$0xff]
    %v98 = vld [vmem:[#allocation2 + $0x8] sm:$0xff]
    %s99 = scalar_lea.vmem [#allocation2], 16
    %v100 = vld [vmem:[%s99] sm:$0xff]
    %v101 = vld [vmem:[%s99 + $0x8] sm:$0xff]
    %v102 = vld [vmem:[%s1] sm:$0xf]
    %s103 = scalar_lea.vmem %s1, 4
    %v104 = vld [vmem:[%s103] sm:$0xf]
    %v106 = vrot.slane %v104, 4
    %vm108 = vcmask 1043456
    %v109 = vsel %vm108, %v102, %v106
    %v110 = vld [vmem:[%s2] sm:$0x3]
    %vm111 = vcmask 523264
    %v112 = vsel %vm111, %v97, 0.0
    %113 = vadd.xlane.f32.xlu0 %v112
    %v114 = vpop.xlane.xlu0 %113
    %v115 = vsel %vm111, %v98, 0.0
    %116 = vadd.xlane.f32.xlu0 %v115
    %v117 = vpop.xlane.xlu0 %116
    %v118 = vsel %vm111, %v100, 0.0
    %119 = vadd.xlane.f32.xlu0 %v118
    %v120 = vpop.xlane.xlu0 %119
    %v121 = vsel %vm111, %v101, 0.0
    %122 = vadd.xlane.f32.xlu0 %v121
    %v123 = vpop.xlane.xlu0 %122
    %v124 = vrcp.pop 64.0
    %v125 = vmul.f32 %v114, %v124
    %v126 = vmul.f32 %v117, %v124
    %v127 = vmul.f32 %v120, %v124
    %v128 = vmul.f32 %v123, %v124
    %v129 = vsub.f32 %v97, %v125
    %v130 = vsub.f32 %v98, %v126
    %v131 = vsub.f32 %v100, %v127
    %v132 = vsub.f32 %v101, %v128
    %v133 = vmul.f32 %v129, %v129
    %v134 = vmul.f32 %v130, %v130
    %v135 = vmul.f32 %v131, %v131
    %v136 = vmul.f32 %v132, %v132
    %v137 = vsel %vm111, %v133, 0.0
    %138 = vadd.xlane.f32.xlu0 %v137
    %v139 = vpop.xlane.xlu0 %138
    %v140 = vsel %vm111, %v134, 0.0
    %141 = vadd.xlane.f32.xlu0 %v140
    %v142 = vpop.xlane.xlu0 %141
    %v143 = vsel %vm111, %v135, 0.0
    %144 = vadd.xlane.f32.xlu0 %v143
    %v145 = vpop.xlane.xlu0 %144
    %v146 = vsel %vm111, %v136, 0.0
    %147 = vadd.xlane.f32.xlu0 %v146
    %v148 = vpop.xlane.xlu0 %147
    %v149 = vmul.f32 %v139, %v124
    %v150 = vmul.f32 %v142, %v124
    %v151 = vmul.f32 %v145, %v124
    %v152 = vmul.f32 %v148, %v124
    %v153 = vadd.f32 %v149, 1e-05
    %v154 = vadd.f32 %v150, 1e-05
    %v155 = vadd.f32 %v151, 1e-05
    %v156 = vadd.f32 %v152, 1e-05
    %v157 = vrsqrt.pop %v153
    %v158 = vrsqrt.pop %v154
    %v159 = vrsqrt.pop %v155
    %v160 = vrsqrt.pop %v156
    %v161 = vmul.f32 %v129, %v157
    %v162 = vmul.f32 %v130, %v158
    %v163 = vmul.f32 %v131, %v159
    %v164 = vmul.f32 %v132, %v160
    %v165 = vlaneseq
    %v166 = vshrl.u32 %v165, 7
    %v167 = vsub.s32 0, %v166
    %v168 = vrot.slane %v110, %v167
    %v169 = vmul.f32 %v161, %v168
    %v170 = vmul.f32 %v162, %v168
    %v171 = vmul.f32 %v163, %v168
    %v172 = vmul.f32 %v164, %v168
    %v173 = vlaneseq
    %v174 = vshrl.u32 %v173, 7
    %v175 = vsub.s32 1, %v174
    %v176 = vrot.slane %v110, %v175
    %v177 = vadd.f32 %v169, %v176
    %v178 = vadd.f32 %v170, %v176
    %v179 = vadd.f32 %v171, %v176
    %v180 = vadd.f32 %v172, %v176
    %v181 = vld [vmem:[%s3] sm:$0xff]
    %v182 = vld [vmem:[%s3 + $0x8] sm:$0xff]
    %v183 = vld [vmem:[%s3 + $0x10] sm:$0xff]
    %v184 = vld [vmem:[%s3 + $0x18] sm:$0xff]
    %v185 = vld [vmem:[%s3 + $0x20] sm:$0xff]
    %v186 = vld [vmem:[%s3 + $0x28] sm:$0xff]
    %v187 = vld [vmem:[%s3 + $0x30] sm:$0xff]
    %v188 = vld [vmem:[%s3 + $0x38] sm:$0xff]
    %v190 = vsel %vm111, %v177, 0
    %v193 = vsel %vm111, %v178, 0
    %v196 = vsel %vm111, %v179, 0
    %v199 = vsel %vm111, %v180, 0
    %201 = vmatprep.subr.mxu0 0.0
    %202 = vmatpush1.msra.mxu0 %v181
    %203 = vmatprep.subr.mxu0 0.0
    %204 = vmatpush1.msra.mxu0 %v182
    %205 = vmatprep.subr.mxu0 0.0
    %206 = vmatpush1.msra.mxu0 %v183
    %207 = vmatprep.subr.mxu0 0.0
    %208 = vmatpush1.msra.mxu0 %v184
    %209 = vmatprep.subr.mxu0 0.0
    %210 = vmatpush1.msra.mxu0 %v185
    %211 = vmatprep.subr.mxu0 0.0
    %212 = vmatpush1.msra.mxu0 %v186
    %213 = vmatprep.subr.mxu0 0.0
    %214 = vmatpush1.msra.mxu0 %v187
    %215 = vmatprep.subr.mxu0 0.0
    %216 = vmatpush1.msra.mxu0 %v188
    %217 = vmatprep.subr.mxu0 0.0
    %218 = vmatpush1.msra.mxu0 0.0
    %219 = vmatprep.subr.mxu0 0.0
    %220 = vmatpush1.msra.mxu0 0.0
    %221 = vmatprep.subr.mxu0 0.0
    %222 = vmatpush1.msra.mxu0 0.0
    %223 = vmatprep.subr.mxu0 0.0
    %224 = vmatpush1.msra.mxu0 0.0
    %225 = vmatprep.subr.mxu0 0.0
    %226 = vmatpush1.msra.mxu0 0.0
    %227 = vmatprep.subr.mxu0 0.0
    %228 = vmatpush1.msra.mxu0 0.0
    %229 = vmatprep.subr.mxu0 0.0
    %230 = vmatpush1.msra.mxu0 0.0
    %231 = vmatprep.subr.mxu0 0.0
    %232 = vmatpush1.msra.mxu0 0.0
    %233 = vmatprep.subr.mxu0 0.0
    %234 = vmatpush1.msra.mxu0 0.0
    %235 = vmatprep.subr.mxu0 0.0
    %236 = vmatpush1.msra.mxu0 0.0
    %237 = vmatprep.subr.mxu0 0.0
    %238 = vmatpush1.msra.mxu0 0.0
    %239 = vmatprep.subr.mxu0 0.0
    %240 = vmatpush1.msra.mxu0 0.0
    %241 = vmatprep.subr.mxu0 0.0
    %242 = vmatpush1.msra.mxu0 0.0
    %243 = vmatprep.subr.mxu0 0.0
    %244 = vmatpush1.msra.mxu0 0.0
    %245 = vmatprep.subr.mxu0 0.0
    %246 = vmatpush1.msra.mxu0 0.0
    %247 = vmatprep.subr.mxu0 0.0
    %248 = vmatpush1.msra.mxu0 0.0
    %249 = vmatprep.subr.mxu0 0.0
    %250 = vmatpush1.msra.mxu0 0.0
    %251 = vmatprep.subr.mxu0 0.0
    %252 = vmatpush1.msra.mxu0 0.0
    %253 = vmatprep.subr.mxu0 0.0
    %254 = vmatpush1.msra.mxu0 0.0
    %255 = vmatprep.subr.mxu0 0.0
    %256 = vmatpush1.msra.mxu0 0.0
    %257 = vmatprep.subr.mxu0 0.0
    %258 = vmatpush1.msra.mxu0 0.0
    %259 = vmatprep.subr.mxu0 0.0
    %260 = vmatpush1.msra.mxu0 0.0
    %261 = vmatprep.subr.mxu0 0.0
    %262 = vmatpush1.msra.mxu0 0.0
    %263 = vmatprep.subr.mxu0 0.0
    %264 = vmatpush1.msra.mxu0 0.0
    %265 = vmatprep.mubr.f32.mxu0 0.0
    %266 = vmatmul.mubr.f32.gmra.mrb[0].mxu0 %v190
    %v267 = vpop.f32.mrb[0].mxu0
    %v268 = vadd.f32 0.0, %v267
    %v269 = vpop.f32.mrb[0].mxu0
    %270 = vmatprep.mubr.f32.mxu0 0.0
    %271 = vmatmul.mubr.f32.gmra.mrb[0].mxu0 %v193
    %v272 = vpop.f32.mrb[0].mxu0
    %v273 = vadd.f32 0.0, %v272
    %v274 = vpop.f32.mrb[0].mxu0
    %275 = vmatprep.mubr.f32.mxu0 0.0
    %276 = vmatmul.mubr.f32.gmra.mrb[0].mxu0 %v196
    %v277 = vpop.f32.mrb[0].mxu0
    %v278 = vadd.f32 0.0, %v277
    %v279 = vpop.f32.mrb[0].mxu0
    %280 = vmatprep.mubr.f32.mxu0 0.0
    %281 = vmatmul.mubr.f32.gmra.mrb[0].mxu0 %v199
    %v282 = vpop.f32.mrb[0].mxu0
    %v283 = vadd.f32 0.0, %v282
    %v284 = vpop.f32.mrb[0].mxu0
    %285 = vdwg.mxu0
    %v286 = vld [vmem:[%s5] sm:$0x1f]
    %v287 = vlaneseq
    %v288 = vshrl.u32 %v287, 7
    %v289 = vsub.s32 0, %v288
    %v290 = vrot.slane %v286, %v289
    %v291 = vlaneseq
    %v292 = vshrl.u32 %v291, 7
    %v293 = vsub.s32 1, %v292
    %v294 = vrot.slane %v286, %v293
    %v295 = vlaneseq
    %v296 = vshrl.u32 %v295, 7
    %v297 = vsub.s32 2, %v296
    %v298 = vrot.slane %v286, %v297
    %v299 = vlaneseq
    %v300 = vshrl.u32 %v299, 7
    %v301 = vsub.s32 3, %v300
    %v302 = vrot.slane %v286, %v301
    %v303 = vlaneseq
    %v304 = vshrl.u32 %v303, 7
    %v305 = vsub.s32 4, %v304
    %v306 = vrot.slane %v286, %v305
    %v307 = vld [vmem:[%s8] sm:$0xf]
    %v309 = vlaneseq
    %v310 = vshrl.u32 %v309, 7
    %v311 = vsub.s32 0, %v310
    %v312 = vrot.slane %v307, %v311
    %v313 = vlaneseq
    %v314 = vshrl.u32 %v313, 7
    %v315 = vsub.s32 2, %v314
    %v316 = vrot.slane %v307, %v315
    %v319 = vlaneseq
    %v320 = vshrl.u32 %v319, 7
    %v321 = vsub.s32 0, %v320
    %v322 = vrot.slane %v312, %v321
    %v323 = vlaneseq
    %v324 = vshrl.u32 %v323, 7
    %v325 = vsub.s32 0, %v324
    %v326 = vrot.slane %v316, %v325
    %v327 = vlaneseq
    %v328 = vshrl.u32 %v327, 7
    %v329 = vsub.s32 1, %v328
    %v330 = vrot.slane %v307, %v329
    %v331 = vlaneseq
    %v332 = vshrl.u32 %v331, 7
    %v333 = vsub.s32 3, %v332
    %v334 = vrot.slane %v307, %v333
    %v337 = vlaneseq
    %v338 = vshrl.u32 %v337, 7
    %v339 = vsub.s32 1, %v338
    %v340 = vrot.slane %v330, %v339
    %v341 = vlaneseq
    %v342 = vshrl.u32 %v341, 7
    %v343 = vsub.s32 1, %v342
    %v344 = vrot.slane %v334, %v343
    %v345 = vld [vmem:[%s10] sm:$0x1]
    %v347 = vlaneseq
    %v348 = vshrl.u32 %v347, 7
    %v349 = vsub.s32 0, %v348
    %v350 = vrot.slane %v345, %v349
    %v352 = vld [vmem:[#allocation5] sm:$0xff]
    %v353 = vld [vmem:[#allocation5 + $0x8] sm:$0xff]
    %v354 = vld [vmem:[#allocation5 + $0x10] sm:$0xff]
    %v355 = vld [vmem:[#allocation5 + $0x18] sm:$0xff]
    %v356 = vld [vmem:[#allocation5 + $0x20] sm:$0xff]
    %v357 = vld [vmem:[#allocation5 + $0x28] sm:$0xff]
    %v358 = vld [vmem:[#allocation5 + $0x30] sm:$0xff]
    %v359 = vld [vmem:[#allocation5 + $0x38] sm:$0xff]
    %v360 = vld [vmem:[%s6] sm:$0xff]
    %v361 = vld [vmem:[%s6 + $0x8] sm:$0xff]
    %v362 = vld [vmem:[%s6 + $0x10] sm:$0xff]
    %v363 = vld [vmem:[%s6 + $0x18] sm:$0xff]
    %v364 = vld [vmem:[%s6 + $0x20] sm:$0xff]
    %v365 = vld [vmem:[%s6 + $0x28] sm:$0xff]
    %v366 = vld [vmem:[%s6 + $0x30] sm:$0xff]
    %v367 = vld [vmem:[%s6 + $0x38] sm:$0xff]
    %v368 = vld [vmem:[%s6 + $0x40] sm:$0xff]
    %v369 = vld [vmem:[%s6 + $0x48] sm:$0xff]
    %v370 = vld [vmem:[%s6 + $0x50] sm:$0xff]
    %v371 = vld [vmem:[%s6 + $0x58] sm:$0xff]
    %v372 = vld [vmem:[%s6 + $0x60] sm:$0xff]
    %v373 = vld [vmem:[%s6 + $0x68] sm:$0xff]
    %v374 = vld [vmem:[%s6 + $0x70] sm:$0xff]
    %v375 = vld [vmem:[%s6 + $0x78] sm:$0xff]
    %v376 = vld [vmem:[#allocation7] sm:$0xff]
    %v377 = vld [vmem:[#allocation7 + $0x8] sm:$0xff]
    %v378 = vld [vmem:[#allocation7 + $0x10] sm:$0xff]
    %v379 = vld [vmem:[#allocation7 + $0x18] sm:$0xff]
    %v380 = vld [vmem:[#allocation7 + $0x20] sm:$0xff]
    %v381 = vld [vmem:[#allocation7 + $0x28] sm:$0xff]
    %v382 = vld [vmem:[#allocation7 + $0x30] sm:$0xff]
    %v383 = vld [vmem:[#allocation7 + $0x38] sm:$0xff]
    %v384 = vld [vmem:[#allocation7 + $0x40] sm:$0xff]
    %v385 = vld [vmem:[#allocation7 + $0x48] sm:$0xff]
    %v386 = vld [vmem:[#allocation7 + $0x50] sm:$0xff]
    %v387 = vld [vmem:[#allocation7 + $0x58] sm:$0xff]
    %v388 = vld [vmem:[#allocation7 + $0x60] sm:$0xff]
    %v389 = vld [vmem:[#allocation7 + $0x68] sm:$0xff]
    %v390 = vld [vmem:[#allocation7 + $0x70] sm:$0xff]
    %v391 = vld [vmem:[#allocation7 + $0x78] sm:$0xff]
    %v392 = vld [vmem:[#allocation8] sm:$0xff]
    %v393 = vld [vmem:[#allocation8 + $0x8] sm:$0xff]
    %v394 = vld [vmem:[#allocation8 + $0x10] sm:$0xff]
    %v395 = vld [vmem:[#allocation8 + $0x18] sm:$0xff]
    %v396 = vld [vmem:[#allocation8 + $0x20] sm:$0xff]
    %v397 = vld [vmem:[#allocation8 + $0x28] sm:$0xff]
    %v398 = vld [vmem:[#allocation8 + $0x30] sm:$0xff]
    %v399 = vld [vmem:[#allocation8 + $0x38] sm:$0xff]
    %v400 = vld [vmem:[%s11] sm:$0xff]
    %v401 = vld [vmem:[%s11 + $0x8] sm:$0xff]
    %v402 = vld [vmem:[%s11 + $0x10] sm:$0xff]
    %v403 = vld [vmem:[%s11 + $0x18] sm:$0xff]
    %v404 = vld [vmem:[%s11 + $0x20] sm:$0xff]
    %v405 = vld [vmem:[%s11 + $0x28] sm:$0xff]
    %v406 = vld [vmem:[%s11 + $0x30] sm:$0xff]
    %v407 = vld [vmem:[%s11 + $0x38] sm:$0xff]
    %v408 = vld [vmem:[%s11 + $0x40] sm:$0xff]
    %v409 = vld [vmem:[%s11 + $0x48] sm:$0xff]
    %v410 = vld [vmem:[%s11 + $0x50] sm:$0xff]
    %v411 = vld [vmem:[%s11 + $0x58] sm:$0xff]
    %v412 = vld [vmem:[%s11 + $0x60] sm:$0xff]
    %v413 = vld [vmem:[%s11 + $0x68] sm:$0xff]
    %v414 = vld [vmem:[%s11 + $0x70] sm:$0xff]
    %v415 = vld [vmem:[%s11 + $0x78] sm:$0xff]
    %v416 = vsel %vm111, %v109, 0.0
    %417 = vadd.xlane.f32.xlu0 %v416
    %v418 = vpop.xlane.xlu0 %417
    %v419 = vmul.f32 %v418, %v124
    %v420 = vsub.f32 %v109, %v419
    %v421 = vmul.f32 %v420, %v420
    %v422 = vsel %vm111, %v421, 0.0
    %423 = vadd.xlane.f32.xlu0 %v422
    %v424 = vpop.xlane.xlu0 %423
    %v425 = vmul.f32 %v424, %v124
    %v426 = vadd.f32 %v425, 1e-05
    %v427 = vrsqrt.pop %v426
    %v428 = vmul.f32 %v420, %v427
    %v429 = vmul.f32 %v428, %v290
    %v430 = vadd.f32 %v429, %v294
    %v432 = vsel %vm111, %v430, 0
    %434 = vmatprep.subr.mxu0 0.0
    %435 = vmatpush1.msra.mxu0 %v352
    %436 = vmatprep.subr.mxu0 0.0
    %437 = vmatpush1.msra.mxu0 %v353
    %438 = vmatprep.subr.mxu0 0.0
    %439 = vmatpush1.msra.mxu0 %v354
    %440 = vmatprep.subr.mxu0 0.0
    %441 = vmatpush1.msra.mxu0 %v355
    %442 = vmatprep.subr.mxu0 0.0
    %443 = vmatpush1.msra.mxu0 %v356
    %444 = vmatprep.subr.mxu0 0.0
    %445 = vmatpush1.msra.mxu0 %v357
    %446 = vmatprep.subr.mxu0 0.0
    %447 = vmatpush1.msra.mxu0 %v358
    %448 = vmatprep.subr.mxu0 0.0
    %449 = vmatpush1.msra.mxu0 %v359
    %450 = vmatprep.subr.mxu0 0.0
    %451 = vmatpush1.msra.mxu0 0.0
    %452 = vmatprep.subr.mxu0 0.0
    %453 = vmatpush1.msra.mxu0 0.0
    %454 = vmatprep.subr.mxu0 0.0
    %455 = vmatpush1.msra.mxu0 0.0
    %456 = vmatprep.subr.mxu0 0.0
    %457 = vmatpush1.msra.mxu0 0.0
    %458 = vmatprep.subr.mxu0 0.0
    %459 = vmatpush1.msra.mxu0 0.0
    %460 = vmatprep.subr.mxu0 0.0
    %461 = vmatpush1.msra.mxu0 0.0
    %462 = vmatprep.subr.mxu0 0.0
    %463 = vmatpush1.msra.mxu0 0.0
    %464 = vmatprep.subr.mxu0 0.0
    %465 = vmatpush1.msra.mxu0 0.0
    %466 = vmatprep.subr.mxu0 0.0
    %467 = vmatpush1.msra.mxu0 0.0
    %468 = vmatprep.subr.mxu0 0.0
    %469 = vmatpush1.msra.mxu0 0.0
    %470 = vmatprep.subr.mxu0 0.0
    %471 = vmatpush1.msra.mxu0 0.0
    %472 = vmatprep.subr.mxu0 0.0
    %473 = vmatpush1.msra.mxu0 0.0
    %474 = vmatprep.subr.mxu0 0.0
    %475 = vmatpush1.msra.mxu0 0.0
    %476 = vmatprep.subr.mxu0 0.0
    %477 = vmatpush1.msra.mxu0 0.0
    %478 = vmatprep.subr.mxu0 0.0
    %479 = vmatpush1.msra.mxu0 0.0
    %480 = vmatprep.subr.mxu0 0.0
    %481 = vmatpush1.msra.mxu0 0.0
    %482 = vmatprep.subr.mxu0 0.0
    %483 = vmatpush1.msra.mxu0 0.0
    %484 = vmatprep.subr.mxu0 0.0
    %485 = vmatpush1.msra.mxu0 0.0
    %486 = vmatprep.subr.mxu0 0.0
    %487 = vmatpush1.msra.mxu0 0.0
    %488 = vmatprep.subr.mxu0 0.0
    %489 = vmatpush1.msra.mxu0 0.0
    %490 = vmatprep.subr.mxu0 0.0
    %491 = vmatpush1.msra.mxu0 0.0
    %492 = vmatprep.subr.mxu0 0.0
    %493 = vmatpush1.msra.mxu0 0.0
    %494 = vmatprep.subr.mxu0 0.0
    %495 = vmatpush1.msra.mxu0 0.0
    %496 = vmatprep.subr.mxu0 0.0
    %497 = vmatpush1.msra.mxu0 0.0
    %498 = vmatprep.mubr.f32.mxu0 0.0
    %499 = vmatmul.mubr.f32.gmra.mrb[0].mxu0 %v432
    %v500 = vpop.f32.mrb[0].mxu0
    %v501 = vadd.f32 0.0, %v500
    %v502 = vpop.f32.mrb[0].mxu0
    %503 = vdwg.mxu0
    %v505 = vsel %vm111, %v501, 0
    %v508 = vsel %vm111, %v268, 0
    %v511 = vsel %vm111, %v273, 0
    %513 = vmatprep.subr.mxu0 0.0
    %514 = vmatpush1.xpose.msra.mxu0 %v508
    %515 = vmatprep.subr.mxu0 0.0
    %516 = vmatpush1.xpose.msra.mxu0 %v511
    %517 = vmatprep.subr.mxu0 0.0
    %518 = vmatpush1.xpose.msra.mxu0 0.0
    %519 = vmatprep.subr.mxu0 0.0
    %520 = vmatpush1.xpose.msra.mxu0 0.0
    %521 = vmatprep.subr.mxu0 0.0
    %522 = vmatpush1.xpose.msra.mxu0 0.0
    %523 = vmatprep.subr.mxu0 0.0
    %524 = vmatpush1.xpose.msra.mxu0 0.0
    %525 = vmatprep.subr.mxu0 0.0
    %526 = vmatpush1.xpose.msra.mxu0 0.0
    %527 = vmatprep.subr.mxu0 0.0
    %528 = vmatpush1.xpose.msra.mxu0 0.0
    %529 = vmatprep.subr.mxu0 0.0
    %530 = vmatpush1.xpose.msra.mxu0 0.0
    %531 = vmatprep.subr.mxu0 0.0
    %532 = vmatpush1.xpose.msra.mxu0 0.0
    %533 = vmatprep.subr.mxu0 0.0
    %534 = vmatpush1.xpose.msra.mxu0 0.0
    %535 = vmatprep.subr.mxu0 0.0
    %536 = vmatpush1.xpose.msra.mxu0 0.0
    %537 = vmatprep.subr.mxu0 0.0
    %538 = vmatpush1.xpose.msra.mxu0 0.0
    %539 = vmatprep.subr.mxu0 0.0
    %540 = vmatpush1.xpose.msra.mxu0 0.0
    %541 = vmatprep.subr.mxu0 0.0
    %542 = vmatpush1.xpose.msra.mxu0 0.0
    %543 = vmatprep.subr.mxu0 0.0
    %544 = vmatpush1.xpose.msra.mxu0 0.0
    %545 = vmatprep.subr.mxu0 0.0
    %546 = vmatpush1.xpose.msra.mxu0 0.0
    %547 = vmatprep.subr.mxu0 0.0
    %548 = vmatpush1.xpose.msra.mxu0 0.0
    %549 = vmatprep.subr.mxu0 0.0
    %550 = vmatpush1.xpose.msra.mxu0 0.0
    %551 = vmatprep.subr.mxu0 0.0
    %552 = vmatpush1.xpose.msra.mxu0 0.0
    %553 = vmatprep.subr.mxu0 0.0
    %554 = vmatpush1.xpose.msra.mxu0 0.0
    %555 = vmatprep.subr.mxu0 0.0
    %556 = vmatpush1.xpose.msra.mxu0 0.0
    %557 = vmatprep.subr.mxu0 0.0
    %558 = vmatpush1.xpose.msra.mxu0 0.0
    %559 = vmatprep.subr.mxu0 0.0
    %560 = vmatpush1.xpose.msra.mxu0 0.0
    %561 = vmatprep.subr.mxu0 0.0
    %562 = vmatpush1.xpose.msra.mxu0 0.0
    %563 = vmatprep.subr.mxu0 0.0
    %564 = vmatpush1.xpose.msra.mxu0 0.0
    %565 = vmatprep.subr.mxu0 0.0
    %566 = vmatpush1.xpose.msra.mxu0 0.0
    %567 = vmatprep.subr.mxu0 0.0
    %568 = vmatpush1.xpose.msra.mxu0 0.0
    %569 = vmatprep.subr.mxu0 0.0
    %570 = vmatpush1.xpose.msra.mxu0 0.0
    %571 = vmatprep.subr.mxu0 0.0
    %572 = vmatpush1.xpose.msra.mxu0 0.0
    %573 = vmatprep.subr.mxu0 0.0
    %574 = vmatpush1.xpose.msra.mxu0 0.0
    %575 = vmatprep.subr.mxu0 0.0
    %576 = vmatpush1.xpose.msra.mxu0 0.0
    %577 = vmatprep.mubr.f32.mxu0 0.0
    %578 = vmatmul.mubr.f32.gmra.mrb[0].mxu0 %v505
    %v579 = vpop.f32.mrb[0].mxu0
    %v580 = vadd.f32 0.0, %v579
    %v581 = vpop.f32.mrb[0].mxu0
    %582 = vdwg.mxu0
    %vm583 = vcmask 125952
    %v584 = vsel %vm583, %v580, -inf
    %v585 = vrot.slane %v584, 4
    %v586 = vmax.f32 %v584, %v585
    %v587 = vrot.slane %v586, 2
    %v588 = vmax.f32 %v586, %v587
    %v589 = vrot.slane %v588, 1
    %v590 = vmax.f32 %v588, %v589
    %v591 = vsub.f32 %v580, %v590
    %v592 = vmul.f32 %v591, 1.442695
    %v593 = vpow.pop %v592
    %v594 = vsel %vm583, %v593, 0.0
    %v595 = vrot.slane %v594, 4
    %v596 = vadd.f32 %v594, %v595
    %v597 = vrot.slane %v596, 2
    %v598 = vadd.f32 %v596, %v597
    %v599 = vrot.slane %v598, 1
    %v600 = vadd.f32 %v598, %v599
    %v601 = vrcp.pop %v600
    %v602 = vmul.f32 %v593, %v601
    %v603 = vadd.f32 %v602, 1e-08
    %v604 = vsel %vm583, %v603, 0.0
    %605 = vadd.xlane.f32.xlu0 %v604
    %v606 = vpop.xlane.xlu0 %605
    %v607 = vrcp.pop %v606
    %v608 = vmul.f32 %v603, %v607
    %609 = vrot.lane.b32.xlu0 %v268, 64
    %v610 = vpop.permute.xlu0 %609
    %611 = vrot.lane.b32.xlu0 %v273, 64
    %v612 = vpop.permute.xlu0 %611
    %vm615 = vcmask 130048
    %v617 = vsel %vm615, %v608, 0
    %619 = vmatprep.subr.mxu0 0.0
    %620 = vmatpush1.msra.mxu0 %v610
    %621 = vmatprep.subr.mxu0 0.0
    %622 = vmatpush1.msra.mxu0 %v612
    %623 = vmatprep.subr.mxu0 0.0
    %624 = vmatpush1.msra.mxu0 0.0
    %625 = vmatprep.subr.mxu0 0.0
    %626 = vmatpush1.msra.mxu0 0.0
    %627 = vmatprep.subr.mxu0 0.0
    %628 = vmatpush1.msra.mxu0 0.0
    %629 = vmatprep.subr.mxu0 0.0
    %630 = vmatpush1.msra.mxu0 0.0
    %631 = vmatprep.subr.mxu0 0.0
    %632 = vmatpush1.msra.mxu0 0.0
    %633 = vmatprep.subr.mxu0 0.0
    %634 = vmatpush1.msra.mxu0 0.0
    %635 = vmatprep.subr.mxu0 0.0
    %636 = vmatpush1.msra.mxu0 0.0
    %637 = vmatprep.subr.mxu0 0.0
    %638 = vmatpush1.msra.mxu0 0.0
    %639 = vmatprep.subr.mxu0 0.0
    %640 = vmatpush1.msra.mxu0 0.0
    %641 = vmatprep.subr.mxu0 0.0
    %642 = vmatpush1.msra.mxu0 0.0
    %643 = vmatprep.subr.mxu0 0.0
    %644 = vmatpush1.msra.mxu0 0.0
    %645 = vmatprep.subr.mxu0 0.0
    %646 = vmatpush1.msra.mxu0 0.0
    %647 = vmatprep.subr.mxu0 0.0
    %648 = vmatpush1.msra.mxu0 0.0
    %649 = vmatprep.subr.mxu0 0.0
    %650 = vmatpush1.msra.mxu0 0.0
    %651 = vmatprep.subr.mxu0 0.0
    %652 = vmatpush1.msra.mxu0 0.0
    %653 = vmatprep.subr.mxu0 0.0
    %654 = vmatpush1.msra.mxu0 0.0
    %655 = vmatprep.subr.mxu0 0.0
    %656 = vmatpush1.msra.mxu0 0.0
    %657 = vmatprep.subr.mxu0 0.0
    %658 = vmatpush1.msra.mxu0 0.0
    %659 = vmatprep.subr.mxu0 0.0
    %660 = vmatpush1.msra.mxu0 0.0
    %661 = vmatprep.subr.mxu0 0.0
    %662 = vmatpush1.msra.mxu0 0.0
    %663 = vmatprep.subr.mxu0 0.0
    %664 = vmatpush1.msra.mxu0 0.0
    %665 = vmatprep.subr.mxu0 0.0
    %666 = vmatpush1.msra.mxu0 0.0
    %667 = vmatprep.subr.mxu0 0.0
    %668 = vmatpush1.msra.mxu0 0.0
    %669 = vmatprep.subr.mxu0 0.0
    %670 = vmatpush1.msra.mxu0 0.0
    %671 = vmatprep.subr.mxu0 0.0
    %672 = vmatpush1.msra.mxu0 0.0
    %673 = vmatprep.subr.mxu0 0.0
    %674 = vmatpush1.msra.mxu0 0.0
    %675 = vmatprep.subr.mxu0 0.0
    %676 = vmatpush1.msra.mxu0 0.0
    %677 = vmatprep.subr.mxu0 0.0
    %678 = vmatpush1.msra.mxu0 0.0
    %679 = vmatprep.subr.mxu0 0.0
    %680 = vmatpush1.msra.mxu0 0.0
    %681 = vmatprep.subr.mxu0 0.0
    %682 = vmatpush1.msra.mxu0 0.0
    %683 = vmatprep.mubr.f32.mxu0 0.0
    %684 = vmatmul.mubr.f32.gmra.mrb[0].mxu0 %v617
    %v685 = vpop.f32.mrb[0].mxu0
    %v686 = vadd.f32 0.0, %v685
    %v687 = vpop.f32.mrb[0].mxu0
    %688 = vdwg.mxu0
    %v689 = vrot.slane %v501, 4
    %v690 = vsel %vm111, %v689, 0
    %v693 = vsel %vm111, %v278, 0
    %v696 = vsel %vm111, %v283, 0
    %698 = vmatprep.subr.mxu0 0.0
    %699 = vmatpush1.xpose.msra.mxu0 %v693
    %700 = vmatprep.subr.mxu0 0.0
    %701 = vmatpush1.xpose.msra.mxu0 %v696
    %702 = vmatprep.subr.mxu0 0.0
    %703 = vmatpush1.xpose.msra.mxu0 0.0
    %704 = vmatprep.subr.mxu0 0.0
    %705 = vmatpush1.xpose.msra.mxu0 0.0
    %706 = vmatprep.subr.mxu0 0.0
    %707 = vmatpush1.xpose.msra.mxu0 0.0
    %708 = vmatprep.subr.mxu0 0.0
    %709 = vmatpush1.xpose.msra.mxu0 0.0
    %710 = vmatprep.subr.mxu0 0.0
    %711 = vmatpush1.xpose.msra.mxu0 0.0
    %712 = vmatprep.subr.mxu0 0.0
    %713 = vmatpush1.xpose.msra.mxu0 0.0
    %714 = vmatprep.subr.mxu0 0.0
    %715 = vmatpush1.xpose.msra.mxu0 0.0
    %716 = vmatprep.subr.mxu0 0.0
    %717 = vmatpush1.xpose.msra.mxu0 0.0
    %718 = vmatprep.subr.mxu0 0.0
    %719 = vmatpush1.xpose.msra.mxu0 0.0
    %720 = vmatprep.subr.mxu0 0.0
    %721 = vmatpush1.xpose.msra.mxu0 0.0
    %722 = vmatprep.subr.mxu0 0.0
    %723 = vmatpush1.xpose.msra.mxu0 0.0
    %724 = vmatprep.subr.mxu0 0.0
    %725 = vmatpush1.xpose.msra.mxu0 0.0
    %726 = vmatprep.subr.mxu0 0.0
    %727 = vmatpush1.xpose.msra.mxu0 0.0
    %728 = vmatprep.subr.mxu0 0.0
    %729 = vmatpush1.xpose.msra.mxu0 0.0
    %730 = vmatprep.subr.mxu0 0.0
    %731 = vmatpush1.xpose.msra.mxu0 0.0
    %732 = vmatprep.subr.mxu0 0.0
    %733 = vmatpush1.xpose.msra.mxu0 0.0
    %734 = vmatprep.subr.mxu0 0.0
    %735 = vmatpush1.xpose.msra.mxu0 0.0
    %736 = vmatprep.subr.mxu0 0.0
    %737 = vmatpush1.xpose.msra.mxu0 0.0
    %738 = vmatprep.subr.mxu0 0.0
    %739 = vmatpush1.xpose.msra.mxu0 0.0
    %740 = vmatprep.subr.mxu0 0.0
    %741 = vmatpush1.xpose.msra.mxu0 0.0
    %742 = vmatprep.subr.mxu0 0.0
    %743 = vmatpush1.xpose.msra.mxu0 0.0
    %744 = vmatprep.subr.mxu0 0.0
    %745 = vmatpush1.xpose.msra.mxu0 0.0
    %746 = vmatprep.subr.mxu0 0.0
    %747 = vmatpush1.xpose.msra.mxu0 0.0
    %748 = vmatprep.subr.mxu0 0.0
    %749 = vmatpush1.xpose.msra.mxu0 0.0
    %750 = vmatprep.subr.mxu0 0.0
    %751 = vmatpush1.xpose.msra.mxu0 0.0
    %752 = vmatprep.subr.mxu0 0.0
    %753 = vmatpush1.xpose.msra.mxu0 0.0
    %754 = vmatprep.subr.mxu0 0.0
    %755 = vmatpush1.xpose.msra.mxu0 0.0
    %756 = vmatprep.subr.mxu0 0.0
    %757 = vmatpush1.xpose.msra.mxu0 0.0
    %758 = vmatprep.subr.mxu0 0.0
    %759 = vmatpush1.xpose.msra.mxu0 0.0
    %760 = vmatprep.subr.mxu0 0.0
    %761 = vmatpush1.xpose.msra.mxu0 0.0
    %762 = vmatprep.mubr.f32.mxu0 0.0
    %763 = vmatmul.mubr.f32.gmra.mrb[0].mxu0 %v690
    %v764 = vpop.f32.mrb[0].mxu0
    %v765 = vadd.f32 0.0, %v764
    %v766 = vpop.f32.mrb[0].mxu0
    %767 = vdwg.mxu0
    %v768 = vsel %vm583, %v765, -inf
    %v769 = vrot.slane %v768, 4
    %v770 = vmax.f32 %v768, %v769
    %v771 = vrot.slane %v770, 2
    %v772 = vmax.f32 %v770, %v771
    %v773 = vrot.slane %v772, 1
    %v774 = vmax.f32 %v772, %v773
    %v775 = vsub.f32 %v765, %v774
    %v776 = vmul.f32 %v775, 1.442695
    %v777 = vpow.pop %v776
    %v778 = vsel %vm583, %v777, 0.0
    %v779 = vrot.slane %v778, 4
    %v780 = vadd.f32 %v778, %v779
    %v781 = vrot.slane %v780, 2
    %v782 = vadd.f32 %v780, %v781
    %v783 = vrot.slane %v782, 1
    %v784 = vadd.f32 %v782, %v783
    %v785 = vrcp.pop %v784
    %v786 = vmul.f32 %v777, %v785
    %v787 = vadd.f32 %v786, 1e-08
    %v788 = vsel %vm583, %v787, 0.0
    %789 = vadd.xlane.f32.xlu0 %v788
    %v790 = vpop.xlane.xlu0 %789
    %v791 = vrcp.pop %v790
    %v792 = vmul.f32 %v787, %v791
    %793 = vrot.lane.b32.xlu0 %v278, 64
    %v794 = vpop.permute.xlu0 %793
    %795 = vrot.lane.b32.xlu0 %v283, 64
    %v796 = vpop.permute.xlu0 %795
    %v800 = vsel %vm615, %v792, 0
    %802 = vmatprep.subr.mxu0 0.0
    %803 = vmatpush1.msra.mxu0 %v794
    %804 = vmatprep.subr.mxu0 0.0
    %805 = vmatpush1.msra.mxu0 %v796
    %806 = vmatprep.subr.mxu0 0.0
    %807 = vmatpush1.msra.mxu0 0.0
    %808 = vmatprep.subr.mxu0 0.0
    %809 = vmatpush1.msra.mxu0 0.0
    %810 = vmatprep.subr.mxu0 0.0
    %811 = vmatpush1.msra.mxu0 0.0
    %812 = vmatprep.subr.mxu0 0.0
    %813 = vmatpush1.msra.mxu0 0.0
    %814 = vmatprep.subr.mxu0 0.0
    %815 = vmatpush1.msra.mxu0 0.0
    %816 = vmatprep.subr.mxu0 0.0
    %817 = vmatpush1.msra.mxu0 0.0
    %818 = vmatprep.subr.mxu0 0.0
    %819 = vmatpush1.msra.mxu0 0.0
    %820 = vmatprep.subr.mxu0 0.0
    %821 = vmatpush1.msra.mxu0 0.0
    %822 = vmatprep.subr.mxu0 0.0
    %823 = vmatpush1.msra.mxu0 0.0
    %824 = vmatprep.subr.mxu0 0.0
    %825 = vmatpush1.msra.mxu0 0.0
    %826 = vmatprep.subr.mxu0 0.0
    %827 = vmatpush1.msra.mxu0 0.0
    %828 = vmatprep.subr.mxu0 0.0
    %829 = vmatpush1.msra.mxu0 0.0
    %830 = vmatprep.subr.mxu0 0.0
    %831 = vmatpush1.msra.mxu0 0.0
    %832 = vmatprep.subr.mxu0 0.0
    %833 = vmatpush1.msra.mxu0 0.0
    %834 = vmatprep.subr.mxu0 0.0
    %835 = vmatpush1.msra.mxu0 0.0
    %836 = vmatprep.subr.mxu0 0.0
    %837 = vmatpush1.msra.mxu0 0.0
    %838 = vmatprep.subr.mxu0 0.0
    %839 = vmatpush1.msra.mxu0 0.0
    %840 = vmatprep.subr.mxu0 0.0
    %841 = vmatpush1.msra.mxu0 0.0
    %842 = vmatprep.subr.mxu0 0.0
    %843 = vmatpush1.msra.mxu0 0.0
    %844 = vmatprep.subr.mxu0 0.0
    %845 = vmatpush1.msra.mxu0 0.0
    %846 = vmatprep.subr.mxu0 0.0
    %847 = vmatpush1.msra.mxu0 0.0
    %848 = vmatprep.subr.mxu0 0.0
    %849 = vmatpush1.msra.mxu0 0.0
    %850 = vmatprep.subr.mxu0 0.0
    %851 = vmatpush1.msra.mxu0 0.0
    %852 = vmatprep.subr.mxu0 0.0
    %853 = vmatpush1.msra.mxu0 0.0
    %854 = vmatprep.subr.mxu0 0.0
    %855 = vmatpush1.msra.mxu0 0.0
    %856 = vmatprep.subr.mxu0 0.0
    %857 = vmatpush1.msra.mxu0 0.0
    %858 = vmatprep.subr.mxu0 0.0
    %859 = vmatpush1.msra.mxu0 0.0
    %860 = vmatprep.subr.mxu0 0.0
    %861 = vmatpush1.msra.mxu0 0.0
    %862 = vmatprep.subr.mxu0 0.0
    %863 = vmatpush1.msra.mxu0 0.0
    %864 = vmatprep.subr.mxu0 0.0
    %865 = vmatpush1.msra.mxu0 0.0
    %866 = vmatprep.mubr.f32.mxu0 0.0
    %867 = vmatmul.mubr.f32.gmra.mrb[0].mxu0 %v800
    %v868 = vpop.f32.mrb[0].mxu0
    %v869 = vadd.f32 0.0, %v868
    %v870 = vpop.f32.mrb[0].mxu0
    %871 = vdwg.mxu0
    %v873 = vrot.slane %v869, 4
    %v875 = vsel %vm108, %v686, %v873
    %v877 = vsel %vm111, %v875, 0
    %879 = vmatprep.subr.mxu0 %v361
    %880 = vmatpush1.msra.mxu0 %v360
    %881 = vmatprep.subr.mxu0 %v363
    %882 = vmatpush1.msra.mxu0 %v362
    %883 = vmatprep.subr.mxu0 %v365
    %884 = vmatpush1.msra.mxu0 %v364
    %885 = vmatprep.subr.mxu0 %v367
    %886 = vmatpush1.msra.mxu0 %v366
    %887 = vmatprep.subr.mxu0 %v369
    %888 = vmatpush1.msra.mxu0 %v368
    %889 = vmatprep.subr.mxu0 %v371
    %890 = vmatpush1.msra.mxu0 %v370
    %891 = vmatprep.subr.mxu0 %v373
    %892 = vmatpush1.msra.mxu0 %v372
    %893 = vmatprep.subr.mxu0 %v375
    %894 = vmatpush1.msra.mxu0 %v374
    %895 = vmatprep.subr.mxu0 0.0
    %896 = vmatpush1.msra.mxu0 0.0
    %897 = vmatprep.subr.mxu0 0.0
    %898 = vmatpush1.msra.mxu0 0.0
    %899 = vmatprep.subr.mxu0 0.0
    %900 = vmatpush1.msra.mxu0 0.0
    %901 = vmatprep.subr.mxu0 0.0
    %902 = vmatpush1.msra.mxu0 0.0
    %903 = vmatprep.subr.mxu0 0.0
    %904 = vmatpush1.msra.mxu0 0.0
    %905 = vmatprep.subr.mxu0 0.0
    %906 = vmatpush1.msra.mxu0 0.0
    %907 = vmatprep.subr.mxu0 0.0
    %908 = vmatpush1.msra.mxu0 0.0
    %909 = vmatprep.subr.mxu0 0.0
    %910 = vmatpush1.msra.mxu0 0.0
    %911 = vmatprep.subr.mxu0 0.0
    %912 = vmatpush1.msra.mxu0 0.0
    %913 = vmatprep.subr.mxu0 0.0
    %914 = vmatpush1.msra.mxu0 0.0
    %915 = vmatprep.subr.mxu0 0.0
    %916 = vmatpush1.msra.mxu0 0.0
    %917 = vmatprep.subr.mxu0 0.0
    %918 = vmatpush1.msra.mxu0 0.0
    %919 = vmatprep.subr.mxu0 0.0
    %920 = vmatpush1.msra.mxu0 0.0
    %921 = vmatprep.subr.mxu0 0.0
    %922 = vmatpush1.msra.mxu0 0.0
    %923 = vmatprep.subr.mxu0 0.0
    %924 = vmatpush1.msra.mxu0 0.0
    %925 = vmatprep.subr.mxu0 0.0
    %926 = vmatpush1.msra.mxu0 0.0
    %927 = vmatprep.subr.mxu0 0.0
    %928 = vmatpush1.msra.mxu0 0.0
    %929 = vmatprep.subr.mxu0 0.0
    %930 = vmatpush1.msra.mxu0 0.0
    %931 = vmatprep.subr.mxu0 0.0
    %932 = vmatpush1.msra.mxu0 0.0
    %933 = vmatprep.subr.mxu0 0.0
    %934 = vmatpush1.msra.mxu0 0.0
    %935 = vmatprep.subr.mxu0 0.0
    %936 = vmatpush1.msra.mxu0 0.0
    %937 = vmatprep.subr.mxu0 0.0
    %938 = vmatpush1.msra.mxu0 0.0
    %939 = vmatprep.subr.mxu0 0.0
    %940 = vmatpush1.msra.mxu0 0.0
    %941 = vmatprep.subr.mxu0 0.0
    %942 = vmatpush1.msra.mxu0 0.0
    %943 = vmatprep.mubr.f32.mxu0 0.0
    %944 = vmatmul.mubr.f32.gmra.mrb[0].mxu0 %v877
    %v945 = vpop.f32.mrb[0].mxu0
    %v946 = vadd.f32 %v322, %v945
    %v947 = vpop.f32.mrb[0].mxu0
    %v948 = vadd.f32 %v326, %v947
    %949 = vdwg.mxu0
    %v951 = vsel %vm111, %v109, 0
    %953 = vmatprep.subr.mxu0 %v377
    %954 = vmatpush1.msra.mxu0 %v376
    %955 = vmatprep.subr.mxu0 %v379
    %956 = vmatpush1.msra.mxu0 %v378
    %957 = vmatprep.subr.mxu0 %v381
    %958 = vmatpush1.msra.mxu0 %v380
    %959 = vmatprep.subr.mxu0 %v383
    %960 = vmatpush1.msra.mxu0 %v382
    %961 = vmatprep.subr.mxu0 %v385
    %962 = vmatpush1.msra.mxu0 %v384
    %963 = vmatprep.subr.mxu0 %v387
    %964 = vmatpush1.msra.mxu0 %v386
    %965 = vmatprep.subr.mxu0 %v389
    %966 = vmatpush1.msra.mxu0 %v388
    %967 = vmatprep.subr.mxu0 %v391
    %968 = vmatpush1.msra.mxu0 %v390
    %969 = vmatprep.subr.mxu0 0.0
    %970 = vmatpush1.msra.mxu0 0.0
    %971 = vmatprep.subr.mxu0 0.0
    %972 = vmatpush1.msra.mxu0 0.0
    %973 = vmatprep.subr.mxu0 0.0
    %974 = vmatpush1.msra.mxu0 0.0
    %975 = vmatprep.subr.mxu0 0.0
    %976 = vmatpush1.msra.mxu0 0.0
    %977 = vmatprep.subr.mxu0 0.0
    %978 = vmatpush1.msra.mxu0 0.0
    %979 = vmatprep.subr.mxu0 0.0
    %980 = vmatpush1.msra.mxu0 0.0
    %981 = vmatprep.subr.mxu0 0.0
    %982 = vmatpush1.msra.mxu0 0.0
    %983 = vmatprep.subr.mxu0 0.0
    %984 = vmatpush1.msra.mxu0 0.0
    %985 = vmatprep.subr.mxu0 0.0
    %986 = vmatpush1.msra.mxu0 0.0
    %987 = vmatprep.subr.mxu0 0.0
    %988 = vmatpush1.msra.mxu0 0.0
    %989 = vmatprep.subr.mxu0 0.0
    %990 = vmatpush1.msra.mxu0 0.0
    %991 = vmatprep.subr.mxu0 0.0
    %992 = vmatpush1.msra.mxu0 0.0
    %993 = vmatprep.subr.mxu0 0.0
    %994 = vmatpush1.msra.mxu0 0.0
    %995 = vmatprep.subr.mxu0 0.0
    %996 = vmatpush1.msra.mxu0 0.0
    %997 = vmatprep.subr.mxu0 0.0
    %998 = vmatpush1.msra.mxu0 0.0
    %999 = vmatprep.subr.mxu0 0.0
    %1000 = vmatpush1.msra.mxu0 0.0
    %1001 = vmatprep.subr.mxu0 0.0
    %1002 = vmatpush1.msra.mxu0 0.0
    %1003 = vmatprep.subr.mxu0 0.0
    %1004 = vmatpush1.msra.mxu0 0.0
    %1005 = vmatprep.subr.mxu0 0.0
    %1006 = vmatpush1.msra.mxu0 0.0
    %1007 = vmatprep.subr.mxu0 0.0
    %1008 = vmatpush1.msra.mxu0 0.0
    %1009 = vmatprep.subr.mxu0 0.0
    %1010 = vmatpush1.msra.mxu0 0.0
    %1011 = vmatprep.subr.mxu0 0.0
    %1012 = vmatpush1.msra.mxu0 0.0
    %1013 = vmatprep.subr.mxu0 0.0
    %1014 = vmatpush1.msra.mxu0 0.0
    %1015 = vmatprep.subr.mxu0 0.0
    %1016 = vmatpush1.msra.mxu0 0.0
    %1017 = vmatprep.mubr.f32.mxu0 0.0
    %1018 = vmatmul.mubr.f32.gmra.mrb[0].mxu0 %v951
    %v1019 = vpop.f32.mrb[0].mxu0
    %v1020 = vadd.f32 %v340, %v1019
    %v1021 = vpop.f32.mrb[0].mxu0
    %v1022 = vadd.f32 %v344, %v1021
    %1023 = vdwg.mxu0
    %v1024 = vadd.f32 %v946, %v1020
    %v1025 = vxor.u32 %v1024, 2147483648
    %v1026 = vmul.f32 %v1025, 1.442695
    %v1027 = vpow.pop %v1026
    %v1028 = vadd.f32 %v1027, 1.0
    %v1029 = vrcp.pop %v1028
    %v1030 = vmul.f32 1.0, %v1029
    %v1031 = vmul.f32 %v1030, %v1022
    %v1032 = vadd.f32 %v948, %v1031
    %v1033 = vtanh.pop %v1032
    %v1034 = vsub.f32 1.0, %v1030
    %1036 = vrot.lane.b32.xlu0 %v1033, 64
    %v1037 = vpop.permute.xlu0 %1036
    %v1039 = vmul.f32 %v1034, %v1037
    %1040 = vrot.lane.b32.xlu0 %v109, 64
    %v1041 = vpop.permute.xlu0 %1040
    %v1043 = vmul.f32 %v1030, %v1041
    %v1044 = vadd.f32 %v1039, %v1043
    %1046 = vrot.lane.b32.xlu0 %v1044, 64
    %v1047 = vpop.permute.xlu0 %1046
    %v1049 = vsel %vm111, %v1047, 0.0
    %1050 = vadd.xlane.f32.xlu0 %v1049
    %v1051 = vpop.xlane.xlu0 %1050
    %v1052 = vmul.f32 %v1051, %v124
    %v1053 = vsub.f32 %v1044, %v1052
    %v1054 = vmul.f32 %v1053, %v1053
    %1056 = vrot.lane.b32.xlu0 %v1054, 64
    %v1057 = vpop.permute.xlu0 %1056
    %v1059 = vsel %vm111, %v1057, 0.0
    %1060 = vadd.xlane.f32.xlu0 %v1059
    %v1061 = vpop.xlane.xlu0 %1060
    %v1062 = vmul.f32 %v1061, %v124
    %v1063 = vadd.f32 %v1062, 1e-05
    %v1064 = vrsqrt.pop %v1063
    %v1065 = vmul.f32 %v1053, %v1064
    %1067 = vrot.lane.b32.xlu0 %v298, 64
    %v1068 = vpop.permute.xlu0 %1067
    %v1070 = vmul.f32 %v1065, %v1068
    %1072 = vrot.lane.b32.xlu0 %v302, 64
    %v1073 = vpop.permute.xlu0 %1072
    %v1075 = vadd.f32 %v1070, %v1073
    %1077 = vrot.lane.b32.xlu0 %v1075, 64
    %v1078 = vpop.permute.xlu0 %1077
    %v1079 = vsel %vm111, %v1078, 0
    %1081 = vmatprep.subr.mxu0 0.0
    %1082 = vmatpush1.msra.mxu0 %v392
    %1083 = vmatprep.subr.mxu0 0.0
    %1084 = vmatpush1.msra.mxu0 %v393
    %1085 = vmatprep.subr.mxu0 0.0
    %1086 = vmatpush1.msra.mxu0 %v394
    %1087 = vmatprep.subr.mxu0 0.0
    %1088 = vmatpush1.msra.mxu0 %v395
    %1089 = vmatprep.subr.mxu0 0.0
    %1090 = vmatpush1.msra.mxu0 %v396
    %1091 = vmatprep.subr.mxu0 0.0
    %1092 = vmatpush1.msra.mxu0 %v397
    %1093 = vmatprep.subr.mxu0 0.0
    %1094 = vmatpush1.msra.mxu0 %v398
    %1095 = vmatprep.subr.mxu0 0.0
    %1096 = vmatpush1.msra.mxu0 %v399
    %1097 = vmatprep.subr.mxu0 0.0
    %1098 = vmatpush1.msra.mxu0 0.0
    %1099 = vmatprep.subr.mxu0 0.0
    %1100 = vmatpush1.msra.mxu0 0.0
    %1101 = vmatprep.subr.mxu0 0.0
    %1102 = vmatpush1.msra.mxu0 0.0
    %1103 = vmatprep.subr.mxu0 0.0
    %1104 = vmatpush1.msra.mxu0 0.0
    %1105 = vmatprep.subr.mxu0 0.0
    %1106 = vmatpush1.msra.mxu0 0.0
    %1107 = vmatprep.subr.mxu0 0.0
    %1108 = vmatpush1.msra.mxu0 0.0
    %1109 = vmatprep.subr.mxu0 0.0
    %1110 = vmatpush1.msra.mxu0 0.0
    %1111 = vmatprep.subr.mxu0 0.0
    %1112 = vmatpush1.msra.mxu0 0.0
    %1113 = vmatprep.subr.mxu0 0.0
    %1114 = vmatpush1.msra.mxu0 0.0
    %1115 = vmatprep.subr.mxu0 0.0
    %1116 = vmatpush1.msra.mxu0 0.0
    %1117 = vmatprep.subr.mxu0 0.0
    %1118 = vmatpush1.msra.mxu0 0.0
    %1119 = vmatprep.subr.mxu0 0.0
    %1120 = vmatpush1.msra.mxu0 0.0
    %1121 = vmatprep.subr.mxu0 0.0
    %1122 = vmatpush1.msra.mxu0 0.0
    %1123 = vmatprep.subr.mxu0 0.0
    %1124 = vmatpush1.msra.mxu0 0.0
    %1125 = vmatprep.subr.mxu0 0.0
    %1126 = vmatpush1.msra.mxu0 0.0
    %1127 = vmatprep.subr.mxu0 0.0
    %1128 = vmatpush1.msra.mxu0 0.0
    %1129 = vmatprep.subr.mxu0 0.0
    %1130 = vmatpush1.msra.mxu0 0.0
    %1131 = vmatprep.subr.mxu0 0.0
    %1132 = vmatpush1.msra.mxu0 0.0
    %1133 = vmatprep.subr.mxu0 0.0
    %1134 = vmatpush1.msra.mxu0 0.0
    %1135 = vmatprep.subr.mxu0 0.0
    %1136 = vmatpush1.msra.mxu0 0.0
    %1137 = vmatprep.subr.mxu0 0.0
    %1138 = vmatpush1.msra.mxu0 0.0
    %1139 = vmatprep.subr.mxu0 0.0
    %1140 = vmatpush1.msra.mxu0 0.0
    %1141 = vmatprep.subr.mxu0 0.0
    %1142 = vmatpush1.msra.mxu0 0.0
    %1143 = vmatprep.subr.mxu0 0.0
    %1144 = vmatpush1.msra.mxu0 0.0
    %1145 = vmatprep.mubr.f32.mxu0 0.0
    %1146 = vmatmul.mubr.f32.gmra.mrb[0].mxu0 %v1079
    %v1147 = vpop.f32.mrb[0].mxu0
    %v1148 = vadd.f32 %v350, %v1147
    %v1149 = vpop.f32.mrb[0].mxu0
    %1150 = vdwg.mxu0
    %v1151 = vmax.f32 %v1148, 0.0
    %1152 = vmatprep.subr.mxu0 0.0
    %1153 = vmatpush1.msra.mxu0 %v400
    %1154 = vmatprep.subr.mxu0 0.0
    %1155 = vmatpush1.msra.mxu0 %v401
    %1156 = vmatprep.subr.mxu0 0.0
    %1157 = vmatpush1.msra.mxu0 %v402
    %1158 = vmatprep.subr.mxu0 0.0
    %1159 = vmatpush1.msra.mxu0 %v403
    %1160 = vmatprep.subr.mxu0 0.0
    %1161 = vmatpush1.msra.mxu0 %v404
    %1162 = vmatprep.subr.mxu0 0.0
    %1163 = vmatpush1.msra.mxu0 %v405
    %1164 = vmatprep.subr.mxu0 0.0
    %1165 = vmatpush1.msra.mxu0 %v406
    %1166 = vmatprep.subr.mxu0 0.0
    %1167 = vmatpush1.msra.mxu0 %v407
    %1168 = vmatprep.subr.mxu0 0.0
    %1169 = vmatpush1.msra.mxu0 %v408
    %1170 = vmatprep.subr.mxu0 0.0
    %1171 = vmatpush1.msra.mxu0 %v409
    %1172 = vmatprep.subr.mxu0 0.0
    %1173 = vmatpush1.msra.mxu0 %v410
    %1174 = vmatprep.subr.mxu0 0.0
    %1175 = vmatpush1.msra.mxu0 %v411
    %1176 = vmatprep.subr.mxu0 0.0
    %1177 = vmatpush1.msra.mxu0 %v412
    %1178 = vmatprep.subr.mxu0 0.0
    %1179 = vmatpush1.msra.mxu0 %v413
    %1180 = vmatprep.subr.mxu0 0.0
    %1181 = vmatpush1.msra.mxu0 %v414
    %1182 = vmatprep.subr.mxu0 0.0
    %1183 = vmatpush1.msra.mxu0 %v415
    %1184 = vmatprep.subr.mxu0 0.0
    %1185 = vmatpush1.msra.mxu0 0.0
    %1186 = vmatprep.subr.mxu0 0.0
    %1187 = vmatpush1.msra.mxu0 0.0
    %1188 = vmatprep.subr.mxu0 0.0
    %1189 = vmatpush1.msra.mxu0 0.0
    %1190 = vmatprep.subr.mxu0 0.0
    %1191 = vmatpush1.msra.mxu0 0.0
    %1192 = vmatprep.subr.mxu0 0.0
    %1193 = vmatpush1.msra.mxu0 0.0
    %1194 = vmatprep.subr.mxu0 0.0
    %1195 = vmatpush1.msra.mxu0 0.0
    %1196 = vmatprep.subr.mxu0 0.0
    %1197 = vmatpush1.msra.mxu0 0.0
    %1198 = vmatprep.subr.mxu0 0.0
    %1199 = vmatpush1.msra.mxu0 0.0
    %1200 = vmatprep.subr.mxu0 0.0
    %1201 = vmatpush1.msra.mxu0 0.0
    %1202 = vmatprep.subr.mxu0 0.0
    %1203 = vmatpush1.msra.mxu0 0.0
    %1204 = vmatprep.subr.mxu0 0.0
    %1205 = vmatpush1.msra.mxu0 0.0
    %1206 = vmatprep.subr.mxu0 0.0
    %1207 = vmatpush1.msra.mxu0 0.0
    %1208 = vmatprep.subr.mxu0 0.0
    %1209 = vmatpush1.msra.mxu0 0.0
    %1210 = vmatprep.subr.mxu0 0.0
    %1211 = vmatpush1.msra.mxu0 0.0
    %1212 = vmatprep.subr.mxu0 0.0
    %1213 = vmatpush1.msra.mxu0 0.0
    %1214 = vmatprep.subr.mxu0 0.0
    %1215 = vmatpush1.msra.mxu0 0.0
    %1216 = vmatprep.mubr.f32.mxu0 0.0
    %1217 = vmatmul.mubr.f32.gmra.mrb[0].mxu0 %v1151
    %v1218 = vpop.f32.mrb[0].mxu0
    %v1219 = vadd.f32 0.0, %v1218
    %v1220 = vpop.f32.mrb[0].mxu0
    %1221 = vdwg.mxu0
    %1223 = vrot.lane.b32.xlu0 %v1219, 64
    %v1224 = vpop.permute.xlu0 %1223
    %v1226 = vadd.f32 %v1075, %v1224
    %1228 = vrot.lane.b32.xlu0 %v306, 64
    %v1229 = vpop.permute.xlu0 %1228
    %v1231 = vadd.f32 %v1226, %v1229
    %1233 = vrot.lane.b32.xlu0 %v1231, 64
    %v1234 = vpop.permute.xlu0 %1233
    %v1236 = vsel %vm111, %v1234, 0.0
    %1237 = vadd.xlane.f32.xlu0 %v1236
    %v1238 = vpop.xlane.xlu0 %1237
    %v1239 = vmul.f32 %v1238, %v124
    %v1240 = vsub.f32 %v1231, %v1239
    %v1241 = vmul.f32 %v1240, %v1240
    %1243 = vrot.lane.b32.xlu0 %v1241, 64
    %v1244 = vpop.permute.xlu0 %1243
    %v1246 = vsel %vm111, %v1244, 0.0
    %1247 = vadd.xlane.f32.xlu0 %v1246
    %v1248 = vpop.xlane.xlu0 %1247
    %v1249 = vmul.f32 %v1248, %v124
    %v1250 = vadd.f32 %v1249, 1e-05
    %v1251 = vrsqrt.pop %v1250
    %v1252 = vmul.f32 %v1240, %v1251
    %1254 = vrot.lane.b32.xlu0 %v290, 64
    %v1255 = vpop.permute.xlu0 %1254
    %v1257 = vmul.f32 %v1252, %v1255
    %1259 = vrot.lane.b32.xlu0 %v294, 64
    %v1260 = vpop.permute.xlu0 %1259
    %v1262 = vadd.f32 %v1257, %v1260
    %1264 = vrot.lane.b32.xlu0 %v1262, 64
    %v1265 = vpop.permute.xlu0 %1264
    %v1266 = vsel %vm111, %v1265, 0
    %1268 = vmatprep.subr.mxu0 0.0
    %1269 = vmatpush1.msra.mxu0 %v352
    %1270 = vmatprep.subr.mxu0 0.0
    %1271 = vmatpush1.msra.mxu0 %v353
    %1272 = vmatprep.subr.mxu0 0.0
    %1273 = vmatpush1.msra.mxu0 %v354
    %1274 = vmatprep.subr.mxu0 0.0
    %1275 = vmatpush1.msra.mxu0 %v355
    %1276 = vmatprep.subr.mxu0 0.0
    %1277 = vmatpush1.msra.mxu0 %v356
    %1278 = vmatprep.subr.mxu0 0.0
    %1279 = vmatpush1.msra.mxu0 %v357
    %1280 = vmatprep.subr.mxu0 0.0
    %1281 = vmatpush1.msra.mxu0 %v358
    %1282 = vmatprep.subr.mxu0 0.0
    %1283 = vmatpush1.msra.mxu0 %v359
    %1284 = vmatprep.subr.mxu0 0.0
    %1285 = vmatpush1.msra.mxu0 0.0
    %1286 = vmatprep.subr.mxu0 0.0
    %1287 = vmatpush1.msra.mxu0 0.0
    %1288 = vmatprep.subr.mxu0 0.0
    %1289 = vmatpush1.msra.mxu0 0.0
    %1290 = vmatprep.subr.mxu0 0.0
    %1291 = vmatpush1.msra.mxu0 0.0
    %1292 = vmatprep.subr.mxu0 0.0
    %1293 = vmatpush1.msra.mxu0 0.0
    %1294 = vmatprep.subr.mxu0 0.0
    %1295 = vmatpush1.msra.mxu0 0.0
    %1296 = vmatprep.subr.mxu0 0.0
    %1297 = vmatpush1.msra.mxu0 0.0
    %1298 = vmatprep.subr.mxu0 0.0
    %1299 = vmatpush1.msra.mxu0 0.0
    %1300 = vmatprep.subr.mxu0 0.0
    %1301 = vmatpush1.msra.mxu0 0.0
    %1302 = vmatprep.subr.mxu0 0.0
    %1303 = vmatpush1.msra.mxu0 0.0
    %1304 = vmatprep.subr.mxu0 0.0
    %1305 = vmatpush1.msra.mxu0 0.0
    %1306 = vmatprep.subr.mxu0 0.0
    %1307 = vmatpush1.msra.mxu0 0.0
    %1308 = vmatprep.subr.mxu0 0.0
    %1309 = vmatpush1.msra.mxu0 0.0
    %1310 = vmatprep.subr.mxu0 0.0
    %1311 = vmatpush1.msra.mxu0 0.0
    %1312 = vmatprep.subr.mxu0 0.0
    %1313 = vmatpush1.msra.mxu0 0.0
    %1314 = vmatprep.subr.mxu0 0.0
    %1315 = vmatpush1.msra.mxu0 0.0
    %1316 = vmatprep.subr.mxu0 0.0
    %1317 = vmatpush1.msra.mxu0 0.0
    %1318 = vmatprep.subr.mxu0 0.0
    %1319 = vmatpush1.msra.mxu0 0.0
    %1320 = vmatprep.subr.mxu0 0.0
    %1321 = vmatpush1.msra.mxu0 0.0
    %1322 = vmatprep.subr.mxu0 0.0
    %1323 = vmatpush1.msra.mxu0 0.0
    %1324 = vmatprep.subr.mxu0 0.0
    %1325 = vmatpush1.msra.mxu0 0.0
    %1326 = vmatprep.subr.mxu0 0.0
    %1327 = vmatpush1.msra.mxu0 0.0
    %1328 = vmatprep.subr.mxu0 0.0
    %1329 = vmatpush1.msra.mxu0 0.0
    %1330 = vmatprep.subr.mxu0 0.0
    %1331 = vmatpush1.msra.mxu0 0.0
    %1332 = vmatprep.mubr.f32.mxu0 0.0
    %1333 = vmatmul.mubr.f32.gmra.mrb[0].mxu0 %v1266
    %v1334 = vpop.f32.mrb[0].mxu0
    %v1335 = vadd.f32 0.0, %v1334
    %v1336 = vpop.f32.mrb[0].mxu0
    %1337 = vdwg.mxu0
    %v1339 = vsel %vm111, %v1335, 0
    %1341 = vmatprep.subr.mxu0 0.0
    %1342 = vmatpush1.xpose.msra.mxu0 %v508
    %1343 = vmatprep.subr.mxu0 0.0
    %1344 = vmatpush1.xpose.msra.mxu0 %v511
    %1345 = vmatprep.subr.mxu0 0.0
    %1346 = vmatpush1.xpose.msra.mxu0 0.0
    %1347 = vmatprep.subr.mxu0 0.0
    %1348 = vmatpush1.xpose.msra.mxu0 0.0
    %1349 = vmatprep.subr.mxu0 0.0
    %1350 = vmatpush1.xpose.msra.mxu0 0.0
    %1351 = vmatprep.subr.mxu0 0.0
    %1352 = vmatpush1.xpose.msra.mxu0 0.0
    %1353 = vmatprep.subr.mxu0 0.0
    %1354 = vmatpush1.xpose.msra.mxu0 0.0
    %1355 = vmatprep.subr.mxu0 0.0
    %1356 = vmatpush1.xpose.msra.mxu0 0.0
    %1357 = vmatprep.subr.mxu0 0.0
    %1358 = vmatpush1.xpose.msra.mxu0 0.0
    %1359 = vmatprep.subr.mxu0 0.0
    %1360 = vmatpush1.xpose.msra.mxu0 0.0
    %1361 = vmatprep.subr.mxu0 0.0
    %1362 = vmatpush1.xpose.msra.mxu0 0.0
    %1363 = vmatprep.subr.mxu0 0.0
    %1364 = vmatpush1.xpose.msra.mxu0 0.0
    %1365 = vmatprep.subr.mxu0 0.0
    %1366 = vmatpush1.xpose.msra.mxu0 0.0
    %1367 = vmatprep.subr.mxu0 0.0
    %1368 = vmatpush1.xpose.msra.mxu0 0.0
    %1369 = vmatprep.subr.mxu0 0.0
    %1370 = vmatpush1.xpose.msra.mxu0 0.0
    %1371 = vmatprep.subr.mxu0 0.0
    %1372 = vmatpush1.xpose.msra.mxu0 0.0
    %1373 = vmatprep.subr.mxu0 0.0
    %1374 = vmatpush1.xpose.msra.mxu0 0.0
    %1375 = vmatprep.subr.mxu0 0.0
    %1376 = vmatpush1.xpose.msra.mxu0 0.0
    %1377 = vmatprep.subr.mxu0 0.0
    %1378 = vmatpush1.xpose.msra.mxu0 0.0
    %1379 = vmatprep.subr.mxu0 0.0
    %1380 = vmatpush1.xpose.msra.mxu0 0.0
    %1381 = vmatprep.subr.mxu0 0.0
    %1382 = vmatpush1.xpose.msra.mxu0 0.0
    %1383 = vmatprep.subr.mxu0 0.0
    %1384 = vmatpush1.xpose.msra.mxu0 0.0
    %1385 = vmatprep.subr.mxu0 0.0
    %1386 = vmatpush1.xpose.msra.mxu0 0.0
    %1387 = vmatprep.subr.mxu0 0.0
    %1388 = vmatpush1.xpose.msra.mxu0 0.0
    %1389 = vmatprep.subr.mxu0 0.0
    %1390 = vmatpush1.xpose.msra.mxu0 0.0
    %1391 = vmatprep.subr.mxu0 0.0
    %1392 = vmatpush1.xpose.msra.mxu0 0.0
    %1393 = vmatprep.subr.mxu0 0.0
    %1394 = vmatpush1.xpose.msra.mxu0 0.0
    %1395 = vmatprep.subr.mxu0 0.0
    %1396 = vmatpush1.xpose.msra.mxu0 0.0
    %1397 = vmatprep.subr.mxu0 0.0
    %1398 = vmatpush1.xpose.msra.mxu0 0.0
    %1399 = vmatprep.subr.mxu0 0.0
    %1400 = vmatpush1.xpose.msra.mxu0 0.0
    %1401 = vmatprep.subr.mxu0 0.0
    %1402 = vmatpush1.xpose.msra.mxu0 0.0
    %1403 = vmatprep.subr.mxu0 0.0
    %1404 = vmatpush1.xpose.msra.mxu0 0.0
    %1405 = vmatprep.mubr.f32.mxu0 0.0
    %1406 = vmatmul.mubr.f32.gmra.mrb[0].mxu0 %v1339
    %v1407 = vpop.f32.mrb[0].mxu0
    %v1408 = vadd.f32 0.0, %v1407
    %v1409 = vpop.f32.mrb[0].mxu0
    %1410 = vdwg.mxu0
    %v1411 = vsel %vm583, %v1408, -inf
    %v1412 = vrot.slane %v1411, 4
    %v1413 = vmax.f32 %v1411, %v1412
    %v1414 = vrot.slane %v1413, 2
    %v1415 = vmax.f32 %v1413, %v1414
    %v1416 = vrot.slane %v1415, 1
    %v1417 = vmax.f32 %v1415, %v1416
    %v1418 = vsub.f32 %v1408, %v1417
    %v1419 = vmul.f32 %v1418, 1.442695
    %v1420 = vpow.pop %v1419
    %v1421 = vsel %vm583, %v1420, 0.0
    %v1422 = vrot.slane %v1421, 4
    %v1423 = vadd.f32 %v1421, %v1422
    %v1424 = vrot.slane %v1423, 2
    %v1425 = vadd.f32 %v1423, %v1424
    %v1426 = vrot.slane %v1425, 1
    %v1427 = vadd.f32 %v1425, %v1426
    %v1428 = vrcp.pop %v1427
    %v1429 = vmul.f32 %v1420, %v1428
    %v1430 = vadd.f32 %v1429, 1e-08
    %v1431 = vsel %vm583, %v1430, 0.0
    %1432 = vadd.xlane.f32.xlu0 %v1431
    %v1433 = vpop.xlane.xlu0 %1432
    %v1434 = vrcp.pop %v1433
    %v1435 = vmul.f32 %v1430, %v1434
    %v1437 = vsel %vm615, %v1435, 0
    %1439 = vmatprep.subr.mxu0 0.0
    %1440 = vmatpush1.msra.mxu0 %v610
    %1441 = vmatprep.subr.mxu0 0.0
    %1442 = vmatpush1.msra.mxu0 %v612
    %1443 = vmatprep.subr.mxu0 0.0
    %1444 = vmatpush1.msra.mxu0 0.0
    %1445 = vmatprep.subr.mxu0 0.0
    %1446 = vmatpush1.msra.mxu0 0.0
    %1447 = vmatprep.subr.mxu0 0.0
    %1448 = vmatpush1.msra.mxu0 0.0
    %1449 = vmatprep.subr.mxu0 0.0
    %1450 = vmatpush1.msra.mxu0 0.0
    %1451 = vmatprep.subr.mxu0 0.0
    %1452 = vmatpush1.msra.mxu0 0.0
    %1453 = vmatprep.subr.mxu0 0.0
    %1454 = vmatpush1.msra.mxu0 0.0
    %1455 = vmatprep.subr.mxu0 0.0
    %1456 = vmatpush1.msra.mxu0 0.0
    %1457 = vmatprep.subr.mxu0 0.0
    %1458 = vmatpush1.msra.mxu0 0.0
    %1459 = vmatprep.subr.mxu0 0.0
    %1460 = vmatpush1.msra.mxu0 0.0
    %1461 = vmatprep.subr.mxu0 0.0
    %1462 = vmatpush1.msra.mxu0 0.0
    %1463 = vmatprep.subr.mxu0 0.0
    %1464 = vmatpush1.msra.mxu0 0.0
    %1465 = vmatprep.subr.mxu0 0.0
    %1466 = vmatpush1.msra.mxu0 0.0
    %1467 = vmatprep.subr.mxu0 0.0
    %1468 = vmatpush1.msra.mxu0 0.0
    %1469 = vmatprep.subr.mxu0 0.0
    %1470 = vmatpush1.msra.mxu0 0.0
    %1471 = vmatprep.subr.mxu0 0.0
    %1472 = vmatpush1.msra.mxu0 0.0
    %1473 = vmatprep.subr.mxu0 0.0
    %1474 = vmatpush1.msra.mxu0 0.0
    %1475 = vmatprep.subr.mxu0 0.0
    %1476 = vmatpush1.msra.mxu0 0.0
    %1477 = vmatprep.subr.mxu0 0.0
    %1478 = vmatpush1.msra.mxu0 0.0
    %1479 = vmatprep.subr.mxu0 0.0
    %1480 = vmatpush1.msra.mxu0 0.0
    %1481 = vmatprep.subr.mxu0 0.0
    %1482 = vmatpush1.msra.mxu0 0.0
    %1483 = vmatprep.subr.mxu0 0.0
    %1484 = vmatpush1.msra.mxu0 0.0
    %1485 = vmatprep.subr.mxu0 0.0
    %1486 = vmatpush1.msra.mxu0 0.0
    %1487 = vmatprep.subr.mxu0 0.0
    %1488 = vmatpush1.msra.mxu0 0.0
    %1489 = vmatprep.subr.mxu0 0.0
    %1490 = vmatpush1.msra.mxu0 0.0
    %1491 = vmatprep.subr.mxu0 0.0
    %1492 = vmatpush1.msra.mxu0 0.0
    %1493 = vmatprep.subr.mxu0 0.0
    %1494 = vmatpush1.msra.mxu0 0.0
    %1495 = vmatprep.subr.mxu0 0.0
    %1496 = vmatpush1.msra.mxu0 0.0
    %1497 = vmatprep.subr.mxu0 0.0
    %1498 = vmatpush1.msra.mxu0 0.0
    %1499 = vmatprep.subr.mxu0 0.0
    %1500 = vmatpush1.msra.mxu0 0.0
    %1501 = vmatprep.subr.mxu0 0.0
    %1502 = vmatpush1.msra.mxu0 0.0
    %1503 = vmatprep.mubr.f32.mxu0 0.0
    %1504 = vmatmul.mubr.f32.gmra.mrb[0].mxu0 %v1437
    %v1505 = vpop.f32.mrb[0].mxu0
    %v1506 = vadd.f32 0.0, %v1505
    %v1507 = vpop.f32.mrb[0].mxu0
    %1508 = vdwg.mxu0
    %v1509 = vrot.slane %v1335, 4
    %v1510 = vsel %vm111, %v1509, 0
    %1512 = vmatprep.subr.mxu0 0.0
    %1513 = vmatpush1.xpose.msra.mxu0 %v693
    %1514 = vmatprep.subr.mxu0 0.0
    %1515 = vmatpush1.xpose.msra.mxu0 %v696
    %1516 = vmatprep.subr.mxu0 0.0
    %1517 = vmatpush1.xpose.msra.mxu0 0.0
    %1518 = vmatprep.subr.mxu0 0.0
    %1519 = vmatpush1.xpose.msra.mxu0 0.0
    %1520 = vmatprep.subr.mxu0 0.0
    %1521 = vmatpush1.xpose.msra.mxu0 0.0
    %1522 = vmatprep.subr.mxu0 0.0
    %1523 = vmatpush1.xpose.msra.mxu0 0.0
    %1524 = vmatprep.subr.mxu0 0.0
    %1525 = vmatpush1.xpose.msra.mxu0 0.0
    %1526 = vmatprep.subr.mxu0 0.0
    %1527 = vmatpush1.xpose.msra.mxu0 0.0
    %1528 = vmatprep.subr.mxu0 0.0
    %1529 = vmatpush1.xpose.msra.mxu0 0.0
    %1530 = vmatprep.subr.mxu0 0.0
    %1531 = vmatpush1.xpose.msra.mxu0 0.0
    %1532 = vmatprep.subr.mxu0 0.0
    %1533 = vmatpush1.xpose.msra.mxu0 0.0
    %1534 = vmatprep.subr.mxu0 0.0
    %1535 = vmatpush1.xpose.msra.mxu0 0.0
    %1536 = vmatprep.subr.mxu0 0.0
    %1537 = vmatpush1.xpose.msra.mxu0 0.0
    %1538 = vmatprep.subr.mxu0 0.0
    %1539 = vmatpush1.xpose.msra.mxu0 0.0
    %1540 = vmatprep.subr.mxu0 0.0
    %1541 = vmatpush1.xpose.msra.mxu0 0.0
    %1542 = vmatprep.subr.mxu0 0.0
    %1543 = vmatpush1.xpose.msra.mxu0 0.0
    %1544 = vmatprep.subr.mxu0 0.0
    %1545 = vmatpush1.xpose.msra.mxu0 0.0
    %1546 = vmatprep.subr.mxu0 0.0
    %1547 = vmatpush1.xpose.msra.mxu0 0.0
    %1548 = vmatprep.subr.mxu0 0.0
    %1549 = vmatpush1.xpose.msra.mxu0 0.0
    %1550 = vmatprep.subr.mxu0 0.0
    %1551 = vmatpush1.xpose.msra.mxu0 0.0
    %1552 = vmatprep.subr.mxu0 0.0
    %1553 = vmatpush1.xpose.msra.mxu0 0.0
    %1554 = vmatprep.subr.mxu0 0.0
    %1555 = vmatpush1.xpose.msra.mxu0 0.0
    %1556 = vmatprep.subr.mxu0 0.0
    %1557 = vmatpush1.xpose.msra.mxu0 0.0
    %1558 = vmatprep.subr.mxu0 0.0
    %1559 = vmatpush1.xpose.msra.mxu0 0.0
    %1560 = vmatprep.subr.mxu0 0.0
    %1561 = vmatpush1.xpose.msra.mxu0 0.0
    %1562 = vmatprep.subr.mxu0 0.0
    %1563 = vmatpush1.xpose.msra.mxu0 0.0
    %1564 = vmatprep.subr.mxu0 0.0
    %1565 = vmatpush1.xpose.msra.mxu0 0.0
    %1566 = vmatprep.subr.mxu0 0.0
    %1567 = vmatpush1.xpose.msra.mxu0 0.0
    %1568 = vmatprep.subr.mxu0 0.0
    %1569 = vmatpush1.xpose.msra.mxu0 0.0
    %1570 = vmatprep.subr.mxu0 0.0
    %1571 = vmatpush1.xpose.msra.mxu0 0.0
    %1572 = vmatprep.subr.mxu0 0.0
    %1573 = vmatpush1.xpose.msra.mxu0 0.0
    %1574 = vmatprep.subr.mxu0 0.0
    %1575 = vmatpush1.xpose.msra.mxu0 0.0
    %1576 = vmatprep.mubr.f32.mxu0 0.0
    %1577 = vmatmul.mubr.f32.gmra.mrb[0].mxu0 %v1510
    %v1578 = vpop.f32.mrb[0].mxu0
    %v1579 = vadd.f32 0.0, %v1578
    %v1580 = vpop.f32.mrb[0].mxu0
    %1581 = vdwg.mxu0
    %v1582 = vsel %vm583, %v1579, -inf
    %v1583 = vrot.slane %v1582, 4
    %v1584 = vmax.f32 %v1582, %v1583
    %v1585 = vrot.slane %v1584, 2
    %v1586 = vmax.f32 %v1584, %v1585
    %v1587 = vrot.slane %v1586, 1
    %v1588 = vmax.f32 %v1586, %v1587
    %v1589 = vsub.f32 %v1579, %v1588
    %v1590 = vmul.f32 %v1589, 1.442695
    %v1591 = vpow.pop %v1590
    %v1592 = vsel %vm583, %v1591, 0.0
    %v1593 = vrot.slane %v1592, 4
    %v1594 = vadd.f32 %v1592, %v1593
    %v1595 = vrot.slane %v1594, 2
    %v1596 = vadd.f32 %v1594, %v1595
    %v1597 = vrot.slane %v1596, 1
    %v1598 = vadd.f32 %v1596, %v1597
    %v1599 = vrcp.pop %v1598
    %v1600 = vmul.f32 %v1591, %v1599
    %v1601 = vadd.f32 %v1600, 1e-08
    %v1602 = vsel %vm583, %v1601, 0.0
    %1603 = vadd.xlane.f32.xlu0 %v1602
    %v1604 = vpop.xlane.xlu0 %1603
    %v1605 = vrcp.pop %v1604
    %v1606 = vmul.f32 %v1601, %v1605
    %v1608 = vsel %vm615, %v1606, 0
    %1610 = vmatprep.subr.mxu0 0.0
    %1611 = vmatpush1.msra.mxu0 %v794
    %1612 = vmatprep.subr.mxu0 0.0
    %1613 = vmatpush1.msra.mxu0 %v796
    %1614 = vmatprep.subr.mxu0 0.0
    %1615 = vmatpush1.msra.mxu0 0.0
    %1616 = vmatprep.subr.mxu0 0.0
    %1617 = vmatpush1.msra.mxu0 0.0
    %1618 = vmatprep.subr.mxu0 0.0
    %1619 = vmatpush1.msra.mxu0 0.0
    %1620 = vmatprep.subr.mxu0 0.0
    %1621 = vmatpush1.msra.mxu0 0.0
    %1622 = vmatprep.subr.mxu0 0.0
    %1623 = vmatpush1.msra.mxu0 0.0
    %1624 = vmatprep.subr.mxu0 0.0
    %1625 = vmatpush1.msra.mxu0 0.0
    %1626 = vmatprep.subr.mxu0 0.0
    %1627 = vmatpush1.msra.mxu0 0.0
    %1628 = vmatprep.subr.mxu0 0.0
    %1629 = vmatpush1.msra.mxu0 0.0
    %1630 = vmatprep.subr.mxu0 0.0
    %1631 = vmatpush1.msra.mxu0 0.0
    %1632 = vmatprep.subr.mxu0 0.0
    %1633 = vmatpush1.msra.mxu0 0.0
    %1634 = vmatprep.subr.mxu0 0.0
    %1635 = vmatpush1.msra.mxu0 0.0
    %1636 = vmatprep.subr.mxu0 0.0
    %1637 = vmatpush1.msra.mxu0 0.0
    %1638 = vmatprep.subr.mxu0 0.0
    %1639 = vmatpush1.msra.mxu0 0.0
    %1640 = vmatprep.subr.mxu0 0.0
    %1641 = vmatpush1.msra.mxu0 0.0
    %1642 = vmatprep.subr.mxu0 0.0
    %1643 = vmatpush1.msra.mxu0 0.0
    %1644 = vmatprep.subr.mxu0 0.0
    %1645 = vmatpush1.msra.mxu0 0.0
    %1646 = vmatprep.subr.mxu0 0.0
    %1647 = vmatpush1.msra.mxu0 0.0
    %1648 = vmatprep.subr.mxu0 0.0
    %1649 = vmatpush1.msra.mxu0 0.0
    %1650 = vmatprep.subr.mxu0 0.0
    %1651 = vmatpush1.msra.mxu0 0.0
    %1652 = vmatprep.subr.mxu0 0.0
    %1653 = vmatpush1.msra.mxu0 0.0
    %1654 = vmatprep.subr.mxu0 0.0
    %1655 = vmatpush1.msra.mxu0 0.0
    %1656 = vmatprep.subr.mxu0 0.0
    %1657 = vmatpush1.msra.mxu0 0.0
    %1658 = vmatprep.subr.mxu0 0.0
    %1659 = vmatpush1.msra.mxu0 0.0
    %1660 = vmatprep.subr.mxu0 0.0
    %1661 = vmatpush1.msra.mxu0 0.0
    %1662 = vmatprep.subr.mxu0 0.0
    %1663 = vmatpush1.msra.mxu0 0.0
    %1664 = vmatprep.subr.mxu0 0.0
    %1665 = vmatpush1.msra.mxu0 0.0
    %1666 = vmatprep.subr.mxu0 0.0
    %1667 = vmatpush1.msra.mxu0 0.0
    %1668 = vmatprep.subr.mxu0 0.0
    %1669 = vmatpush1.msra.mxu0 0.0
    %1670 = vmatprep.subr.mxu0 0.0
    %1671 = vmatpush1.msra.mxu0 0.0
    %1672 = vmatprep.subr.mxu0 0.0
    %1673 = vmatpush1.msra.mxu0 0.0
    %1674 = vmatprep.mubr.f32.mxu0 0.0
    %1675 = vmatmul.mubr.f32.gmra.mrb[0].mxu0 %v1608
    %v1676 = vpop.f32.mrb[0].mxu0
    %v1677 = vadd.f32 0.0, %v1676
    %v1678 = vpop.f32.mrb[0].mxu0
    %1679 = vdwg.mxu0
    %v1681 = vrot.slane %v1677, 4
    %v1683 = vsel %vm108, %v1506, %v1681
    %v1685 = vsel %vm111, %v1683, 0
    %1687 = vmatprep.subr.mxu0 %v361
    %1688 = vmatpush1.msra.mxu0 %v360
    %1689 = vmatprep.subr.mxu0 %v363
    %1690 = vmatpush1.msra.mxu0 %v362
    %1691 = vmatprep.subr.mxu0 %v365
    %1692 = vmatpush1.msra.mxu0 %v364
    %1693 = vmatprep.subr.mxu0 %v367
    %1694 = vmatpush1.msra.mxu0 %v366
    %1695 = vmatprep.subr.mxu0 %v369
    %1696 = vmatpush1.msra.mxu0 %v368
    %1697 = vmatprep.subr.mxu0 %v371
    %1698 = vmatpush1.msra.mxu0 %v370
    %1699 = vmatprep.subr.mxu0 %v373
    %1700 = vmatpush1.msra.mxu0 %v372
    %1701 = vmatprep.subr.mxu0 %v375
    %1702 = vmatpush1.msra.mxu0 %v374
    %1703 = vmatprep.subr.mxu0 0.0
    %1704 = vmatpush1.msra.mxu0 0.0
    %1705 = vmatprep.subr.mxu0 0.0
    %1706 = vmatpush1.msra.mxu0 0.0
    %1707 = vmatprep.subr.mxu0 0.0
    %1708 = vmatpush1.msra.mxu0 0.0
    %1709 = vmatprep.subr.mxu0 0.0
    %1710 = vmatpush1.msra.mxu0 0.0
    %1711 = vmatprep.subr.mxu0 0.0
    %1712 = vmatpush1.msra.mxu0 0.0
    %1713 = vmatprep.subr.mxu0 0.0
    %1714 = vmatpush1.msra.mxu0 0.0
    %1715 = vmatprep.subr.mxu0 0.0
    %1716 = vmatpush1.msra.mxu0 0.0
    %1717 = vmatprep.subr.mxu0 0.0
    %1718 = vmatpush1.msra.mxu0 0.0
    %1719 = vmatprep.subr.mxu0 0.0
    %1720 = vmatpush1.msra.mxu0 0.0
    %1721 = vmatprep.subr.mxu0 0.0
    %1722 = vmatpush1.msra.mxu0 0.0
    %1723 = vmatprep.subr.mxu0 0.0
    %1724 = vmatpush1.msra.mxu0 0.0
    %1725 = vmatprep.subr.mxu0 0.0
    %1726 = vmatpush1.msra.mxu0 0.0
    %1727 = vmatprep.subr.mxu0 0.0
    %1728 = vmatpush1.msra.mxu0 0.0
    %1729 = vmatprep.subr.mxu0 0.0
    %1730 = vmatpush1.msra.mxu0 0.0
    %1731 = vmatprep.subr.mxu0 0.0
    %1732 = vmatpush1.msra.mxu0 0.0
    %1733 = vmatprep.subr.mxu0 0.0
    %1734 = vmatpush1.msra.mxu0 0.0
    %1735 = vmatprep.subr.mxu0 0.0
    %1736 = vmatpush1.msra.mxu0 0.0
    %1737 = vmatprep.subr.mxu0 0.0
    %1738 = vmatpush1.msra.mxu0 0.0
    %1739 = vmatprep.subr.mxu0 0.0
    %1740 = vmatpush1.msra.mxu0 0.0
    %1741 = vmatprep.subr.mxu0 0.0
    %1742 = vmatpush1.msra.mxu0 0.0
    %1743 = vmatprep.subr.mxu0 0.0
    %1744 = vmatpush1.msra.mxu0 0.0
    %1745 = vmatprep.subr.mxu0 0.0
    %1746 = vmatpush1.msra.mxu0 0.0
    %1747 = vmatprep.subr.mxu0 0.0
    %1748 = vmatpush1.msra.mxu0 0.0
    %1749 = vmatprep.subr.mxu0 0.0
    %1750 = vmatpush1.msra.mxu0 0.0
    %1751 = vmatprep.mubr.f32.mxu0 0.0
    %1752 = vmatmul.mubr.f32.gmra.mrb[0].mxu0 %v1685
    %v1753 = vpop.f32.mrb[0].mxu0
    %v1754 = vadd.f32 %v322, %v1753
    %v1755 = vpop.f32.mrb[0].mxu0
    %v1756 = vadd.f32 %v326, %v1755
    %1757 = vdwg.mxu0
    %v1758 = vsel %vm111, %v1234, 0
    %1760 = vmatprep.subr.mxu0 %v377
    %1761 = vmatpush1.msra.mxu0 %v376
    %1762 = vmatprep.subr.mxu0 %v379
    %1763 = vmatpush1.msra.mxu0 %v378
    %1764 = vmatprep.subr.mxu0 %v381
    %1765 = vmatpush1.msra.mxu0 %v380
    %1766 = vmatprep.subr.mxu0 %v383
    %1767 = vmatpush1.msra.mxu0 %v382
    %1768 = vmatprep.subr.mxu0 %v385
    %1769 = vmatpush1.msra.mxu0 %v384
    %1770 = vmatprep.subr.mxu0 %v387
    %1771 = vmatpush1.msra.mxu0 %v386
    %1772 = vmatprep.subr.mxu0 %v389
    %1773 = vmatpush1.msra.mxu0 %v388
    %1774 = vmatprep.subr.mxu0 %v391
    %1775 = vmatpush1.msra.mxu0 %v390
    %1776 = vmatprep.subr.mxu0 0.0
    %1777 = vmatpush1.msra.mxu0 0.0
    %1778 = vmatprep.subr.mxu0 0.0
    %1779 = vmatpush1.msra.mxu0 0.0
    %1780 = vmatprep.subr.mxu0 0.0
    %1781 = vmatpush1.msra.mxu0 0.0
    %1782 = vmatprep.subr.mxu0 0.0
    %1783 = vmatpush1.msra.mxu0 0.0
    %1784 = vmatprep.subr.mxu0 0.0
    %1785 = vmatpush1.msra.mxu0 0.0
    %1786 = vmatprep.subr.mxu0 0.0
    %1787 = vmatpush1.msra.mxu0 0.0
    %1788 = vmatprep.subr.mxu0 0.0
    %1789 = vmatpush1.msra.mxu0 0.0
    %1790 = vmatprep.subr.mxu0 0.0
    %1791 = vmatpush1.msra.mxu0 0.0
    %1792 = vmatprep.subr.mxu0 0.0
    %1793 = vmatpush1.msra.mxu0 0.0
    %1794 = vmatprep.subr.mxu0 0.0
    %1795 = vmatpush1.msra.mxu0 0.0
    %1796 = vmatprep.subr.mxu0 0.0
    %1797 = vmatpush1.msra.mxu0 0.0
    %1798 = vmatprep.subr.mxu0 0.0
    %1799 = vmatpush1.msra.mxu0 0.0
    %1800 = vmatprep.subr.mxu0 0.0
    %1801 = vmatpush1.msra.mxu0 0.0
    %1802 = vmatprep.subr.mxu0 0.0
    %1803 = vmatpush1.msra.mxu0 0.0
    %1804 = vmatprep.subr.mxu0 0.0
    %1805 = vmatpush1.msra.mxu0 0.0
    %1806 = vmatprep.subr.mxu0 0.0
    %1807 = vmatpush1.msra.mxu0 0.0
    %1808 = vmatprep.subr.mxu0 0.0
    %1809 = vmatpush1.msra.mxu0 0.0
    %1810 = vmatprep.subr.mxu0 0.0
    %1811 = vmatpush1.msra.mxu0 0.0
    %1812 = vmatprep.subr.mxu0 0.0
    %1813 = vmatpush1.msra.mxu0 0.0
    %1814 = vmatprep.subr.mxu0 0.0
    %1815 = vmatpush1.msra.mxu0 0.0
    %1816 = vmatprep.subr.mxu0 0.0
    %1817 = vmatpush1.msra.mxu0 0.0
    %1818 = vmatprep.subr.mxu0 0.0
    %1819 = vmatpush1.msra.mxu0 0.0
    %1820 = vmatprep.subr.mxu0 0.0
    %1821 = vmatpush1.msra.mxu0 0.0
    %1822 = vmatprep.subr.mxu0 0.0
    %1823 = vmatpush1.msra.mxu0 0.0
    %1824 = vmatprep.mubr.f32.mxu0 0.0
    %1825 = vmatmul.mubr.f32.gmra.mrb[0].mxu0 %v1758
    %v1826 = vpop.f32.mrb[0].mxu0
    %v1827 = vadd.f32 %v340, %v1826
    %v1828 = vpop.f32.mrb[0].mxu0
    %v1829 = vadd.f32 %v344, %v1828
    %1830 = vdwg.mxu0
    %v1831 = vadd.f32 %v1754, %v1827
    %v1832 = vxor.u32 %v1831, 2147483648
    %v1833 = vmul.f32 %v1832, 1.442695
    %v1834 = vpow.pop %v1833
    %v1835 = vadd.f32 %v1834, 1.0
    %v1836 = vrcp.pop %v1835
    %v1837 = vmul.f32 1.0, %v1836
    %v1838 = vmul.f32 %v1837, %v1829
    %v1839 = vadd.f32 %v1756, %v1838
    %v1840 = vtanh.pop %v1839
    %v1841 = vsub.f32 1.0, %v1837
    %1843 = vrot.lane.b32.xlu0 %v1840, 64
    %v1844 = vpop.permute.xlu0 %1843
    %v1846 = vmul.f32 %v1841, %v1844
    %v1847 = vmul.f32 %v1837, %v1231
    %v1848 = vadd.f32 %v1846, %v1847
    %1850 = vrot.lane.b32.xlu0 %v1848, 64
    %v1851 = vpop.permute.xlu0 %1850
    %v1853 = vsel %vm111, %v1851, 0.0
    %1854 = vadd.xlane.f32.xlu0 %v1853
    %v1855 = vpop.xlane.xlu0 %1854
    %v1856 = vmul.f32 %v1855, %v124
    %v1857 = vsub.f32 %v1848, %v1856
    %v1858 = vmul.f32 %v1857, %v1857
    %1860 = vrot.lane.b32.xlu0 %v1858, 64
    %v1861 = vpop.permute.xlu0 %1860
    %v1863 = vsel %vm111, %v1861, 0.0
    %1864 = vadd.xlane.f32.xlu0 %v1863
    %v1865 = vpop.xlane.xlu0 %1864
    %v1866 = vmul.f32 %v1865, %v124
    %v1867 = vadd.f32 %v1866, 1e-05
    %v1868 = vrsqrt.pop %v1867
    %v1869 = vmul.f32 %v1857, %v1868
    %v1870 = vmul.f32 %v1869, %v1068
    %v1871 = vadd.f32 %v1870, %v1073
    %1873 = vrot.lane.b32.xlu0 %v1871, 64
    %v1874 = vpop.permute.xlu0 %1873
    %v1875 = vsel %vm111, %v1874, 0
    %1877 = vmatprep.subr.mxu0 0.0
    %1878 = vmatpush1.msra.mxu0 %v392
    %1879 = vmatprep.subr.mxu0 0.0
    %1880 = vmatpush1.msra.mxu0 %v393
    %1881 = vmatprep.subr.mxu0 0.0
    %1882 = vmatpush1.msra.mxu0 %v394
    %1883 = vmatprep.subr.mxu0 0.0
    %1884 = vmatpush1.msra.mxu0 %v395
    %1885 = vmatprep.subr.mxu0 0.0
    %1886 = vmatpush1.msra.mxu0 %v396
    %1887 = vmatprep.subr.mxu0 0.0
    %1888 = vmatpush1.msra.mxu0 %v397
    %1889 = vmatprep.subr.mxu0 0.0
    %1890 = vmatpush1.msra.mxu0 %v398
    %1891 = vmatprep.subr.mxu0 0.0
    %1892 = vmatpush1.msra.mxu0 %v399
    %1893 = vmatprep.subr.mxu0 0.0
    %1894 = vmatpush1.msra.mxu0 0.0
    %1895 = vmatprep.subr.mxu0 0.0
    %1896 = vmatpush1.msra.mxu0 0.0
    %1897 = vmatprep.subr.mxu0 0.0
    %1898 = vmatpush1.msra.mxu0 0.0
    %1899 = vmatprep.subr.mxu0 0.0
    %1900 = vmatpush1.msra.mxu0 0.0
    %1901 = vmatprep.subr.mxu0 0.0
    %1902 = vmatpush1.msra.mxu0 0.0
    %1903 = vmatprep.subr.mxu0 0.0
    %1904 = vmatpush1.msra.mxu0 0.0
    %1905 = vmatprep.subr.mxu0 0.0
    %1906 = vmatpush1.msra.mxu0 0.0
    %1907 = vmatprep.subr.mxu0 0.0
    %1908 = vmatpush1.msra.mxu0 0.0
    %1909 = vmatprep.subr.mxu0 0.0
    %1910 = vmatpush1.msra.mxu0 0.0
    %1911 = vmatprep.subr.mxu0 0.0
    %1912 = vmatpush1.msra.mxu0 0.0
    %1913 = vmatprep.subr.mxu0 0.0
    %1914 = vmatpush1.msra.mxu0 0.0
    %1915 = vmatprep.subr.mxu0 0.0
    %1916 = vmatpush1.msra.mxu0 0.0
    %1917 = vmatprep.subr.mxu0 0.0
    %1918 = vmatpush1.msra.mxu0 0.0
    %1919 = vmatprep.subr.mxu0 0.0
    %1920 = vmatpush1.msra.mxu0 0.0
    %1921 = vmatprep.subr.mxu0 0.0
    %1922 = vmatpush1.msra.mxu0 0.0
    %1923 = vmatprep.subr.mxu0 0.0
    %1924 = vmatpush1.msra.mxu0 0.0
    %1925 = vmatprep.subr.mxu0 0.0
    %1926 = vmatpush1.msra.mxu0 0.0
    %1927 = vmatprep.subr.mxu0 0.0
    %1928 = vmatpush1.msra.mxu0 0.0
    %1929 = vmatprep.subr.mxu0 0.0
    %1930 = vmatpush1.msra.mxu0 0.0
    %1931 = vmatprep.subr.mxu0 0.0
    %1932 = vmatpush1.msra.mxu0 0.0
    %1933 = vmatprep.subr.mxu0 0.0
    %1934 = vmatpush1.msra.mxu0 0.0
    %1935 = vmatprep.subr.mxu0 0.0
    %1936 = vmatpush1.msra.mxu0 0.0
    %1937 = vmatprep.subr.mxu0 0.0
    %1938 = vmatpush1.msra.mxu0 0.0
    %1939 = vmatprep.subr.mxu0 0.0
    %1940 = vmatpush1.msra.mxu0 0.0
    %1941 = vmatprep.mubr.f32.mxu0 0.0
    %1942 = vmatmul.mubr.f32.gmra.mrb[0].mxu0 %v1875
    %v1943 = vpop.f32.mrb[0].mxu0
    %v1944 = vadd.f32 %v350, %v1943
    %v1945 = vpop.f32.mrb[0].mxu0
    %1946 = vdwg.mxu0
    %v1947 = vmax.f32 %v1944, 0.0
    %1948 = vmatprep.subr.mxu0 0.0
    %1949 = vmatpush1.msra.mxu0 %v400
    %1950 = vmatprep.subr.mxu0 0.0
    %1951 = vmatpush1.msra.mxu0 %v401
    %1952 = vmatprep.subr.mxu0 0.0
    %1953 = vmatpush1.msra.mxu0 %v402
    %1954 = vmatprep.subr.mxu0 0.0
    %1955 = vmatpush1.msra.mxu0 %v403
    %1956 = vmatprep.subr.mxu0 0.0
    %1957 = vmatpush1.msra.mxu0 %v404
    %1958 = vmatprep.subr.mxu0 0.0
    %1959 = vmatpush1.msra.mxu0 %v405
    %1960 = vmatprep.subr.mxu0 0.0
    %1961 = vmatpush1.msra.mxu0 %v406
    %1962 = vmatprep.subr.mxu0 0.0
    %1963 = vmatpush1.msra.mxu0 %v407
    %1964 = vmatprep.subr.mxu0 0.0
    %1965 = vmatpush1.msra.mxu0 %v408
    %1966 = vmatprep.subr.mxu0 0.0
    %1967 = vmatpush1.msra.mxu0 %v409
    %1968 = vmatprep.subr.mxu0 0.0
    %1969 = vmatpush1.msra.mxu0 %v410
    %1970 = vmatprep.subr.mxu0 0.0
    %1971 = vmatpush1.msra.mxu0 %v411
    %1972 = vmatprep.subr.mxu0 0.0
    %1973 = vmatpush1.msra.mxu0 %v412
    %1974 = vmatprep.subr.mxu0 0.0
    %1975 = vmatpush1.msra.mxu0 %v413
    %1976 = vmatprep.subr.mxu0 0.0
    %1977 = vmatpush1.msra.mxu0 %v414
    %1978 = vmatprep.subr.mxu0 0.0
    %1979 = vmatpush1.msra.mxu0 %v415
    %1980 = vmatprep.subr.mxu0 0.0
    %1981 = vmatpush1.msra.mxu0 0.0
    %1982 = vmatprep.subr.mxu0 0.0
    %1983 = vmatpush1.msra.mxu0 0.0
    %1984 = vmatprep.subr.mxu0 0.0
    %1985 = vmatpush1.msra.mxu0 0.0
    %1986 = vmatprep.subr.mxu0 0.0
    %1987 = vmatpush1.msra.mxu0 0.0
    %1988 = vmatprep.subr.mxu0 0.0
    %1989 = vmatpush1.msra.mxu0 0.0
    %1990 = vmatprep.subr.mxu0 0.0
    %1991 = vmatpush1.msra.mxu0 0.0
    %1992 = vmatprep.subr.mxu0 0.0
    %1993 = vmatpush1.msra.mxu0 0.0
    %1994 = vmatprep.subr.mxu0 0.0
    %1995 = vmatpush1.msra.mxu0 0.0
    %1996 = vmatprep.subr.mxu0 0.0
    %1997 = vmatpush1.msra.mxu0 0.0
    %1998 = vmatprep.subr.mxu0 0.0
    %1999 = vmatpush1.msra.mxu0 0.0
    %2000 = vmatprep.subr.mxu0 0.0
    %2001 = vmatpush1.msra.mxu0 0.0
    %2002 = vmatprep.subr.mxu0 0.0
    %2003 = vmatpush1.msra.mxu0 0.0
    %2004 = vmatprep.subr.mxu0 0.0
    %2005 = vmatpush1.msra.mxu0 0.0
    %2006 = vmatprep.subr.mxu0 0.0
    %2007 = vmatpush1.msra.mxu0 0.0
    %2008 = vmatprep.subr.mxu0 0.0
    %2009 = vmatpush1.msra.mxu0 0.0
    %2010 = vmatprep.subr.mxu0 0.0
    %2011 = vmatpush1.msra.mxu0 0.0
    %2012 = vmatprep.mubr.f32.mxu0 0.0
    %2013 = vmatmul.mubr.f32.gmra.mrb[0].mxu0 %v1947
    %v2014 = vpop.f32.mrb[0].mxu0
    %v2015 = vadd.f32 0.0, %v2014
    %v2016 = vpop.f32.mrb[0].mxu0
    %2017 = vdwg.mxu0
    %2019 = vrot.lane.b32.xlu0 %v2015, 64
    %v2020 = vpop.permute.xlu0 %2019
    %v2022 = vadd.f32 %v1871, %v2020
    %v2023 = vadd.f32 %v2022, %v1229
    %2025 = vrot.lane.b32.xlu0 %v2023, 64
    %v2026 = vpop.permute.xlu0 %2025
    %v2028 = vsel %vm111, %v2026, 0.0
    %2029 = vadd.xlane.f32.xlu0 %v2028
    %v2030 = vpop.xlane.xlu0 %2029
    %v2031 = vmul.f32 %v2030, %v124
    %v2032 = vsub.f32 %v2023, %v2031
    %v2033 = vmul.f32 %v2032, %v2032
    %2035 = vrot.lane.b32.xlu0 %v2033, 64
    %v2036 = vpop.permute.xlu0 %2035
    %v2038 = vsel %vm111, %v2036, 0.0
    %2039 = vadd.xlane.f32.xlu0 %v2038
    %v2040 = vpop.xlane.xlu0 %2039
    %v2041 = vmul.f32 %v2040, %v124
    %v2042 = vadd.f32 %v2041, 1e-05
    %v2043 = vrsqrt.pop %v2042
    %v2044 = vmul.f32 %v2032, %v2043
    %v2045 = vmul.f32 %v2044, %v1255
    %v2046 = vadd.f32 %v2045, %v1260
    %2048 = vrot.lane.b32.xlu0 %v2046, 64
    %v2049 = vpop.permute.xlu0 %2048
    %v2050 = vsel %vm111, %v2049, 0
    %2052 = vmatprep.subr.mxu0 0.0
    %2053 = vmatpush1.msra.mxu0 %v352
    %2054 = vmatprep.subr.mxu0 0.0
    %2055 = vmatpush1.msra.mxu0 %v353
    %2056 = vmatprep.subr.mxu0 0.0
    %2057 = vmatpush1.msra.mxu0 %v354
    %2058 = vmatprep.subr.mxu0 0.0
    %2059 = vmatpush1.msra.mxu0 %v355
    %2060 = vmatprep.subr.mxu0 0.0
    %2061 = vmatpush1.msra.mxu0 %v356
    %2062 = vmatprep.subr.mxu0 0.0
    %2063 = vmatpush1.msra.mxu0 %v357
    %2064 = vmatprep.subr.mxu0 0.0
    %2065 = vmatpush1.msra.mxu0 %v358
    %2066 = vmatprep.subr.mxu0 0.0
    %2067 = vmatpush1.msra.mxu0 %v359
    %2068 = vmatprep.subr.mxu0 0.0
    %2069 = vmatpush1.msra.mxu0 0.0
    %2070 = vmatprep.subr.mxu0 0.0
    %2071 = vmatpush1.msra.mxu0 0.0
    %2072 = vmatprep.subr.mxu0 0.0
    %2073 = vmatpush1.msra.mxu0 0.0
    %2074 = vmatprep.subr.mxu0 0.0
    %2075 = vmatpush1.msra.mxu0 0.0
    %2076 = vmatprep.subr.mxu0 0.0
    %2077 = vmatpush1.msra.mxu0 0.0
    %2078 = vmatprep.subr.mxu0 0.0
    %2079 = vmatpush1.msra.mxu0 0.0
    %2080 = vmatprep.subr.mxu0 0.0
    %2081 = vmatpush1.msra.mxu0 0.0
    %2082 = vmatprep.subr.mxu0 0.0
    %2083 = vmatpush1.msra.mxu0 0.0
    %2084 = vmatprep.subr.mxu0 0.0
    %2085 = vmatpush1.msra.mxu0 0.0
    %2086 = vmatprep.subr.mxu0 0.0
    %2087 = vmatpush1.msra.mxu0 0.0
    %2088 = vmatprep.subr.mxu0 0.0
    %2089 = vmatpush1.msra.mxu0 0.0
    %2090 = vmatprep.subr.mxu0 0.0
    %2091 = vmatpush1.msra.mxu0 0.0
    %2092 = vmatprep.subr.mxu0 0.0
    %2093 = vmatpush1.msra.mxu0 0.0
    %2094 = vmatprep.subr.mxu0 0.0
    %2095 = vmatpush1.msra.mxu0 0.0
    %2096 = vmatprep.subr.mxu0 0.0
    %2097 = vmatpush1.msra.mxu0 0.0
    %2098 = vmatprep.subr.mxu0 0.0
    %2099 = vmatpush1.msra.mxu0 0.0
    %2100 = vmatprep.subr.mxu0 0.0
    %2101 = vmatpush1.msra.mxu0 0.0
    %2102 = vmatprep.subr.mxu0 0.0
    %2103 = vmatpush1.msra.mxu0 0.0
    %2104 = vmatprep.subr.mxu0 0.0
    %2105 = vmatpush1.msra.mxu0 0.0
    %2106 = vmatprep.subr.mxu0 0.0
    %2107 = vmatpush1.msra.mxu0 0.0
    %2108 = vmatprep.subr.mxu0 0.0
    %2109 = vmatpush1.msra.mxu0 0.0
    %2110 = vmatprep.subr.mxu0 0.0
    %2111 = vmatpush1.msra.mxu0 0.0
    %2112 = vmatprep.subr.mxu0 0.0
    %2113 = vmatpush1.msra.mxu0 0.0
    %2114 = vmatprep.subr.mxu0 0.0
    %2115 = vmatpush1.msra.mxu0 0.0
    %2116 = vmatprep.mubr.f32.mxu0 0.0
    %2117 = vmatmul.mubr.f32.gmra.mrb[0].mxu0 %v2050
    %v2118 = vpop.f32.mrb[0].mxu0
    %v2119 = vadd.f32 0.0, %v2118
    %v2120 = vpop.f32.mrb[0].mxu0
    %2121 = vdwg.mxu0
    %v2123 = vsel %vm111, %v2119, 0
    %2125 = vmatprep.subr.mxu0 0.0
    %2126 = vmatpush1.xpose.msra.mxu0 %v508
    %2127 = vmatprep.subr.mxu0 0.0
    %2128 = vmatpush1.xpose.msra.mxu0 %v511
    %2129 = vmatprep.subr.mxu0 0.0
    %2130 = vmatpush1.xpose.msra.mxu0 0.0
    %2131 = vmatprep.subr.mxu0 0.0
    %2132 = vmatpush1.xpose.msra.mxu0 0.0
    %2133 = vmatprep.subr.mxu0 0.0
    %2134 = vmatpush1.xpose.msra.mxu0 0.0
    %2135 = vmatprep.subr.mxu0 0.0
    %2136 = vmatpush1.xpose.msra.mxu0 0.0
    %2137 = vmatprep.subr.mxu0 0.0
    %2138 = vmatpush1.xpose.msra.mxu0 0.0
    %2139 = vmatprep.subr.mxu0 0.0
    %2140 = vmatpush1.xpose.msra.mxu0 0.0
    %2141 = vmatprep.subr.mxu0 0.0
    %2142 = vmatpush1.xpose.msra.mxu0 0.0
    %2143 = vmatprep.subr.mxu0 0.0
    %2144 = vmatpush1.xpose.msra.mxu0 0.0
    %2145 = vmatprep.subr.mxu0 0.0
    %2146 = vmatpush1.xpose.msra.mxu0 0.0
    %2147 = vmatprep.subr.mxu0 0.0
    %2148 = vmatpush1.xpose.msra.mxu0 0.0
    %2149 = vmatprep.subr.mxu0 0.0
    %2150 = vmatpush1.xpose.msra.mxu0 0.0
    %2151 = vmatprep.subr.mxu0 0.0
    %2152 = vmatpush1.xpose.msra.mxu0 0.0
    %2153 = vmatprep.subr.mxu0 0.0
    %2154 = vmatpush1.xpose.msra.mxu0 0.0
    %2155 = vmatprep.subr.mxu0 0.0
    %2156 = vmatpush1.xpose.msra.mxu0 0.0
    %2157 = vmatprep.subr.mxu0 0.0
    %2158 = vmatpush1.xpose.msra.mxu0 0.0
    %2159 = vmatprep.subr.mxu0 0.0
    %2160 = vmatpush1.xpose.msra.mxu0 0.0
    %2161 = vmatprep.subr.mxu0 0.0
    %2162 = vmatpush1.xpose.msra.mxu0 0.0
    %2163 = vmatprep.subr.mxu0 0.0
    %2164 = vmatpush1.xpose.msra.mxu0 0.0
    %2165 = vmatprep.subr.mxu0 0.0
    %2166 = vmatpush1.xpose.msra.mxu0 0.0
    %2167 = vmatprep.subr.mxu0 0.0
    %2168 = vmatpush1.xpose.msra.mxu0 0.0
    %2169 = vmatprep.subr.mxu0 0.0
    %2170 = vmatpush1.xpose.msra.mxu0 0.0
    %2171 = vmatprep.subr.mxu0 0.0
    %2172 = vmatpush1.xpose.msra.mxu0 0.0
    %2173 = vmatprep.subr.mxu0 0.0
    %2174 = vmatpush1.xpose.msra.mxu0 0.0
    %2175 = vmatprep.subr.mxu0 0.0
    %2176 = vmatpush1.xpose.msra.mxu0 0.0
    %2177 = vmatprep.subr.mxu0 0.0
    %2178 = vmatpush1.xpose.msra.mxu0 0.0
    %2179 = vmatprep.subr.mxu0 0.0
    %2180 = vmatpush1.xpose.msra.mxu0 0.0
    %2181 = vmatprep.subr.mxu0 0.0
    %2182 = vmatpush1.xpose.msra.mxu0 0.0
    %2183 = vmatprep.subr.mxu0 0.0
    %2184 = vmatpush1.xpose.msra.mxu0 0.0
    %2185 = vmatprep.subr.mxu0 0.0
    %2186 = vmatpush1.xpose.msra.mxu0 0.0
    %2187 = vmatprep.subr.mxu0 0.0
    %2188 = vmatpush1.xpose.msra.mxu0 0.0
    %2189 = vmatprep.mubr.f32.mxu0 0.0
    %2190 = vmatmul.mubr.f32.gmra.mrb[0].mxu0 %v2123
    %v2191 = vpop.f32.mrb[0].mxu0
    %v2192 = vadd.f32 0.0, %v2191
    %v2193 = vpop.f32.mrb[0].mxu0
    %2194 = vdwg.mxu0
    %v2195 = vsel %vm583, %v2192, -inf
    %v2196 = vrot.slane %v2195, 4
    %v2197 = vmax.f32 %v2195, %v2196
    %v2198 = vrot.slane %v2197, 2
    %v2199 = vmax.f32 %v2197, %v2198
    %v2200 = vrot.slane %v2199, 1
    %v2201 = vmax.f32 %v2199, %v2200
    %v2202 = vsub.f32 %v2192, %v2201
    %v2203 = vmul.f32 %v2202, 1.442695
    %v2204 = vpow.pop %v2203
    %v2205 = vsel %vm583, %v2204, 0.0
    %v2206 = vrot.slane %v2205, 4
    %v2207 = vadd.f32 %v2205, %v2206
    %v2208 = vrot.slane %v2207, 2
    %v2209 = vadd.f32 %v2207, %v2208
    %v2210 = vrot.slane %v2209, 1
    %v2211 = vadd.f32 %v2209, %v2210
    %v2212 = vrcp.pop %v2211
    %v2213 = vmul.f32 %v2204, %v2212
    %v2214 = vadd.f32 %v2213, 1e-08
    %v2215 = vsel %vm583, %v2214, 0.0
    %2216 = vadd.xlane.f32.xlu0 %v2215
    %v2217 = vpop.xlane.xlu0 %2216
    %v2218 = vrcp.pop %v2217
    %v2219 = vmul.f32 %v2214, %v2218
    %v2221 = vsel %vm615, %v2219, 0
    %2223 = vmatprep.subr.mxu0 0.0
    %2224 = vmatpush1.msra.mxu0 %v610
    %2225 = vmatprep.subr.mxu0 0.0
    %2226 = vmatpush1.msra.mxu0 %v612
    %2227 = vmatprep.subr.mxu0 0.0
    %2228 = vmatpush1.msra.mxu0 0.0
    %2229 = vmatprep.subr.mxu0 0.0
    %2230 = vmatpush1.msra.mxu0 0.0
    %2231 = vmatprep.subr.mxu0 0.0
    %2232 = vmatpush1.msra.mxu0 0.0
    %2233 = vmatprep.subr.mxu0 0.0
    %2234 = vmatpush1.msra.mxu0 0.0
    %2235 = vmatprep.subr.mxu0 0.0
    %2236 = vmatpush1.msra.mxu0 0.0
    %2237 = vmatprep.subr.mxu0 0.0
    %2238 = vmatpush1.msra.mxu0 0.0
    %2239 = vmatprep.subr.mxu0 0.0
    %2240 = vmatpush1.msra.mxu0 0.0
    %2241 = vmatprep.subr.mxu0 0.0
    %2242 = vmatpush1.msra.mxu0 0.0
    %2243 = vmatprep.subr.mxu0 0.0
    %2244 = vmatpush1.msra.mxu0 0.0
    %2245 = vmatprep.subr.mxu0 0.0
    %2246 = vmatpush1.msra.mxu0 0.0
    %2247 = vmatprep.subr.mxu0 0.0
    %2248 = vmatpush1.msra.mxu0 0.0
    %2249 = vmatprep.subr.mxu0 0.0
    %2250 = vmatpush1.msra.mxu0 0.0
    %2251 = vmatprep.subr.mxu0 0.0
    %2252 = vmatpush1.msra.mxu0 0.0
    %2253 = vmatprep.subr.mxu0 0.0
    %2254 = vmatpush1.msra.mxu0 0.0
    %2255 = vmatprep.subr.mxu0 0.0
    %2256 = vmatpush1.msra.mxu0 0.0
    %2257 = vmatprep.subr.mxu0 0.0
    %2258 = vmatpush1.msra.mxu0 0.0
    %2259 = vmatprep.subr.mxu0 0.0
    %2260 = vmatpush1.msra.mxu0 0.0
    %2261 = vmatprep.subr.mxu0 0.0
    %2262 = vmatpush1.msra.mxu0 0.0
    %2263 = vmatprep.subr.mxu0 0.0
    %2264 = vmatpush1.msra.mxu0 0.0
    %2265 = vmatprep.subr.mxu0 0.0
    %2266 = vmatpush1.msra.mxu0 0.0
    %2267 = vmatprep.subr.mxu0 0.0
    %2268 = vmatpush1.msra.mxu0 0.0
    %2269 = vmatprep.subr.mxu0 0.0
    %2270 = vmatpush1.msra.mxu0 0.0
    %2271 = vmatprep.subr.mxu0 0.0
    %2272 = vmatpush1.msra.mxu0 0.0
    %2273 = vmatprep.subr.mxu0 0.0
    %2274 = vmatpush1.msra.mxu0 0.0
    %2275 = vmatprep.subr.mxu0 0.0
    %2276 = vmatpush1.msra.mxu0 0.0
    %2277 = vmatprep.subr.mxu0 0.0
    %2278 = vmatpush1.msra.mxu0 0.0
    %2279 = vmatprep.subr.mxu0 0.0
    %2280 = vmatpush1.msra.mxu0 0.0
    %2281 = vmatprep.subr.mxu0 0.0
    %2282 = vmatpush1.msra.mxu0 0.0
    %2283 = vmatprep.subr.mxu0 0.0
    %2284 = vmatpush1.msra.mxu0 0.0
    %2285 = vmatprep.subr.mxu0 0.0
    %2286 = vmatpush1.msra.mxu0 0.0
    %2287 = vmatprep.mubr.f32.mxu0 0.0
    %2288 = vmatmul.mubr.f32.gmra.mrb[0].mxu0 %v2221
    %v2289 = vpop.f32.mrb[0].mxu0
    %v2290 = vadd.f32 0.0, %v2289
    %v2291 = vpop.f32.mrb[0].mxu0
    %2292 = vdwg.mxu0
    %v2293 = vrot.slane %v2119, 4
    %v2294 = vsel %vm111, %v2293, 0
    %2296 = vmatprep.subr.mxu0 0.0
    %2297 = vmatpush1.xpose.msra.mxu0 %v693
    %2298 = vmatprep.subr.mxu0 0.0
    %2299 = vmatpush1.xpose.msra.mxu0 %v696
    %2300 = vmatprep.subr.mxu0 0.0
    %2301 = vmatpush1.xpose.msra.mxu0 0.0
    %2302 = vmatprep.subr.mxu0 0.0
    %2303 = vmatpush1.xpose.msra.mxu0 0.0
    %2304 = vmatprep.subr.mxu0 0.0
    %2305 = vmatpush1.xpose.msra.mxu0 0.0
    %2306 = vmatprep.subr.mxu0 0.0
    %2307 = vmatpush1.xpose.msra.mxu0 0.0
    %2308 = vmatprep.subr.mxu0 0.0
    %2309 = vmatpush1.xpose.msra.mxu0 0.0
    %2310 = vmatprep.subr.mxu0 0.0
    %2311 = vmatpush1.xpose.msra.mxu0 0.0
    %2312 = vmatprep.subr.mxu0 0.0
    %2313 = vmatpush1.xpose.msra.mxu0 0.0
    %2314 = vmatprep.subr.mxu0 0.0
    %2315 = vmatpush1.xpose.msra.mxu0 0.0
    %2316 = vmatprep.subr.mxu0 0.0
    %2317 = vmatpush1.xpose.msra.mxu0 0.0
    %2318 = vmatprep.subr.mxu0 0.0
    %2319 = vmatpush1.xpose.msra.mxu0 0.0
    %2320 = vmatprep.subr.mxu0 0.0
    %2321 = vmatpush1.xpose.msra.mxu0 0.0
    %2322 = vmatprep.subr.mxu0 0.0
    %2323 = vmatpush1.xpose.msra.mxu0 0.0
    %2324 = vmatprep.subr.mxu0 0.0
    %2325 = vmatpush1.xpose.msra.mxu0 0.0
    %2326 = vmatprep.subr.mxu0 0.0
    %2327 = vmatpush1.xpose.msra.mxu0 0.0
    %2328 = vmatprep.subr.mxu0 0.0
    %2329 = vmatpush1.xpose.msra.mxu0 0.0
    %2330 = vmatprep.subr.mxu0 0.0
    %2331 = vmatpush1.xpose.msra.mxu0 0.0
    %2332 = vmatprep.subr.mxu0 0.0
    %2333 = vmatpush1.xpose.msra.mxu0 0.0
    %2334 = vmatprep.subr.mxu0 0.0
    %2335 = vmatpush1.xpose.msra.mxu0 0.0
    %2336 = vmatprep.subr.mxu0 0.0
    %2337 = vmatpush1.xpose.msra.mxu0 0.0
    %2338 = vmatprep.subr.mxu0 0.0
    %2339 = vmatpush1.xpose.msra.mxu0 0.0
    %2340 = vmatprep.subr.mxu0 0.0
    %2341 = vmatpush1.xpose.msra.mxu0 0.0
    %2342 = vmatprep.subr.mxu0 0.0
    %2343 = vmatpush1.xpose.msra.mxu0 0.0
    %2344 = vmatprep.subr.mxu0 0.0
    %2345 = vmatpush1.xpose.msra.mxu0 0.0
    %2346 = vmatprep.subr.mxu0 0.0
    %2347 = vmatpush1.xpose.msra.mxu0 0.0
    %2348 = vmatprep.subr.mxu0 0.0
    %2349 = vmatpush1.xpose.msra.mxu0 0.0
    %2350 = vmatprep.subr.mxu0 0.0
    %2351 = vmatpush1.xpose.msra.mxu0 0.0
    %2352 = vmatprep.subr.mxu0 0.0
    %2353 = vmatpush1.xpose.msra.mxu0 0.0
    %2354 = vmatprep.subr.mxu0 0.0
    %2355 = vmatpush1.xpose.msra.mxu0 0.0
    %2356 = vmatprep.subr.mxu0 0.0
    %2357 = vmatpush1.xpose.msra.mxu0 0.0
    %2358 = vmatprep.subr.mxu0 0.0
    %2359 = vmatpush1.xpose.msra.mxu0 0.0
    %2360 = vmatprep.mubr.f32.mxu0 0.0
    %2361 = vmatmul.mubr.f32.gmra.mrb[0].mxu0 %v2294
    %v2362 = vpop.f32.mrb[0].mxu0
    %v2363 = vadd.f32 0.0, %v2362
    %v2364 = vpop.f32.mrb[0].mxu0
    %2365 = vdwg.mxu0
    %v2366 = vsel %vm583, %v2363, -inf
    %v2367 = vrot.slane %v2366, 4
    %v2368 = vmax.f32 %v2366, %v2367
    %v2369 = vrot.slane %v2368, 2
    %v2370 = vmax.f32 %v2368, %v2369
    %v2371 = vrot.slane %v2370, 1
    %v2372 = vmax.f32 %v2370, %v2371
    %v2373 = vsub.f32 %v2363, %v2372
    %v2374 = vmul.f32 %v2373, 1.442695
    %v2375 = vpow.pop %v2374
    %v2376 = vsel %vm583, %v2375, 0.0
    %v2377 = vrot.slane %v2376, 4
    %v2378 = vadd.f32 %v2376, %v2377
    %v2379 = vrot.slane %v2378, 2
    %v2380 = vadd.f32 %v2378, %v2379
    %v2381 = vrot.slane %v2380, 1
    %v2382 = vadd.f32 %v2380, %v2381
    %v2383 = vrcp.pop %v2382
    %v2384 = vmul.f32 %v2375, %v2383
    %v2385 = vadd.f32 %v2384, 1e-08
    %v2386 = vsel %vm583, %v2385, 0.0
    %2387 = vadd.xlane.f32.xlu0 %v2386
    %v2388 = vpop.xlane.xlu0 %2387
    %v2389 = vrcp.pop %v2388
    %v2390 = vmul.f32 %v2385, %v2389
    %v2392 = vsel %vm615, %v2390, 0
    %2394 = vmatprep.subr.mxu0 0.0
    %2395 = vmatpush1.msra.mxu0 %v794
    %2396 = vmatprep.subr.mxu0 0.0
    %2397 = vmatpush1.msra.mxu0 %v796
    %2398 = vmatprep.subr.mxu0 0.0
    %2399 = vmatpush1.msra.mxu0 0.0
    %2400 = vmatprep.subr.mxu0 0.0
    %2401 = vmatpush1.msra.mxu0 0.0
    %2402 = vmatprep.subr.mxu0 0.0
    %2403 = vmatpush1.msra.mxu0 0.0
    %2404 = vmatprep.subr.mxu0 0.0
    %2405 = vmatpush1.msra.mxu0 0.0
    %2406 = vmatprep.subr.mxu0 0.0
    %2407 = vmatpush1.msra.mxu0 0.0
    %2408 = vmatprep.subr.mxu0 0.0
    %2409 = vmatpush1.msra.mxu0 0.0
    %2410 = vmatprep.subr.mxu0 0.0
    %2411 = vmatpush1.msra.mxu0 0.0
    %2412 = vmatprep.subr.mxu0 0.0
    %2413 = vmatpush1.msra.mxu0 0.0
    %2414 = vmatprep.subr.mxu0 0.0
    %2415 = vmatpush1.msra.mxu0 0.0
    %2416 = vmatprep.subr.mxu0 0.0
    %2417 = vmatpush1.msra.mxu0 0.0
    %2418 = vmatprep.subr.mxu0 0.0
    %2419 = vmatpush1.msra.mxu0 0.0
    %2420 = vmatprep.subr.mxu0 0.0
    %2421 = vmatpush1.msra.mxu0 0.0
    %2422 = vmatprep.subr.mxu0 0.0
    %2423 = vmatpush1.msra.mxu0 0.0
    %2424 = vmatprep.subr.mxu0 0.0
    %2425 = vmatpush1.msra.mxu0 0.0
    %2426 = vmatprep.subr.mxu0 0.0
    %2427 = vmatpush1.msra.mxu0 0.0
    %2428 = vmatprep.subr.mxu0 0.0
    %2429 = vmatpush1.msra.mxu0 0.0
    %2430 = vmatprep.subr.mxu0 0.0
    %2431 = vmatpush1.msra.mxu0 0.0
    %2432 = vmatprep.subr.mxu0 0.0
    %2433 = vmatpush1.msra.mxu0 0.0
    %2434 = vmatprep.subr.mxu0 0.0
    %2435 = vmatpush1.msra.mxu0 0.0
    %2436 = vmatprep.subr.mxu0 0.0
    %2437 = vmatpush1.msra.mxu0 0.0
    %2438 = vmatprep.subr.mxu0 0.0
    %2439 = vmatpush1.msra.mxu0 0.0
    %2440 = vmatprep.subr.mxu0 0.0
    %2441 = vmatpush1.msra.mxu0 0.0
    %2442 = vmatprep.subr.mxu0 0.0
    %2443 = vmatpush1.msra.mxu0 0.0
    %2444 = vmatprep.subr.mxu0 0.0
    %2445 = vmatpush1.msra.mxu0 0.0
    %2446 = vmatprep.subr.mxu0 0.0
    %2447 = vmatpush1.msra.mxu0 0.0
    %2448 = vmatprep.subr.mxu0 0.0
    %2449 = vmatpush1.msra.mxu0 0.0
    %2450 = vmatprep.subr.mxu0 0.0
    %2451 = vmatpush1.msra.mxu0 0.0
    %2452 = vmatprep.subr.mxu0 0.0
    %2453 = vmatpush1.msra.mxu0 0.0
    %2454 = vmatprep.subr.mxu0 0.0
    %2455 = vmatpush1.msra.mxu0 0.0
    %2456 = vmatprep.subr.mxu0 0.0
    %2457 = vmatpush1.msra.mxu0 0.0
    %2458 = vmatprep.mubr.f32.mxu0 0.0
    %2459 = vmatmul.mubr.f32.gmra.mrb[0].mxu0 %v2392
    %v2460 = vpop.f32.mrb[0].mxu0
    %v2461 = vadd.f32 0.0, %v2460
    %v2462 = vpop.f32.mrb[0].mxu0
    %2463 = vdwg.mxu0
    %v2465 = vrot.slane %v2461, 4
    %v2467 = vsel %vm108, %v2290, %v2465
    %v2469 = vsel %vm111, %v2467, 0
    %2471 = vmatprep.subr.mxu0 %v361
    %2472 = vmatpush1.msra.mxu0 %v360
    %2473 = vmatprep.subr.mxu0 %v363
    %2474 = vmatpush1.msra.mxu0 %v362
    %2475 = vmatprep.subr.mxu0 %v365
    %2476 = vmatpush1.msra.mxu0 %v364
    %2477 = vmatprep.subr.mxu0 %v367
    %2478 = vmatpush1.msra.mxu0 %v366
    %2479 = vmatprep.subr.mxu0 %v369
    %2480 = vmatpush1.msra.mxu0 %v368
    %2481 = vmatprep.subr.mxu0 %v371
    %2482 = vmatpush1.msra.mxu0 %v370
    %2483 = vmatprep.subr.mxu0 %v373
    %2484 = vmatpush1.msra.mxu0 %v372
    %2485 = vmatprep.subr.mxu0 %v375
    %2486 = vmatpush1.msra.mxu0 %v374
    %2487 = vmatprep.subr.mxu0 0.0
    %2488 = vmatpush1.msra.mxu0 0.0
    %2489 = vmatprep.subr.mxu0 0.0
    %2490 = vmatpush1.msra.mxu0 0.0
    %2491 = vmatprep.subr.mxu0 0.0
    %2492 = vmatpush1.msra.mxu0 0.0
    %2493 = vmatprep.subr.mxu0 0.0
    %2494 = vmatpush1.msra.mxu0 0.0
    %2495 = vmatprep.subr.mxu0 0.0
    %2496 = vmatpush1.msra.mxu0 0.0
    %2497 = vmatprep.subr.mxu0 0.0
    %2498 = vmatpush1.msra.mxu0 0.0
    %2499 = vmatprep.subr.mxu0 0.0
    %2500 = vmatpush1.msra.mxu0 0.0
    %2501 = vmatprep.subr.mxu0 0.0
    %2502 = vmatpush1.msra.mxu0 0.0
    %2503 = vmatprep.subr.mxu0 0.0
    %2504 = vmatpush1.msra.mxu0 0.0
    %2505 = vmatprep.subr.mxu0 0.0
    %2506 = vmatpush1.msra.mxu0 0.0
    %2507 = vmatprep.subr.mxu0 0.0
    %2508 = vmatpush1.msra.mxu0 0.0
    %2509 = vmatprep.subr.mxu0 0.0
    %2510 = vmatpush1.msra.mxu0 0.0
    %2511 = vmatprep.subr.mxu0 0.0
    %2512 = vmatpush1.msra.mxu0 0.0
    %2513 = vmatprep.subr.mxu0 0.0
    %2514 = vmatpush1.msra.mxu0 0.0
    %2515 = vmatprep.subr.mxu0 0.0
    %2516 = vmatpush1.msra.mxu0 0.0
    %2517 = vmatprep.subr.mxu0 0.0
    %2518 = vmatpush1.msra.mxu0 0.0
    %2519 = vmatprep.subr.mxu0 0.0
    %2520 = vmatpush1.msra.mxu0 0.0
    %2521 = vmatprep.subr.mxu0 0.0
    %2522 = vmatpush1.msra.mxu0 0.0
    %2523 = vmatprep.subr.mxu0 0.0
    %2524 = vmatpush1.msra.mxu0 0.0
    %2525 = vmatprep.subr.mxu0 0.0
    %2526 = vmatpush1.msra.mxu0 0.0
    %2527 = vmatprep.subr.mxu0 0.0
    %2528 = vmatpush1.msra.mxu0 0.0
    %2529 = vmatprep.subr.mxu0 0.0
    %2530 = vmatpush1.msra.mxu0 0.0
    %2531 = vmatprep.subr.mxu0 0.0
    %2532 = vmatpush1.msra.mxu0 0.0
    %2533 = vmatprep.subr.mxu0 0.0
    %2534 = vmatpush1.msra.mxu0 0.0
    %2535 = vmatprep.mubr.f32.mxu0 0.0
    %2536 = vmatmul.mubr.f32.gmra.mrb[0].mxu0 %v2469
    %v2537 = vpop.f32.mrb[0].mxu0
    %v2538 = vadd.f32 %v322, %v2537
    %v2539 = vpop.f32.mrb[0].mxu0
    %v2540 = vadd.f32 %v326, %v2539
    %2541 = vdwg.mxu0
    %v2542 = vsel %vm111, %v2026, 0
    %2544 = vmatprep.subr.mxu0 %v377
    %2545 = vmatpush1.msra.mxu0 %v376
    %2546 = vmatprep.subr.mxu0 %v379
    %2547 = vmatpush1.msra.mxu0 %v378
    %2548 = vmatprep.subr.mxu0 %v381
    %2549 = vmatpush1.msra.mxu0 %v380
    %2550 = vmatprep.subr.mxu0 %v383
    %2551 = vmatpush1.msra.mxu0 %v382
    %2552 = vmatprep.subr.mxu0 %v385
    %2553 = vmatpush1.msra.mxu0 %v384
    %2554 = vmatprep.subr.mxu0 %v387
    %2555 = vmatpush1.msra.mxu0 %v386
    %2556 = vmatprep.subr.mxu0 %v389
    %2557 = vmatpush1.msra.mxu0 %v388
    %2558 = vmatprep.subr.mxu0 %v391
    %2559 = vmatpush1.msra.mxu0 %v390
    %2560 = vmatprep.subr.mxu0 0.0
    %2561 = vmatpush1.msra.mxu0 0.0
    %2562 = vmatprep.subr.mxu0 0.0
    %2563 = vmatpush1.msra.mxu0 0.0
    %2564 = vmatprep.subr.mxu0 0.0
    %2565 = vmatpush1.msra.mxu0 0.0
    %2566 = vmatprep.subr.mxu0 0.0
    %2567 = vmatpush1.msra.mxu0 0.0
    %2568 = vmatprep.subr.mxu0 0.0
    %2569 = vmatpush1.msra.mxu0 0.0
    %2570 = vmatprep.subr.mxu0 0.0
    %2571 = vmatpush1.msra.mxu0 0.0
    %2572 = vmatprep.subr.mxu0 0.0
    %2573 = vmatpush1.msra.mxu0 0.0
    %2574 = vmatprep.subr.mxu0 0.0
    %2575 = vmatpush1.msra.mxu0 0.0
    %2576 = vmatprep.subr.mxu0 0.0
    %2577 = vmatpush1.msra.mxu0 0.0
    %2578 = vmatprep.subr.mxu0 0.0
    %2579 = vmatpush1.msra.mxu0 0.0
    %2580 = vmatprep.subr.mxu0 0.0
    %2581 = vmatpush1.msra.mxu0 0.0
    %2582 = vmatprep.subr.mxu0 0.0
    %2583 = vmatpush1.msra.mxu0 0.0
    %2584 = vmatprep.subr.mxu0 0.0
    %2585 = vmatpush1.msra.mxu0 0.0
    %2586 = vmatprep.subr.mxu0 0.0
    %2587 = vmatpush1.msra.mxu0 0.0
    %2588 = vmatprep.subr.mxu0 0.0
    %2589 = vmatpush1.msra.mxu0 0.0
    %2590 = vmatprep.subr.mxu0 0.0
    %2591 = vmatpush1.msra.mxu0 0.0
    %2592 = vmatprep.subr.mxu0 0.0
    %2593 = vmatpush1.msra.mxu0 0.0
    %2594 = vmatprep.subr.mxu0 0.0
    %2595 = vmatpush1.msra.mxu0 0.0
    %2596 = vmatprep.subr.mxu0 0.0
    %2597 = vmatpush1.msra.mxu0 0.0
    %2598 = vmatprep.subr.mxu0 0.0
    %2599 = vmatpush1.msra.mxu0 0.0
    %2600 = vmatprep.subr.mxu0 0.0
    %2601 = vmatpush1.msra.mxu0 0.0
    %2602 = vmatprep.subr.mxu0 0.0
    %2603 = vmatpush1.msra.mxu0 0.0
    %2604 = vmatprep.subr.mxu0 0.0
    %2605 = vmatpush1.msra.mxu0 0.0
    %2606 = vmatprep.subr.mxu0 0.0
    %2607 = vmatpush1.msra.mxu0 0.0
    %2608 = vmatprep.mubr.f32.mxu0 0.0
    %2609 = vmatmul.mubr.f32.gmra.mrb[0].mxu0 %v2542
    %v2610 = vpop.f32.mrb[0].mxu0
    %v2611 = vadd.f32 %v340, %v2610
    %v2612 = vpop.f32.mrb[0].mxu0
    %v2613 = vadd.f32 %v344, %v2612
    %2614 = vdwg.mxu0
    %v2615 = vadd.f32 %v2538, %v2611
    %v2616 = vxor.u32 %v2615, 2147483648
    %v2617 = vmul.f32 %v2616, 1.442695
    %v2618 = vpow.pop %v2617
    %v2619 = vadd.f32 %v2618, 1.0
    %v2620 = vrcp.pop %v2619
    %v2621 = vmul.f32 1.0, %v2620
    %v2622 = vmul.f32 %v2621, %v2613
    %v2623 = vadd.f32 %v2540, %v2622
    %v2624 = vtanh.pop %v2623
    %v2625 = vsub.f32 1.0, %v2621
    %2627 = vrot.lane.b32.xlu0 %v2624, 64
    %v2628 = vpop.permute.xlu0 %2627
    %v2630 = vmul.f32 %v2625, %v2628
    %v2631 = vmul.f32 %v2621, %v2023
    %v2632 = vadd.f32 %v2630, %v2631
    %2634 = vrot.lane.b32.xlu0 %v2632, 64
    %v2635 = vpop.permute.xlu0 %2634
    %v2637 = vsel %vm111, %v2635, 0.0
    %2638 = vadd.xlane.f32.xlu0 %v2637
    %v2639 = vpop.xlane.xlu0 %2638
    %v2640 = vmul.f32 %v2639, %v124
    %v2641 = vsub.f32 %v2632, %v2640
    %v2642 = vmul.f32 %v2641, %v2641
    %2644 = vrot.lane.b32.xlu0 %v2642, 64
    %v2645 = vpop.permute.xlu0 %2644
    %v2647 = vsel %vm111, %v2645, 0.0
    %2648 = vadd.xlane.f32.xlu0 %v2647
    %v2649 = vpop.xlane.xlu0 %2648
    %v2650 = vmul.f32 %v2649, %v124
    %v2651 = vadd.f32 %v2650, 1e-05
    %v2652 = vrsqrt.pop %v2651
    %v2653 = vmul.f32 %v2641, %v2652
    %v2654 = vmul.f32 %v2653, %v1068
    %v2655 = vadd.f32 %v2654, %v1073
    %2657 = vrot.lane.b32.xlu0 %v2655, 64
    %v2658 = vpop.permute.xlu0 %2657
    %v2659 = vsel %vm111, %v2658, 0
    %2661 = vmatprep.subr.mxu0 0.0
    %2662 = vmatpush1.msra.mxu0 %v392
    %2663 = vmatprep.subr.mxu0 0.0
    %2664 = vmatpush1.msra.mxu0 %v393
    %2665 = vmatprep.subr.mxu0 0.0
    %2666 = vmatpush1.msra.mxu0 %v394
    %2667 = vmatprep.subr.mxu0 0.0
    %2668 = vmatpush1.msra.mxu0 %v395
    %2669 = vmatprep.subr.mxu0 0.0
    %2670 = vmatpush1.msra.mxu0 %v396
    %2671 = vmatprep.subr.mxu0 0.0
    %2672 = vmatpush1.msra.mxu0 %v397
    %2673 = vmatprep.subr.mxu0 0.0
    %2674 = vmatpush1.msra.mxu0 %v398
    %2675 = vmatprep.subr.mxu0 0.0
    %2676 = vmatpush1.msra.mxu0 %v399
    %2677 = vmatprep.subr.mxu0 0.0
    %2678 = vmatpush1.msra.mxu0 0.0
    %2679 = vmatprep.subr.mxu0 0.0
    %2680 = vmatpush1.msra.mxu0 0.0
    %2681 = vmatprep.subr.mxu0 0.0
    %2682 = vmatpush1.msra.mxu0 0.0
    %2683 = vmatprep.subr.mxu0 0.0
    %2684 = vmatpush1.msra.mxu0 0.0
    %2685 = vmatprep.subr.mxu0 0.0
    %2686 = vmatpush1.msra.mxu0 0.0
    %2687 = vmatprep.subr.mxu0 0.0
    %2688 = vmatpush1.msra.mxu0 0.0
    %2689 = vmatprep.subr.mxu0 0.0
    %2690 = vmatpush1.msra.mxu0 0.0
    %2691 = vmatprep.subr.mxu0 0.0
    %2692 = vmatpush1.msra.mxu0 0.0
    %2693 = vmatprep.subr.mxu0 0.0
    %2694 = vmatpush1.msra.mxu0 0.0
    %2695 = vmatprep.subr.mxu0 0.0
    %2696 = vmatpush1.msra.mxu0 0.0
    %2697 = vmatprep.subr.mxu0 0.0
    %2698 = vmatpush1.msra.mxu0 0.0
    %2699 = vmatprep.subr.mxu0 0.0
    %2700 = vmatpush1.msra.mxu0 0.0
    %2701 = vmatprep.subr.mxu0 0.0
    %2702 = vmatpush1.msra.mxu0 0.0
    %2703 = vmatprep.subr.mxu0 0.0
    %2704 = vmatpush1.msra.mxu0 0.0
    %2705 = vmatprep.subr.mxu0 0.0
    %2706 = vmatpush1.msra.mxu0 0.0
    %2707 = vmatprep.subr.mxu0 0.0
    %2708 = vmatpush1.msra.mxu0 0.0
    %2709 = vmatprep.subr.mxu0 0.0
    %2710 = vmatpush1.msra.mxu0 0.0
    %2711 = vmatprep.subr.mxu0 0.0
    %2712 = vmatpush1.msra.mxu0 0.0
    %2713 = vmatprep.subr.mxu0 0.0
    %2714 = vmatpush1.msra.mxu0 0.0
    %2715 = vmatprep.subr.mxu0 0.0
    %2716 = vmatpush1.msra.mxu0 0.0
    %2717 = vmatprep.subr.mxu0 0.0
    %2718 = vmatpush1.msra.mxu0 0.0
    %2719 = vmatprep.subr.mxu0 0.0
    %2720 = vmatpush1.msra.mxu0 0.0
    %2721 = vmatprep.subr.mxu0 0.0
    %2722 = vmatpush1.msra.mxu0 0.0
    %2723 = vmatprep.subr.mxu0 0.0
    %2724 = vmatpush1.msra.mxu0 0.0
    %2725 = vmatprep.mubr.f32.mxu0 0.0
    %2726 = vmatmul.mubr.f32.gmra.mrb[0].mxu0 %v2659
    %v2727 = vpop.f32.mrb[0].mxu0
    %v2728 = vadd.f32 %v350, %v2727
    %v2729 = vpop.f32.mrb[0].mxu0
    %2730 = vdwg.mxu0
    %v2731 = vmax.f32 %v2728, 0.0
    %2732 = vmatprep.subr.mxu0 0.0
    %2733 = vmatpush1.msra.mxu0 %v400
    %2734 = vmatprep.subr.mxu0 0.0
    %2735 = vmatpush1.msra.mxu0 %v401
    %2736 = vmatprep.subr.mxu0 0.0
    %2737 = vmatpush1.msra.mxu0 %v402
    %2738 = vmatprep.subr.mxu0 0.0
    %2739 = vmatpush1.msra.mxu0 %v403
    %2740 = vmatprep.subr.mxu0 0.0
    %2741 = vmatpush1.msra.mxu0 %v404
    %2742 = vmatprep.subr.mxu0 0.0
    %2743 = vmatpush1.msra.mxu0 %v405
    %2744 = vmatprep.subr.mxu0 0.0
    %2745 = vmatpush1.msra.mxu0 %v406
    %2746 = vmatprep.subr.mxu0 0.0
    %2747 = vmatpush1.msra.mxu0 %v407
    %2748 = vmatprep.subr.mxu0 0.0
    %2749 = vmatpush1.msra.mxu0 %v408
    %2750 = vmatprep.subr.mxu0 0.0
    %2751 = vmatpush1.msra.mxu0 %v409
    %2752 = vmatprep.subr.mxu0 0.0
    %2753 = vmatpush1.msra.mxu0 %v410
    %2754 = vmatprep.subr.mxu0 0.0
    %2755 = vmatpush1.msra.mxu0 %v411
    %2756 = vmatprep.subr.mxu0 0.0
    %2757 = vmatpush1.msra.mxu0 %v412
    %2758 = vmatprep.subr.mxu0 0.0
    %2759 = vmatpush1.msra.mxu0 %v413
    %2760 = vmatprep.subr.mxu0 0.0
    %2761 = vmatpush1.msra.mxu0 %v414
    %2762 = vmatprep.subr.mxu0 0.0
    %2763 = vmatpush1.msra.mxu0 %v415
    %2764 = vmatprep.subr.mxu0 0.0
    %2765 = vmatpush1.msra.mxu0 0.0
    %2766 = vmatprep.subr.mxu0 0.0
    %2767 = vmatpush1.msra.mxu0 0.0
    %2768 = vmatprep.subr.mxu0 0.0
    %2769 = vmatpush1.msra.mxu0 0.0
    %2770 = vmatprep.subr.mxu0 0.0
    %2771 = vmatpush1.msra.mxu0 0.0
    %2772 = vmatprep.subr.mxu0 0.0
    %2773 = vmatpush1.msra.mxu0 0.0
    %2774 = vmatprep.subr.mxu0 0.0
    %2775 = vmatpush1.msra.mxu0 0.0
    %2776 = vmatprep.subr.mxu0 0.0
    %2777 = vmatpush1.msra.mxu0 0.0
    %2778 = vmatprep.subr.mxu0 0.0
    %2779 = vmatpush1.msra.mxu0 0.0
    %2780 = vmatprep.subr.mxu0 0.0
    %2781 = vmatpush1.msra.mxu0 0.0
    %2782 = vmatprep.subr.mxu0 0.0
    %2783 = vmatpush1.msra.mxu0 0.0
    %2784 = vmatprep.subr.mxu0 0.0
    %2785 = vmatpush1.msra.mxu0 0.0
    %2786 = vmatprep.subr.mxu0 0.0
    %2787 = vmatpush1.msra.mxu0 0.0
    %2788 = vmatprep.subr.mxu0 0.0
    %2789 = vmatpush1.msra.mxu0 0.0
    %2790 = vmatprep.subr.mxu0 0.0
    %2791 = vmatpush1.msra.mxu0 0.0
    %2792 = vmatprep.subr.mxu0 0.0
    %2793 = vmatpush1.msra.mxu0 0.0
    %2794 = vmatprep.subr.mxu0 0.0
    %2795 = vmatpush1.msra.mxu0 0.0
    %2796 = vmatprep.mubr.f32.mxu0 0.0
    %2797 = vmatmul.mubr.f32.gmra.mrb[0].mxu0 %v2731
    %v2798 = vpop.f32.mrb[0].mxu0
    %v2799 = vadd.f32 0.0, %v2798
    %v2800 = vpop.f32.mrb[0].mxu0
    %2801 = vdwg.mxu0
    %2803 = vrot.lane.b32.xlu0 %v2799, 64
    %v2804 = vpop.permute.xlu0 %2803
    %v2806 = vadd.f32 %v2655, %v2804
    %v2807 = vadd.f32 %v2806, %v1229
    %2809 = vrot.lane.b32.xlu0 %v2807, 64
    %v2810 = vpop.permute.xlu0 %2809
    %2812 = vst.msk [vmem:[#allocation10] sm:$0xff] %vm111, %v2810
    // Predicated region
    $region66: #{tpu_custom_call.1} parent=1 // pred_check
      _
    $region67: #{tpu_custom_call.1} parent=1 // pred_check_branch
      %2814 = sbr.rel (0) target = $region69
    $region68: #{tpu_custom_call.1} parent=1 // pred_region
      %s2816 = ssub.s32 128, 128
      %2817 = vsyncadd [#allocation4], %s2816
      %s2819 = sshll.u32 [#allocation10], 4
      %s2820 = int_to_ptr.vmem [resolvable:$true] %s2819
      %2822 = dma.vmem_to_hbm [thread:$0]  %s2820, 128, %s12, [#allocation4]
    $region69: #{tpu_custom_call.1} parent=1 // pred_fallthru
      _
    // Predicated region
    $region70: #{tpu_custom_call.1} parent=1 // pred_check
      _
    $region71: #{tpu_custom_call.1} parent=1 // pred_check_branch
      %2824 = sbr.rel (0) target = $region73
    $region72: #{tpu_custom_call.1} parent=1 // pred_region
      %2825 = dma.done [#allocation4], 128
    $region73: #{tpu_custom_call.1} parent=1 // pred_fallthru
      _
    %2826 = vsyncpa [#allocation3], 1
    %2827 = vsyncpa [#allocation6], 1
    %2828 = vsyncpa [#allocation9], 1
    %2829 = vsyncpa [#allocation4], 1

</llo_original>
